<compile_context>
chip_gen: v7x
topology: tpu7x:2x2x1
jax: 0.10.0
libtpu: 0.0.40
codegen_flags: <defaults>
</compile_context>

<pallas_src>
import functools
import math

import numpy as np
import jax
import jax.numpy as jnp
from jax.experimental import pallas as pl
from jax.experimental.pallas import tpu as pltpu


# ---------------------------------------------------------------------------
# Host-side precompute (glue): transition matrix P = D^{-1} A  (rowsum normalize)
# ---------------------------------------------------------------------------
def transition_matrix(adj: np.ndarray) -> np.ndarray:
    """P = D^{-1} A = A / rowsum(A), with 1/0 -> 0 (matches the torch reference)."""
    adj = np.asarray(adj, dtype=np.float64)
    rowsum = adj.sum(axis=1)
    with np.errstate(divide="ignore"):
        d_inv = np.power(rowsum, -1.0)
    d_inv[np.isinf(d_inv)] = 0.0
    return (d_inv[:, None] * adj).astype(np.float32)


# ---------------------------------------------------------------------------
# Fused Pallas kernel: Q/K projection -> attention graph -> mask -> normalize
#                      -> multi-order -> st-localized (lane-dense) outputs.
# One grid step handles Bt batches of BOTH modalities; all N x N planes stay in
# VMEM, and the four final outputs are written directly (no post-passes).
# ---------------------------------------------------------------------------
def _dyn_graph_kernel(feat_ref, wqk_ref, mask_ref,
                      o01_ref, o02_ref, o11_ref, o12_ref, *, k_t: int):
    # feat_ref: (2, Bt, N, F)   wqk_ref: (F, 2H)   mask_ref: (2, N, N)
    # o**_ref : (Bt, N, k_t*N)  in order [m0_o1, m0_o2, m1_o1, m1_o2]
    bt, n = feat_ref.shape[1], feat_ref.shape[2]
    h2 = wqk_ref.shape[1]
    h = h2 // 2
    wqk = wqk_ref[...]

    # Off-diagonal mask shared by all (m, b) of this step (hoisted, built once).
    row = jax.lax.broadcasted_iota(jnp.int32, (n, n), 0)
    col = jax.lax.broadcasted_iota(jnp.int32, (n, n), 1)
    off = row != col

    out_refs = ((o01_ref, o02_ref), (o11_ref, o12_ref))
    for m in range(2):
        mask = mask_ref[m]                       # (N, N); +1e-7 already folded in
        x = feat_ref[m]                          # (Bt, N, F)
        # Single fused Q||K projection for the whole batch tile (one MXU pass);
        # 1/sqrt(H) is folded into the Q half of the fused weight.
        qk = jnp.dot(x.reshape(bt * n, -1), wqk,
                     preferred_element_type=jnp.float32).reshape(bt, n, h2)
        o1_ref, o2_ref = out_refs[m]
        for b in range(bt):
            q = qk[b, :, :h]                     # (N, H), already scaled
            k = qk[b, :, h:]                     # (N, H)
            # S = Q K^T (contract H of both operands, no explicit transpose).
            s = jax.lax.dot_general(q, k, (((1,), (1,)), ((), ())),
                                    preferred_element_type=jnp.float32)   # (N, N)
            # Softmax numerator only: the row denominator cancels against the
            # Normalizer degree, so p = mask*e / sum(mask*e) exactly.
            e = jnp.exp(s - jnp.max(s, axis=-1, keepdims=True))
            a = mask * e
            deg = jnp.sum(a, axis=-1, keepdims=True)                      # (N, 1)
            # EUP approx reciprocal + one Newton step (on (N,1) only -> ~free),
            # then remove_nan_inf semantics (NaN/Inf -> 0; deg>0 here anyway).
            d_inv = pl.reciprocal(deg, approx=True)
            d_inv = d_inv * (2.0 - deg * d_inv)
            d_inv = jnp.where(jnp.abs(d_inv) < jnp.inf, d_inv, 0.0)
            p = a * d_inv

            # MultiOrder (k_s = 2): 1st and 2nd hop, diagonal removed.
            p2 = jnp.dot(p, p, preferred_element_type=jnp.float32)
            g1 = jnp.where(off, p, 0.0)
            g2 = jnp.where(off, p2, 0.0)

            # st_localization: k_t lane-dense copies, written straight to the
            # final output layout (no extra HBM pass afterwards).
            for t in range(k_t):
                o1_ref[b, :, t * n:(t + 1) * n] = g1
                o2_ref[b, :, t * n:(t + 1) * n] = g2


def build_dynamic_graphs(feats, wqk, masks, *, k_t: int, max_batch_tile: int = 4):
    """feats: (2, B, N, F); wqk: (F, 2H) fused [Wq/sqrt(H) || Wk]; masks: (2, N, N).

    Returns 4 arrays (m0_order1, m0_order2, m1_order1, m1_order2),
    each of shape (B, N, k_t*N).
    """
    n_mod, batch, n, f = feats.shape
    assert n_mod == 2
    h2 = wqk.shape[1]

    # Batch-block size: largest divisor of B that is <= max_batch_tile.
    bt = min(batch, max_batch_tile)
    while batch % bt:
        bt -= 1

    kernel = functools.partial(_dyn_graph_kernel, k_t=k_t)
    out_sds = jax.ShapeDtypeStruct((batch, n, k_t * n), jnp.float32)

    feat_spec = pl.BlockSpec((n_mod, bt, n, f), lambda i: (0, i, 0, 0))
    w_spec = pl.BlockSpec((f, h2), lambda i: (0, 0))            # VMEM-resident
    mask_spec = pl.BlockSpec((n_mod, n, n), lambda i: (0, 0, 0))  # VMEM-resident
    out_spec = pl.BlockSpec((bt, n, k_t * n), lambda i: (i, 0, 0))

    return pl.pallas_call(
        kernel,
        out_shape=(out_sds, out_sds, out_sds, out_sds),
        grid=(batch // bt,),
        in_specs=[feat_spec, w_spec, mask_spec],
        out_specs=(out_spec, out_spec, out_spec, out_spec),
        compiler_params=pltpu.CompilerParams(
            dimension_semantics=("parallel",)),
    )(feats, wqk, masks)


# ---------------------------------------------------------------------------
# Parameters + JAX glue mirroring DistanceFunction (small, lane-narrow ops left
# to XLA fusion per review guidance on tiny ops)
# ---------------------------------------------------------------------------
def init_params(key, adj_mx, *, num_hidden=32, node_hidden=10, input_window=12,
                time_emb_dim=10, add_time_in_day=True, add_day_in_week=True):
    time_dim = time_emb_dim * (int(add_time_in_day) + int(add_day_in_week))
    all_feat_dim = num_hidden + node_hidden + time_dim
    h2 = 2 * num_hidden
    k1, k2, k3, k4 = jax.random.split(key, 4)
    params = {
        "W1": jax.random.normal(k1, (input_window, h2), jnp.float32) / np.sqrt(input_window),
        "b1": jnp.zeros((h2,), jnp.float32),
        "W2": jax.random.normal(k2, (h2, num_hidden), jnp.float32) / np.sqrt(h2),
        "b2": jnp.zeros((num_hidden,), jnp.float32),
        # BatchNorm1d(2H), eval-mode statistics / affine (PyTorch defaults).
        "bn_gamma": jnp.ones((h2,), jnp.float32),
        "bn_beta": jnp.zeros((h2,), jnp.float32),
        "bn_mean": jnp.zeros((h2,), jnp.float32),
        "bn_var": jnp.ones((h2,), jnp.float32),
        "Wq": jax.random.normal(k3, (all_feat_dim, num_hidden), jnp.float32) / np.sqrt(all_feat_dim),
        "Wk": jax.random.normal(k4, (all_feat_dim, num_hidden), jnp.float32) / np.sqrt(all_feat_dim),
    }
    # Mask-module static masks, with the forward-time +1e-7 folded in (fp32-identical).
    m0 = transition_matrix(adj_mx).T
    m1 = transition_matrix(np.asarray(adj_mx).T).T
    params["mask"] = jnp.asarray(np.stack([m0, m1], axis=0), jnp.float32) + jnp.float32(1e-7)
    return params


def _distance_features(params, history, e_d, e_u, t_d, d_w):
    """DistanceFunction up to (and incl.) the feature concat; returns (2, B, N, F)."""
    b, l, n, _ = history.shape
    x = jnp.transpose(history[:, :, :, 0], (0, 2, 1)).reshape(b * n, l)
    h = jnp.maximum(x @ params["W1"] + params["b1"], 0.0)
    # TODO(synk): training-mode BatchNorm1d (batch statistics) and dropout are not
    # implemented; eval-mode running stats are used and dropout is the identity.
    h = (h - params["bn_mean"]) * (
        params["bn_gamma"] * jax.lax.rsqrt(params["bn_var"] + 1e-5)) + params["bn_beta"]
    dy = (h @ params["W2"] + params["b2"]).reshape(b, n, -1)
    td = t_d[:, -1]
    dw = d_w[:, -1]
    emb1 = jnp.broadcast_to(e_d[None], (b,) + e_d.shape)
    emb2 = jnp.broadcast_to(e_u[None], (b,) + e_u.shape)
    x1 = jnp.concatenate([dy, td, dw, emb1], axis=-1)
    x2 = jnp.concatenate([dy, td, dw, emb2], axis=-1)
    return jnp.stack([x1, x2], axis=0)


def forward(params, history, e_d, e_u, t_d, d_w, *, k_t=3):
    """DynamicGraphConstructor.forward -> list of 4 graphs, each (B, N, k_t*N)."""
    feats = _distance_features(params, history, e_d, e_u, t_d, d_w)
    hidden = params["Wq"].shape[1]
    # Fused [Wq/sqrt(H) || Wk] weight; tiny (F, 2H) op, done once per call.
    wqk = jnp.concatenate(
        [params["Wq"] * jnp.float32(1.0 / math.sqrt(hidden)), params["Wk"]], axis=1)
    # Four separate pallas outputs in torch order -> no jit-boundary slicing.
    o01, o02, o11, o12 = build_dynamic_graphs(feats, wqk, params["mask"], k_t=k_t)
    return [o01, o02, o11, o12]


forward_jit = jax.jit(forward, static_argnames=("k_t",))


# ---------------------------------------------------------------------------
# Pure-JAX reference (mirrors the torch math) for verification
# ---------------------------------------------------------------------------
def reference_forward(params, history, e_d, e_u, t_d, d_w, *, k_t=3):
    hp = jax.lax.Precision.HIGHEST
    feats = _distance_features(params, history, e_d, e_u, t_d, d_w)
    n = feats.shape[2]
    h = params["Wq"].shape[1]
    off = 1.0 - jnp.eye(n, dtype=jnp.float32)
    outs = []
    for m in range(2):
        x = feats[m]                                                 # (B, N, F)
        q = jnp.einsum("bnf,fh->bnh", x, params["Wq"], precision=hp)
        kk = jnp.einsum("bnf,fh->bnh", x, params["Wk"], precision=hp)
        s = jnp.einsum("bnh,bmh->bnm", q, kk, precision=hp) / math.sqrt(h)
        w = jax.nn.softmax(s, axis=-1)
        a = params["mask"][m] * w
        deg = a.sum(-1)
        d_inv = 1.0 / deg
        d_inv = jnp.where(jnp.isfinite(d_inv), d_inv, 0.0)
        p = a * d_inv[..., None]
        p2 = jnp.einsum("bij,bjk->bik", p, p, precision=hp)
        outs.append((jnp.tile(p * off, (1, 1, k_t)), jnp.tile(p2 * off, (1, 1, k_t))))
    return [outs[0][0], outs[0][1], outs[1][0], outs[1][1]]


# ---------------------------------------------------------------------------
# Smoke test
# ---------------------------------------------------------------------------
if __name__ == "__main__":
    key = jax.random.PRNGKey(0)
    kadj, kmsk, kprm, kx, ked, keu, ktd, kdw = jax.random.split(key, 8)

    # Small shapes consistent with D2STGNN defaults; N=128 keeps the graph
    # kernel lane-dense.
    B, L, N, D = 2, 12, 128, 2
    node_dim, time_emb_dim, hidden, k_t = 10, 10, 32, 3

    # Deterministic sparse-ish nonnegative static adjacency with self loops.
    w_rand = jax.random.uniform(kadj, (N, N), dtype=jnp.float32)
    keep = (jax.random.uniform(kmsk, (N, N)) > 0.7).astype(jnp.float32)
    adj_np = np.array(jax.device_get(w_rand * keep), dtype=np.float32)
    adj_np = np.maximum(adj_np, np.eye(N, dtype=np.float32))

    params = init_params(kprm, adj_np, num_hidden=hidden, node_hidden=node_dim,
                         input_window=L, time_emb_dim=time_emb_dim)

    history = jax.random.normal(kx, (B, L, N, D), dtype=jnp.float32)
    e_d = jax.random.normal(ked, (N, node_dim), dtype=jnp.float32)
    e_u = jax.random.normal(keu, (N, node_dim), dtype=jnp.float32)
    t_d = jax.random.normal(ktd, (B, L, N, time_emb_dim), dtype=jnp.float32)
    d_w = jax.random.normal(kdw, (B, L, N, time_emb_dim), dtype=jnp.float32)

    out = forward_jit(params, history, e_d, e_u, t_d, d_w, k_t=k_t)
    out = [jax.block_until_ready(o) for o in out]
    assert len(out) == 4 and out[0].shape == (B, N, k_t * N)

    ref = reference_forward(params, history, e_d, e_u, t_d, d_w, k_t=k_t)
    for o, r in zip(out, ref):
        np.testing.assert_allclose(np.asarray(o), np.asarray(r), rtol=2e-3, atol=2e-6)

    print("KERNEL_OK")
</pallas_src>

<mosaic_0001>
module attributes {stable_mosaic.version = 11 : i64} {
  func.func @_dyn_graph_kernel(%arg0: i32, %arg1: memref<2x2x128x62xf32, #tpu.memory_space<vmem>>, %arg2: memref<62x64xf32, #tpu.memory_space<vmem>>, %arg3: memref<2x128x128xf32, #tpu.memory_space<vmem>>, %arg4: memref<2x128x384xf32, #tpu.memory_space<vmem>>, %arg5: memref<2x128x384xf32, #tpu.memory_space<vmem>>, %arg6: memref<2x128x384xf32, #tpu.memory_space<vmem>>, %arg7: memref<2x128x384xf32, #tpu.memory_space<vmem>>) attributes {dimension_semantics = [#tpu.dimension_semantics<parallel>], iteration_bounds = array<i64: 1>, scalar_prefetch = 0 : i64, scratch_operands = 0 : i64, tpu.core_type = #tpu.core_type<tc>, window_params = [{transform_indices = @transform_0, window_bounds = array<i64: 2, 2, 128, 62>}, {pipeline_mode = #tpu.pipeline_mode<synchronous>, transform_indices = @transform_1, window_bounds = array<i64: 62, 64>}, {pipeline_mode = #tpu.pipeline_mode<synchronous>, transform_indices = @transform_2, window_bounds = array<i64: 2, 128, 128>}, {transform_indices = @transform_3, window_bounds = array<i64: 2, 128, 384>}, {transform_indices = @transform_4, window_bounds = array<i64: 2, 128, 384>}, {transform_indices = @transform_5, window_bounds = array<i64: 2, 128, 384>}, {transform_indices = @transform_6, window_bounds = array<i64: 2, 128, 384>}]} {
    %c0 = arith.constant 0 : index
    %c0_0 = arith.constant 0 : index
    %0 = vector.load %arg2[%c0, %c0_0] : memref<62x64xf32, #tpu.memory_space<vmem>>, vector<62x64xf32>
    %1 = tpu.iota {dimensions = array<i32: 0>} : vector<128x128xi32>
    %2 = tpu.iota {dimensions = array<i32: 1>} : vector<128x128xi32>
    %3 = arith.cmpi ne, %1, %2 : vector<128x128xi32>
    %c0_1 = arith.constant 0 : index
    %c0_2 = arith.constant 0 : index
    %c0_3 = arith.constant 0 : index
    %4 = vector.load %arg3[%c0_1, %c0_2, %c0_3] : memref<2x128x128xf32, #tpu.memory_space<vmem>>, vector<1x128x128xf32>
    %5 = vector.shape_cast %4 : vector<1x128x128xf32> to vector<128x128xf32>
    %c0_4 = arith.constant 0 : index
    %c0_5 = arith.constant 0 : index
    %c0_6 = arith.constant 0 : index
    %c0_7 = arith.constant 0 : index
    %6 = vector.load %arg1[%c0_4, %c0_5, %c0_6, %c0_7] : memref<2x2x128x62xf32, #tpu.memory_space<vmem>>, vector<1x2x128x62xf32>
    %7 = vector.shape_cast %6 : vector<1x2x128x62xf32> to vector<2x128x62xf32>
    %8 = vector.shape_cast %7 : vector<2x128x62xf32> to vector<256x62xf32>
    %cst = arith.constant dense<0.000000e+00> : vector<256x64xf32>
    %9 = tpu.matmul %8, %0, %cst {dimension_numbers = #tpu.dot_dimension_numbers<[1], [0], [0], [1], [0, 0, 1, 1], [], []>} : vector<256x62xf32>, vector<62x64xf32>, vector<256x64xf32> -> vector<256x64xf32>
    %10 = vector.shape_cast %9 : vector<256x64xf32> to vector<2x128x64xf32>
    %11 = vector.extract_strided_slice %10 {offsets = [0, 0, 0], sizes = [1, 128, 32], strides = [1, 1, 1]} : vector<2x128x64xf32> to vector<1x128x32xf32>
    %12 = vector.shape_cast %11 : vector<1x128x32xf32> to vector<128x32xf32>
    %13 = vector.extract_strided_slice %10 {offsets = [0, 0, 32], sizes = [1, 128, 32], strides = [1, 1, 1]} : vector<2x128x64xf32> to vector<1x128x32xf32>
    %14 = vector.shape_cast %13 : vector<1x128x32xf32> to vector<128x32xf32>
    %cst_8 = arith.constant dense<0.000000e+00> : vector<128x128xf32>
    %15 = tpu.matmul %12, %14, %cst_8 {dimension_numbers = #tpu.dot_dimension_numbers<[1], [1], [0], [0], [0, 0, 1, 0], [], []>} : vector<128x32xf32>, vector<128x32xf32>, vector<128x128xf32> -> vector<128x128xf32>
    %cst_9 = arith.constant dense<0xFF800000> : vector<128xf32>
    %16 = vector.multi_reduction <maximumf>, %15, %cst_9 [1] : vector<128x128xf32> to vector<128xf32>
    %17 = vector.shape_cast %16 : vector<128xf32> to vector<128x1xf32>
    %18 = vector.broadcast %17 : vector<128x1xf32> to vector<128x128xf32>
    %19 = arith.subf %15, %18 : vector<128x128xf32>
    %20 = math.exp %19 : vector<128x128xf32>
    %21 = arith.mulf %5, %20 : vector<128x128xf32>
    %cst_10 = arith.constant dense<0.000000e+00> : vector<128xf32>
    %22 = vector.multi_reduction <add>, %21, %cst_10 [1] : vector<128x128xf32> to vector<128xf32>
    %23 = vector.shape_cast %22 : vector<128xf32> to vector<128x1xf32>
    %24 = tpu.reciprocal %23 {approx = true} : vector<128x1xf32> -> vector<128x1xf32>
    %25 = arith.mulf %23, %24 : vector<128x1xf32>
    %cst_11 = arith.constant 2.000000e+00 : f32
    %26 = vector.broadcast %cst_11 : f32 to vector<128x1xf32>
    %27 = arith.subf %26, %25 : vector<128x1xf32>
    %28 = arith.mulf %24, %27 : vector<128x1xf32>
    %29 = math.absf %28 : vector<128x1xf32>
    %cst_12 = arith.constant 0x7F800000 : f32
    %30 = vector.broadcast %cst_12 : f32 to vector<128x1xf32>
    %31 = arith.cmpf olt, %29, %30 : vector<128x1xf32>
    %cst_13 = arith.constant 0.000000e+00 : f32
    %32 = vector.broadcast %cst_13 : f32 to vector<128x1xf32>
    %33 = arith.select %31, %28, %32 : vector<128x1xi1>, vector<128x1xf32>
    %34 = vector.broadcast %33 : vector<128x1xf32> to vector<128x128xf32>
    %35 = arith.mulf %21, %34 : vector<128x128xf32>
    %cst_14 = arith.constant dense<0.000000e+00> : vector<128x128xf32>
    %36 = tpu.matmul %35, %35, %cst_14 {dimension_numbers = #tpu.dot_dimension_numbers<[1], [0], [0], [1], [0, 0, 1, 1], [], []>} : vector<128x128xf32>, vector<128x128xf32>, vector<128x128xf32> -> vector<128x128xf32>
    %cst_15 = arith.constant 0.000000e+00 : f32
    %37 = vector.broadcast %cst_15 : f32 to vector<128x128xf32>
    %38 = arith.select %3, %35, %37 : vector<128x128xi1>, vector<128x128xf32>
    %cst_16 = arith.constant 0.000000e+00 : f32
    %39 = vector.broadcast %cst_16 : f32 to vector<128x128xf32>
    %40 = arith.select %3, %36, %39 : vector<128x128xi1>, vector<128x128xf32>
    %c0_17 = arith.constant 0 : index
    %c0_18 = arith.constant 0 : index
    %c0_19 = arith.constant 0 : index
    %41 = vector.load %arg4[%c0_17, %c0_18, %c0_19] : memref<2x128x384xf32, #tpu.memory_space<vmem>>, vector<1x128x128xf32>
    %42 = vector.shape_cast %41 : vector<1x128x128xf32> to vector<128x128xf32>
    %43 = vector.shape_cast %38 : vector<128x128xf32> to vector<1x128x128xf32>
    tpu.vector_store %arg4[%c0_17, %c0_18, %c0_19], %43 {strides = array<i32>} : memref<2x128x384xf32, #tpu.memory_space<vmem>>, vector<1x128x128xf32>,
    %c0_20 = arith.constant 0 : index
    %c0_21 = arith.constant 0 : index
    %c0_22 = arith.constant 0 : index
    %44 = vector.load %arg5[%c0_20, %c0_21, %c0_22] : memref<2x128x384xf32, #tpu.memory_space<vmem>>, vector<1x128x128xf32>
    %45 = vector.shape_cast %44 : vector<1x128x128xf32> to vector<128x128xf32>
    %46 = vector.shape_cast %40 : vector<128x128xf32> to vector<1x128x128xf32>
    tpu.vector_store %arg5[%c0_20, %c0_21, %c0_22], %46 {strides = array<i32>} : memref<2x128x384xf32, #tpu.memory_space<vmem>>, vector<1x128x128xf32>,
    %c0_23 = arith.constant 0 : index
    %c0_24 = arith.constant 0 : index
    %c128 = arith.constant 128 : index
    %47 = vector.load %arg4[%c0_23, %c0_24, %c128] : memref<2x128x384xf32, #tpu.memory_space<vmem>>, vector<1x128x128xf32>
    %48 = vector.shape_cast %47 : vector<1x128x128xf32> to vector<128x128xf32>
    %49 = vector.shape_cast %38 : vector<128x128xf32> to vector<1x128x128xf32>
    tpu.vector_store %arg4[%c0_23, %c0_24, %c128], %49 {strides = array<i32>} : memref<2x128x384xf32, #tpu.memory_space<vmem>>, vector<1x128x128xf32>,
    %c0_25 = arith.constant 0 : index
    %c0_26 = arith.constant 0 : index
    %c128_27 = arith.constant 128 : index
    %50 = vector.load %arg5[%c0_25, %c0_26, %c128_27] : memref<2x128x384xf32, #tpu.memory_space<vmem>>, vector<1x128x128xf32>
    %51 = vector.shape_cast %50 : vector<1x128x128xf32> to vector<128x128xf32>
    %52 = vector.shape_cast %40 : vector<128x128xf32> to vector<1x128x128xf32>
    tpu.vector_store %arg5[%c0_25, %c0_26, %c128_27], %52 {strides = array<i32>} : memref<2x128x384xf32, #tpu.memory_space<vmem>>, vector<1x128x128xf32>,
    %c0_28 = arith.constant 0 : index
    %c0_29 = arith.constant 0 : index
    %c256 = arith.constant 256 : index
    %53 = vector.load %arg4[%c0_28, %c0_29, %c256] : memref<2x128x384xf32, #tpu.memory_space<vmem>>, vector<1x128x128xf32>
    %54 = vector.shape_cast %53 : vector<1x128x128xf32> to vector<128x128xf32>
    %55 = vector.shape_cast %38 : vector<128x128xf32> to vector<1x128x128xf32>
    tpu.vector_store %arg4[%c0_28, %c0_29, %c256], %55 {strides = array<i32>} : memref<2x128x384xf32, #tpu.memory_space<vmem>>, vector<1x128x128xf32>,
    %c0_30 = arith.constant 0 : index
    %c0_31 = arith.constant 0 : index
    %c256_32 = arith.constant 256 : index
    %56 = vector.load %arg5[%c0_30, %c0_31, %c256_32] : memref<2x128x384xf32, #tpu.memory_space<vmem>>, vector<1x128x128xf32>
    %57 = vector.shape_cast %56 : vector<1x128x128xf32> to vector<128x128xf32>
    %58 = vector.shape_cast %40 : vector<128x128xf32> to vector<1x128x128xf32>
    tpu.vector_store %arg5[%c0_30, %c0_31, %c256_32], %58 {strides = array<i32>} : memref<2x128x384xf32, #tpu.memory_space<vmem>>, vector<1x128x128xf32>,
    %59 = vector.extract_strided_slice %10 {offsets = [1, 0, 0], sizes = [1, 128, 32], strides = [1, 1, 1]} : vector<2x128x64xf32> to vector<1x128x32xf32>
    %60 = vector.shape_cast %59 : vector<1x128x32xf32> to vector<128x32xf32>
    %61 = vector.extract_strided_slice %10 {offsets = [1, 0, 32], sizes = [1, 128, 32], strides = [1, 1, 1]} : vector<2x128x64xf32> to vector<1x128x32xf32>
    %62 = vector.shape_cast %61 : vector<1x128x32xf32> to vector<128x32xf32>
    %cst_33 = arith.constant dense<0.000000e+00> : vector<128x128xf32>
    %63 = tpu.matmul %60, %62, %cst_33 {dimension_numbers = #tpu.dot_dimension_numbers<[1], [1], [0], [0], [0, 0, 1, 0], [], []>} : vector<128x32xf32>, vector<128x32xf32>, vector<128x128xf32> -> vector<128x128xf32>
    %cst_34 = arith.constant dense<0xFF800000> : vector<128xf32>
    %64 = vector.multi_reduction <maximumf>, %63, %cst_34 [1] : vector<128x128xf32> to vector<128xf32>
    %65 = vector.shape_cast %64 : vector<128xf32> to vector<128x1xf32>
    %66 = vector.broadcast %65 : vector<128x1xf32> to vector<128x128xf32>
    %67 = arith.subf %63, %66 : vector<128x128xf32>
    %68 = math.exp %67 : vector<128x128xf32>
    %69 = arith.mulf %5, %68 : vector<128x128xf32>
    %cst_35 = arith.constant dense<0.000000e+00> : vector<128xf32>
    %70 = vector.multi_reduction <add>, %69, %cst_35 [1] : vector<128x128xf32> to vector<128xf32>
    %71 = vector.shape_cast %70 : vector<128xf32> to vector<128x1xf32>
    %72 = tpu.reciprocal %71 {approx = true} : vector<128x1xf32> -> vector<128x1xf32>
    %73 = arith.mulf %71, %72 : vector<128x1xf32>
    %cst_36 = arith.constant 2.000000e+00 : f32
    %74 = vector.broadcast %cst_36 : f32 to vector<128x1xf32>
    %75 = arith.subf %74, %73 : vector<128x1xf32>
    %76 = arith.mulf %72, %75 : vector<128x1xf32>
    %77 = math.absf %76 : vector<128x1xf32>
    %cst_37 = arith.constant 0x7F800000 : f32
    %78 = vector.broadcast %cst_37 : f32 to vector<128x1xf32>
    %79 = arith.cmpf olt, %77, %78 : vector<128x1xf32>
    %cst_38 = arith.constant 0.000000e+00 : f32
    %80 = vector.broadcast %cst_38 : f32 to vector<128x1xf32>
    %81 = arith.select %79, %76, %80 : vector<128x1xi1>, vector<128x1xf32>
    %82 = vector.broadcast %81 : vector<128x1xf32> to vector<128x128xf32>
    %83 = arith.mulf %69, %82 : vector<128x128xf32>
    %cst_39 = arith.constant dense<0.000000e+00> : vector<128x128xf32>
    %84 = tpu.matmul %83, %83, %cst_39 {dimension_numbers = #tpu.dot_dimension_numbers<[1], [0], [0], [1], [0, 0, 1, 1], [], []>} : vector<128x128xf32>, vector<128x128xf32>, vector<128x128xf32> -> vector<128x128xf32>
    %cst_40 = arith.constant 0.000000e+00 : f32
    %85 = vector.broadcast %cst_40 : f32 to vector<128x128xf32>
    %86 = arith.select %3, %83, %85 : vector<128x128xi1>, vector<128x128xf32>
    %cst_41 = arith.constant 0.000000e+00 : f32
    %87 = vector.broadcast %cst_41 : f32 to vector<128x128xf32>
    %88 = arith.select %3, %84, %87 : vector<128x128xi1>, vector<128x128xf32>
    %c1 = arith.constant 1 : index
    %c0_42 = arith.constant 0 : index
    %c0_43 = arith.constant 0 : index
    %89 = vector.load %arg4[%c1, %c0_42, %c0_43] : memref<2x128x384xf32, #tpu.memory_space<vmem>>, vector<1x128x128xf32>
    %90 = vector.shape_cast %89 : vector<1x128x128xf32> to vector<128x128xf32>
    %91 = vector.shape_cast %86 : vector<128x128xf32> to vector<1x128x128xf32>
    tpu.vector_store %arg4[%c1, %c0_42, %c0_43], %91 {strides = array<i32>} : memref<2x128x384xf32, #tpu.memory_space<vmem>>, vector<1x128x128xf32>,
    %c1_44 = arith.constant 1 : index
    %c0_45 = arith.constant 0 : index
    %c0_46 = arith.constant 0 : index
    %92 = vector.load %arg5[%c1_44, %c0_45, %c0_46] : memref<2x128x384xf32, #tpu.memory_space<vmem>>, vector<1x128x128xf32>
    %93 = vector.shape_cast %92 : vector<1x128x128xf32> to vector<128x128xf32>
    %94 = vector.shape_cast %88 : vector<128x128xf32> to vector<1x128x128xf32>
    tpu.vector_store %arg5[%c1_44, %c0_45, %c0_46], %94 {strides = array<i32>} : memref<2x128x384xf32, #tpu.memory_space<vmem>>, vector<1x128x128xf32>,
    %c1_47 = arith.constant 1 : index
    %c0_48 = arith.constant 0 : index
    %c128_49 = arith.constant 128 : index
    %95 = vector.load %arg4[%c1_47, %c0_48, %c128_49] : memref<2x128x384xf32, #tpu.memory_space<vmem>>, vector<1x128x128xf32>
    %96 = vector.shape_cast %95 : vector<1x128x128xf32> to vector<128x128xf32>
    %97 = vector.shape_cast %86 : vector<128x128xf32> to vector<1x128x128xf32>
    tpu.vector_store %arg4[%c1_47, %c0_48, %c128_49], %97 {strides = array<i32>} : memref<2x128x384xf32, #tpu.memory_space<vmem>>, vector<1x128x128xf32>,
    %c1_50 = arith.constant 1 : index
    %c0_51 = arith.constant 0 : index
    %c128_52 = arith.constant 128 : index
    %98 = vector.load %arg5[%c1_50, %c0_51, %c128_52] : memref<2x128x384xf32, #tpu.memory_space<vmem>>, vector<1x128x128xf32>
    %99 = vector.shape_cast %98 : vector<1x128x128xf32> to vector<128x128xf32>
    %100 = vector.shape_cast %88 : vector<128x128xf32> to vector<1x128x128xf32>
    tpu.vector_store %arg5[%c1_50, %c0_51, %c128_52], %100 {strides = array<i32>} : memref<2x128x384xf32, #tpu.memory_space<vmem>>, vector<1x128x128xf32>,
    %c1_53 = arith.constant 1 : index
    %c0_54 = arith.constant 0 : index
    %c256_55 = arith.constant 256 : index
    %101 = vector.load %arg4[%c1_53, %c0_54, %c256_55] : memref<2x128x384xf32, #tpu.memory_space<vmem>>, vector<1x128x128xf32>
    %102 = vector.shape_cast %101 : vector<1x128x128xf32> to vector<128x128xf32>
    %103 = vector.shape_cast %86 : vector<128x128xf32> to vector<1x128x128xf32>
    tpu.vector_store %arg4[%c1_53, %c0_54, %c256_55], %103 {strides = array<i32>} : memref<2x128x384xf32, #tpu.memory_space<vmem>>, vector<1x128x128xf32>,
    %c1_56 = arith.constant 1 : index
    %c0_57 = arith.constant 0 : index
    %c256_58 = arith.constant 256 : index
    %104 = vector.load %arg5[%c1_56, %c0_57, %c256_58] : memref<2x128x384xf32, #tpu.memory_space<vmem>>, vector<1x128x128xf32>
    %105 = vector.shape_cast %104 : vector<1x128x128xf32> to vector<128x128xf32>
    %106 = vector.shape_cast %88 : vector<128x128xf32> to vector<1x128x128xf32>
    tpu.vector_store %arg5[%c1_56, %c0_57, %c256_58], %106 {strides = array<i32>} : memref<2x128x384xf32, #tpu.memory_space<vmem>>, vector<1x128x128xf32>,
    %c1_59 = arith.constant 1 : index
    %c0_60 = arith.constant 0 : index
    %c0_61 = arith.constant 0 : index
    %107 = vector.load %arg3[%c1_59, %c0_60, %c0_61] : memref<2x128x128xf32, #tpu.memory_space<vmem>>, vector<1x128x128xf32>
    %108 = vector.shape_cast %107 : vector<1x128x128xf32> to vector<128x128xf32>
    %c1_62 = arith.constant 1 : index
    %c0_63 = arith.constant 0 : index
    %c0_64 = arith.constant 0 : index
    %c0_65 = arith.constant 0 : index
    %109 = vector.load %arg1[%c1_62, %c0_63, %c0_64, %c0_65] : memref<2x2x128x62xf32, #tpu.memory_space<vmem>>, vector<1x2x128x62xf32>
    %110 = vector.shape_cast %109 : vector<1x2x128x62xf32> to vector<2x128x62xf32>
    %111 = vector.shape_cast %110 : vector<2x128x62xf32> to vector<256x62xf32>
    %cst_66 = arith.constant dense<0.000000e+00> : vector<256x64xf32>
    %112 = tpu.matmul %111, %0, %cst_66 {dimension_numbers = #tpu.dot_dimension_numbers<[1], [0], [0], [1], [0, 0, 1, 1], [], []>} : vector<256x62xf32>, vector<62x64xf32>, vector<256x64xf32> -> vector<256x64xf32>
    %113 = vector.shape_cast %112 : vector<256x64xf32> to vector<2x128x64xf32>
    %114 = vector.extract_strided_slice %113 {offsets = [0, 0, 0], sizes = [1, 128, 32], strides = [1, 1, 1]} : vector<2x128x64xf32> to vector<1x128x32xf32>
    %115 = vector.shape_cast %114 : vector<1x128x32xf32> to vector<128x32xf32>
    %116 = vector.extract_strided_slice %113 {offsets = [0, 0, 32], sizes = [1, 128, 32], strides = [1, 1, 1]} : vector<2x128x64xf32> to vector<1x128x32xf32>
    %117 = vector.shape_cast %116 : vector<1x128x32xf32> to vector<128x32xf32>
    %cst_67 = arith.constant dense<0.000000e+00> : vector<128x128xf32>
    %118 = tpu.matmul %115, %117, %cst_67 {dimension_numbers = #tpu.dot_dimension_numbers<[1], [1], [0], [0], [0, 0, 1, 0], [], []>} : vector<128x32xf32>, vector<128x32xf32>, vector<128x128xf32> -> vector<128x128xf32>
    %cst_68 = arith.constant dense<0xFF800000> : vector<128xf32>
    %119 = vector.multi_reduction <maximumf>, %118, %cst_68 [1] : vector<128x128xf32> to vector<128xf32>
    %120 = vector.shape_cast %119 : vector<128xf32> to vector<128x1xf32>
    %121 = vector.broadcast %120 : vector<128x1xf32> to vector<128x128xf32>
    %122 = arith.subf %118, %121 : vector<128x128xf32>
    %123 = math.exp %122 : vector<128x128xf32>
    %124 = arith.mulf %108, %123 : vector<128x128xf32>
    %cst_69 = arith.constant dense<0.000000e+00> : vector<128xf32>
    %125 = vector.multi_reduction <add>, %124, %cst_69 [1] : vector<128x128xf32> to vector<128xf32>
    %126 = vector.shape_cast %125 : vector<128xf32> to vector<128x1xf32>
    %127 = tpu.reciprocal %126 {approx = true} : vector<128x1xf32> -> vector<128x1xf32>
    %128 = arith.mulf %126, %127 : vector<128x1xf32>
    %cst_70 = arith.constant 2.000000e+00 : f32
    %129 = vector.broadcast %cst_70 : f32 to vector<128x1xf32>
    %130 = arith.subf %129, %128 : vector<128x1xf32>
    %131 = arith.mulf %127, %130 : vector<128x1xf32>
    %132 = math.absf %131 : vector<128x1xf32>
    %cst_71 = arith.constant 0x7F800000 : f32
    %133 = vector.broadcast %cst_71 : f32 to vector<128x1xf32>
    %134 = arith.cmpf olt, %132, %133 : vector<128x1xf32>
    %cst_72 = arith.constant 0.000000e+00 : f32
    %135 = vector.broadcast %cst_72 : f32 to vector<128x1xf32>
    %136 = arith.select %134, %131, %135 : vector<128x1xi1>, vector<128x1xf32>
    %137 = vector.broadcast %136 : vector<128x1xf32> to vector<128x128xf32>
    %138 = arith.mulf %124, %137 : vector<128x128xf32>
    %cst_73 = arith.constant dense<0.000000e+00> : vector<128x128xf32>
    %139 = tpu.matmul %138, %138, %cst_73 {dimension_numbers = #tpu.dot_dimension_numbers<[1], [0], [0], [1], [0, 0, 1, 1], [], []>} : vector<128x128xf32>, vector<128x128xf32>, vector<128x128xf32> -> vector<128x128xf32>
    %cst_74 = arith.constant 0.000000e+00 : f32
    %140 = vector.broadcast %cst_74 : f32 to vector<128x128xf32>
    %141 = arith.select %3, %138, %140 : vector<128x128xi1>, vector<128x128xf32>
    %cst_75 = arith.constant 0.000000e+00 : f32
    %142 = vector.broadcast %cst_75 : f32 to vector<128x128xf32>
    %143 = arith.select %3, %139, %142 : vector<128x128xi1>, vector<128x128xf32>
    %c0_76 = arith.constant 0 : index
    %c0_77 = arith.constant 0 : index
    %c0_78 = arith.constant 0 : index
    %144 = vector.load %arg6[%c0_76, %c0_77, %c0_78] : memref<2x128x384xf32, #tpu.memory_space<vmem>>, vector<1x128x128xf32>
    %145 = vector.shape_cast %144 : vector<1x128x128xf32> to vector<128x128xf32>
    %146 = vector.shape_cast %141 : vector<128x128xf32> to vector<1x128x128xf32>
    tpu.vector_store %arg6[%c0_76, %c0_77, %c0_78], %146 {strides = array<i32>} : memref<2x128x384xf32, #tpu.memory_space<vmem>>, vector<1x128x128xf32>,
    %c0_79 = arith.constant 0 : index
    %c0_80 = arith.constant 0 : index
    %c0_81 = arith.constant 0 : index
    %147 = vector.load %arg7[%c0_79, %c0_80, %c0_81] : memref<2x128x384xf32, #tpu.memory_space<vmem>>, vector<1x128x128xf32>
    %148 = vector.shape_cast %147 : vector<1x128x128xf32> to vector<128x128xf32>
    %149 = vector.shape_cast %143 : vector<128x128xf32> to vector<1x128x128xf32>
    tpu.vector_store %arg7[%c0_79, %c0_80, %c0_81], %149 {strides = array<i32>} : memref<2x128x384xf32, #tpu.memory_space<vmem>>, vector<1x128x128xf32>,
    %c0_82 = arith.constant 0 : index
    %c0_83 = arith.constant 0 : index
    %c128_84 = arith.constant 128 : index
    %150 = vector.load %arg6[%c0_82, %c0_83, %c128_84] : memref<2x128x384xf32, #tpu.memory_space<vmem>>, vector<1x128x128xf32>
    %151 = vector.shape_cast %150 : vector<1x128x128xf32> to vector<128x128xf32>
    %152 = vector.shape_cast %141 : vector<128x128xf32> to vector<1x128x128xf32>
    tpu.vector_store %arg6[%c0_82, %c0_83, %c128_84], %152 {strides = array<i32>} : memref<2x128x384xf32, #tpu.memory_space<vmem>>, vector<1x128x128xf32>,
    %c0_85 = arith.constant 0 : index
    %c0_86 = arith.constant 0 : index
    %c128_87 = arith.constant 128 : index
    %153 = vector.load %arg7[%c0_85, %c0_86, %c128_87] : memref<2x128x384xf32, #tpu.memory_space<vmem>>, vector<1x128x128xf32>
    %154 = vector.shape_cast %153 : vector<1x128x128xf32> to vector<128x128xf32>
    %155 = vector.shape_cast %143 : vector<128x128xf32> to vector<1x128x128xf32>
    tpu.vector_store %arg7[%c0_85, %c0_86, %c128_87], %155 {strides = array<i32>} : memref<2x128x384xf32, #tpu.memory_space<vmem>>, vector<1x128x128xf32>,
    %c0_88 = arith.constant 0 : index
    %c0_89 = arith.constant 0 : index
    %c256_90 = arith.constant 256 : index
    %156 = vector.load %arg6[%c0_88, %c0_89, %c256_90] : memref<2x128x384xf32, #tpu.memory_space<vmem>>, vector<1x128x128xf32>
    %157 = vector.shape_cast %156 : vector<1x128x128xf32> to vector<128x128xf32>
    %158 = vector.shape_cast %141 : vector<128x128xf32> to vector<1x128x128xf32>
    tpu.vector_store %arg6[%c0_88, %c0_89, %c256_90], %158 {strides = array<i32>} : memref<2x128x384xf32, #tpu.memory_space<vmem>>, vector<1x128x128xf32>,
    %c0_91 = arith.constant 0 : index
    %c0_92 = arith.constant 0 : index
    %c256_93 = arith.constant 256 : index
    %159 = vector.load %arg7[%c0_91, %c0_92, %c256_93] : memref<2x128x384xf32, #tpu.memory_space<vmem>>, vector<1x128x128xf32>
    %160 = vector.shape_cast %159 : vector<1x128x128xf32> to vector<128x128xf32>
    %161 = vector.shape_cast %143 : vector<128x128xf32> to vector<1x128x128xf32>
    tpu.vector_store %arg7[%c0_91, %c0_92, %c256_93], %161 {strides = array<i32>} : memref<2x128x384xf32, #tpu.memory_space<vmem>>, vector<1x128x128xf32>,
    %162 = vector.extract_strided_slice %113 {offsets = [1, 0, 0], sizes = [1, 128, 32], strides = [1, 1, 1]} : vector<2x128x64xf32> to vector<1x128x32xf32>
    %163 = vector.shape_cast %162 : vector<1x128x32xf32> to vector<128x32xf32>
    %164 = vector.extract_strided_slice %113 {offsets = [1, 0, 32], sizes = [1, 128, 32], strides = [1, 1, 1]} : vector<2x128x64xf32> to vector<1x128x32xf32>
    %165 = vector.shape_cast %164 : vector<1x128x32xf32> to vector<128x32xf32>
    %cst_94 = arith.constant dense<0.000000e+00> : vector<128x128xf32>
    %166 = tpu.matmul %163, %165, %cst_94 {dimension_numbers = #tpu.dot_dimension_numbers<[1], [1], [0], [0], [0, 0, 1, 0], [], []>} : vector<128x32xf32>, vector<128x32xf32>, vector<128x128xf32> -> vector<128x128xf32>
    %cst_95 = arith.constant dense<0xFF800000> : vector<128xf32>
    %167 = vector.multi_reduction <maximumf>, %166, %cst_95 [1] : vector<128x128xf32> to vector<128xf32>
    %168 = vector.shape_cast %167 : vector<128xf32> to vector<128x1xf32>
    %169 = vector.broadcast %168 : vector<128x1xf32> to vector<128x128xf32>
    %170 = arith.subf %166, %169 : vector<128x128xf32>
    %171 = math.exp %170 : vector<128x128xf32>
    %172 = arith.mulf %108, %171 : vector<128x128xf32>
    %cst_96 = arith.constant dense<0.000000e+00> : vector<128xf32>
    %173 = vector.multi_reduction <add>, %172, %cst_96 [1] : vector<128x128xf32> to vector<128xf32>
    %174 = vector.shape_cast %173 : vector<128xf32> to vector<128x1xf32>
    %175 = tpu.reciprocal %174 {approx = true} : vector<128x1xf32> -> vector<128x1xf32>
    %176 = arith.mulf %174, %175 : vector<128x1xf32>
    %cst_97 = arith.constant 2.000000e+00 : f32
    %177 = vector.broadcast %cst_97 : f32 to vector<128x1xf32>
    %178 = arith.subf %177, %176 : vector<128x1xf32>
    %179 = arith.mulf %175, %178 : vector<128x1xf32>
    %180 = math.absf %179 : vector<128x1xf32>
    %cst_98 = arith.constant 0x7F800000 : f32
    %181 = vector.broadcast %cst_98 : f32 to vector<128x1xf32>
    %182 = arith.cmpf olt, %180, %181 : vector<128x1xf32>
    %cst_99 = arith.constant 0.000000e+00 : f32
    %183 = vector.broadcast %cst_99 : f32 to vector<128x1xf32>
    %184 = arith.select %182, %179, %183 : vector<128x1xi1>, vector<128x1xf32>
    %185 = vector.broadcast %184 : vector<128x1xf32> to vector<128x128xf32>
    %186 = arith.mulf %172, %185 : vector<128x128xf32>
    %cst_100 = arith.constant dense<0.000000e+00> : vector<128x128xf32>
    %187 = tpu.matmul %186, %186, %cst_100 {dimension_numbers = #tpu.dot_dimension_numbers<[1], [0], [0], [1], [0, 0, 1, 1], [], []>} : vector<128x128xf32>, vector<128x128xf32>, vector<128x128xf32> -> vector<128x128xf32>
    %cst_101 = arith.constant 0.000000e+00 : f32
    %188 = vector.broadcast %cst_101 : f32 to vector<128x128xf32>
    %189 = arith.select %3, %186, %188 : vector<128x128xi1>, vector<128x128xf32>
    %cst_102 = arith.constant 0.000000e+00 : f32
    %190 = vector.broadcast %cst_102 : f32 to vector<128x128xf32>
    %191 = arith.select %3, %187, %190 : vector<128x128xi1>, vector<128x128xf32>
    %c1_103 = arith.constant 1 : index
    %c0_104 = arith.constant 0 : index
    %c0_105 = arith.constant 0 : index
    %192 = vector.load %arg6[%c1_103, %c0_104, %c0_105] : memref<2x128x384xf32, #tpu.memory_space<vmem>>, vector<1x128x128xf32>
    %193 = vector.shape_cast %192 : vector<1x128x128xf32> to vector<128x128xf32>
    %194 = vector.shape_cast %189 : vector<128x128xf32> to vector<1x128x128xf32>
    tpu.vector_store %arg6[%c1_103, %c0_104, %c0_105], %194 {strides = array<i32>} : memref<2x128x384xf32, #tpu.memory_space<vmem>>, vector<1x128x128xf32>,
    %c1_106 = arith.constant 1 : index
    %c0_107 = arith.constant 0 : index
    %c0_108 = arith.constant 0 : index
    %195 = vector.load %arg7[%c1_106, %c0_107, %c0_108] : memref<2x128x384xf32, #tpu.memory_space<vmem>>, vector<1x128x128xf32>
    %196 = vector.shape_cast %195 : vector<1x128x128xf32> to vector<128x128xf32>
    %197 = vector.shape_cast %191 : vector<128x128xf32> to vector<1x128x128xf32>
    tpu.vector_store %arg7[%c1_106, %c0_107, %c0_108], %197 {strides = array<i32>} : memref<2x128x384xf32, #tpu.memory_space<vmem>>, vector<1x128x128xf32>,
    %c1_109 = arith.constant 1 : index
    %c0_110 = arith.constant 0 : index
    %c128_111 = arith.constant 128 : index
    %198 = vector.load %arg6[%c1_109, %c0_110, %c128_111] : memref<2x128x384xf32, #tpu.memory_space<vmem>>, vector<1x128x128xf32>
    %199 = vector.shape_cast %198 : vector<1x128x128xf32> to vector<128x128xf32>
    %200 = vector.shape_cast %189 : vector<128x128xf32> to vector<1x128x128xf32>
    tpu.vector_store %arg6[%c1_109, %c0_110, %c128_111], %200 {strides = array<i32>} : memref<2x128x384xf32, #tpu.memory_space<vmem>>, vector<1x128x128xf32>,
    %c1_112 = arith.constant 1 : index
    %c0_113 = arith.constant 0 : index
    %c128_114 = arith.constant 128 : index
    %201 = vector.load %arg7[%c1_112, %c0_113, %c128_114] : memref<2x128x384xf32, #tpu.memory_space<vmem>>, vector<1x128x128xf32>
    %202 = vector.shape_cast %201 : vector<1x128x128xf32> to vector<128x128xf32>
    %203 = vector.shape_cast %191 : vector<128x128xf32> to vector<1x128x128xf32>
    tpu.vector_store %arg7[%c1_112, %c0_113, %c128_114], %203 {strides = array<i32>} : memref<2x128x384xf32, #tpu.memory_space<vmem>>, vector<1x128x128xf32>,
    %c1_115 = arith.constant 1 : index
    %c0_116 = arith.constant 0 : index
    %c256_117 = arith.constant 256 : index
    %204 = vector.load %arg6[%c1_115, %c0_116, %c256_117] : memref<2x128x384xf32, #tpu.memory_space<vmem>>, vector<1x128x128xf32>
    %205 = vector.shape_cast %204 : vector<1x128x128xf32> to vector<128x128xf32>
    %206 = vector.shape_cast %189 : vector<128x128xf32> to vector<1x128x128xf32>
    tpu.vector_store %arg6[%c1_115, %c0_116, %c256_117], %206 {strides = array<i32>} : memref<2x128x384xf32, #tpu.memory_space<vmem>>, vector<1x128x128xf32>,
    %c1_118 = arith.constant 1 : index
    %c0_119 = arith.constant 0 : index
    %c256_120 = arith.constant 256 : index
    %207 = vector.load %arg7[%c1_118, %c0_119, %c256_120] : memref<2x128x384xf32, #tpu.memory_space<vmem>>, vector<1x128x128xf32>
    %208 = vector.shape_cast %207 : vector<1x128x128xf32> to vector<128x128xf32>
    %209 = vector.shape_cast %191 : vector<128x128xf32> to vector<1x128x128xf32>
    tpu.vector_store %arg7[%c1_118, %c0_119, %c256_120], %209 {strides = array<i32>} : memref<2x128x384xf32, #tpu.memory_space<vmem>>, vector<1x128x128xf32>,
    return
  }
  func.func @transform_0(%arg0: i32) -> (i32, i32, i32, i32) {
    %c0_i32 = arith.constant 0 : i32
    %c0_i32_0 = arith.constant 0 : i32
    %c0_i32_1 = arith.constant 0 : i32
    %c0_i32_2 = arith.constant 0 : i32
    return %c0_i32, %arg0, %c0_i32_0, %c0_i32_1 : i32, i32, i32, i32
  }
  func.func @transform_1(%arg0: i32) -> (i32, i32) {
    %c0_i32 = arith.constant 0 : i32
    %c0_i32_0 = arith.constant 0 : i32
    %c0_i32_1 = arith.constant 0 : i32
    return %c0_i32, %c0_i32_0 : i32, i32
  }
  func.func @transform_2(%arg0: i32) -> (i32, i32, i32) {
    %c0_i32 = arith.constant 0 : i32
    %c0_i32_0 = arith.constant 0 : i32
    %c0_i32_1 = arith.constant 0 : i32
    %c0_i32_2 = arith.constant 0 : i32
    return %c0_i32, %c0_i32_0, %c0_i32_1 : i32, i32, i32
  }
  func.func @transform_3(%arg0: i32) -> (i32, i32, i32) {
    %c0_i32 = arith.constant 0 : i32
    %c0_i32_0 = arith.constant 0 : i32
    %c0_i32_1 = arith.constant 0 : i32
    return %arg0, %c0_i32, %c0_i32_0 : i32, i32, i32
  }
  func.func @transform_4(%arg0: i32) -> (i32, i32, i32) {
    %c0_i32 = arith.constant 0 : i32
    %c0_i32_0 = arith.constant 0 : i32
    %c0_i32_1 = arith.constant 0 : i32
    return %arg0, %c0_i32, %c0_i32_0 : i32, i32, i32
  }
  func.func @transform_5(%arg0: i32) -> (i32, i32, i32) {
    %c0_i32 = arith.constant 0 : i32
    %c0_i32_0 = arith.constant 0 : i32
    %c0_i32_1 = arith.constant 0 : i32
    return %arg0, %c0_i32, %c0_i32_0 : i32, i32, i32
  }
  func.func @transform_6(%arg0: i32) -> (i32, i32, i32) {
    %c0_i32 = arith.constant 0 : i32
    %c0_i32_0 = arith.constant 0 : i32
    %c0_i32_1 = arith.constant 0 : i32
    return %arg0, %c0_i32, %c0_i32_0 : i32, i32, i32
  }
}

</mosaic_0001>

<llo_original>
// kernel: forward.1
$region0: #{forward.1}
  #allocation0 [shape = 'u32[]', space=smem, size = 0x4, offset = 0x4, fixed_abs, tag = 'smem constant byte address 0x4 - core index']
  #allocation1 [shape = 'u32[144,128]{1,0:T(1,128)}', space=vmem, size = 0x12000, scoped, tag = 'internal scratch']
  %s0 = inlined_call_operand.vmem [shape: f32[2,2,128,62], index: 0, kind: input, shape index: {}]
  %s1 = inlined_call_operand.vmem [shape: f32[62,64], index: 1, kind: input, shape index: {}]
  %s2 = inlined_call_operand.vmem [shape: f32[2,128,128], index: 2, kind: input, shape index: {}]
  %s3 = inlined_call_operand.hbm [shape: f32[2,128,384], index: 3, kind: output, shape index: {0}]
  %s4 = inlined_call_operand.hbm [shape: f32[2,128,384], index: 4, kind: output, shape index: {1}]
  %s5 = inlined_call_operand.hbm [shape: f32[2,128,384], index: 5, kind: output, shape index: {2}]
  %s6 = inlined_call_operand.hbm [shape: f32[2,128,384], index: 6, kind: output, shape index: {3}]
  %7 = xla_tuple %s3, %s4, %s5, %s6
  %s8 = sld [smem:[#allocation0]]
  $region46: #{forward.1} parent=0
    _
  %s10 = ssub.s32 1, %s8
  %s11 = scalar_select 0, %s10, %s8
  $region1: #{forward.1} parent=0
    #allocation2 [shape = 'u8[393216]{0}', space=vmem, size = 0x60000, scoped, tag = 'output window, operand 0, single buffered']
    #allocation3 [shape = 's32[1]{0}', space=sflag, size = 0x4, scoped, tag = 'scoped memory for forward.1']
    #allocation4 [shape = 'u8[393216]{0}', space=vmem, size = 0x60000, scoped, tag = 'output window, operand 1, single buffered']
    #allocation5 [shape = 's32[1]{0}', space=sflag, size = 0x4, scoped, tag = 'scoped memory for forward.1']
    #allocation6 [shape = 'u8[393216]{0}', space=vmem, size = 0x60000, scoped, tag = 'output window, operand 2, single buffered']
    #allocation7 [shape = 'u8[393216]{0}', space=vmem, size = 0x60000, scoped, tag = 'output window, operand 3, single buffered']
    #allocation8 [shape = 's32[1]{0}', space=sflag, size = 0x4, scoped, tag = 'scoped memory for forward.1']
    %12 = vsyncpa [#allocation3], 0
    %13 = vsyncpa [#allocation5], 0
    %14 = vsyncpa [#allocation8], 0
    // Predicated region
    $region2: #{forward.1} parent=1 // pred_check
      _
    $region3: #{forward.1} parent=1 // pred_check_branch
      %16 = sbr.rel (0) target = $region5
    $region4: #{forward.1} parent=1 // pred_region
      _
    $region5: #{forward.1} parent=1 // pred_fallthru
      _
    // Predicated region
    $region6: #{forward.1} parent=1 // pred_check
      _
    $region7: #{forward.1} parent=1 // pred_check_branch
      %18 = sbr.rel (0) target = $region9
    $region8: #{forward.1} parent=1 // pred_region
      _
    $region9: #{forward.1} parent=1 // pred_fallthru
      _
    // Predicated region
    $region10: #{forward.1} parent=1 // pred_check
      _
    $region11: #{forward.1} parent=1 // pred_check_branch
      %20 = sbr.rel (0) target = $region13
    $region12: #{forward.1} parent=1 // pred_region
      _
    $region13: #{forward.1} parent=1 // pred_fallthru
      _
    %v21 = vld [vmem:[%s1] sm:$0xff]
    %v22 = vld [vmem:[%s1 + $0x8] sm:$0xff]
    %v23 = vld [vmem:[%s1 + $0x10] sm:$0xff]
    %v24 = vld [vmem:[%s1 + $0x18] sm:$0xff]
    %v25 = vld [vmem:[%s1 + $0x20] sm:$0xff]
    %v26 = vld [vmem:[%s1 + $0x28] sm:$0xff]
    %v27 = vld [vmem:[%s1 + $0x30] sm:$0xff]
    %v28 = vld [vmem:[%s1 + $0x38] sm:$0x3f]
    %v29 = vlaneseq
    %v30 = vshrl.u32 %v29, 7
    %v31 = vadd.s32 %v30, 8
    %v32 = vadd.s32 %v30, 16
    %v33 = vadd.s32 %v30, 24
    %v34 = vadd.s32 %v30, 32
    %v35 = vadd.s32 %v30, 40
    %v36 = vadd.s32 %v30, 48
    %v37 = vadd.s32 %v30, 56
    %v38 = vadd.s32 %v30, 64
    %v39 = vadd.s32 %v30, 72
    %v40 = vadd.s32 %v30, 80
    %v41 = vadd.s32 %v30, 88
    %v42 = vadd.s32 %v30, 96
    %v43 = vadd.s32 %v30, 104
    %v44 = vadd.s32 %v30, 112
    %v45 = vadd.s32 %v30, 120
    %v46 = vlaneseq
    %v47 = vand.u32 %v46, 127
    %vm48 = vcmp.ne.s32.totalorder %v30, %v47
    %vm49 = vcmp.ne.s32.totalorder %v31, %v47
    %vm50 = vcmp.ne.s32.totalorder %v32, %v47
    %vm51 = vcmp.ne.s32.totalorder %v33, %v47
    %vm52 = vcmp.ne.s32.totalorder %v34, %v47
    %vm53 = vcmp.ne.s32.totalorder %v35, %v47
    %vm54 = vcmp.ne.s32.totalorder %v36, %v47
    %vm55 = vcmp.ne.s32.totalorder %v37, %v47
    %vm56 = vcmp.ne.s32.totalorder %v38, %v47
    %vm57 = vcmp.ne.s32.totalorder %v39, %v47
    %vm58 = vcmp.ne.s32.totalorder %v40, %v47
    %vm59 = vcmp.ne.s32.totalorder %v41, %v47
    %vm60 = vcmp.ne.s32.totalorder %v42, %v47
    %vm61 = vcmp.ne.s32.totalorder %v43, %v47
    %vm62 = vcmp.ne.s32.totalorder %v44, %v47
    %vm63 = vcmp.ne.s32.totalorder %v45, %v47
    %v64 = vld [vmem:[%s2] sm:$0xff]
    %v65 = vld [vmem:[%s2 + $0x8] sm:$0xff]
    %v66 = vld [vmem:[%s2 + $0x10] sm:$0xff]
    %v67 = vld [vmem:[%s2 + $0x18] sm:$0xff]
    %v68 = vld [vmem:[%s2 + $0x20] sm:$0xff]
    %v69 = vld [vmem:[%s2 + $0x28] sm:$0xff]
    %v70 = vld [vmem:[%s2 + $0x30] sm:$0xff]
    %v71 = vld [vmem:[%s2 + $0x38] sm:$0xff]
    %v72 = vld [vmem:[%s2 + $0x40] sm:$0xff]
    %v73 = vld [vmem:[%s2 + $0x48] sm:$0xff]
    %v74 = vld [vmem:[%s2 + $0x50] sm:$0xff]
    %v75 = vld [vmem:[%s2 + $0x58] sm:$0xff]
    %v76 = vld [vmem:[%s2 + $0x60] sm:$0xff]
    %v77 = vld [vmem:[%s2 + $0x68] sm:$0xff]
    %v78 = vld [vmem:[%s2 + $0x70] sm:$0xff]
    %v79 = vld [vmem:[%s2 + $0x78] sm:$0xff]
    %v80 = vld [vmem:[%s0] sm:$0xff]
    %v81 = vld [vmem:[%s0 + $0x8] sm:$0xff]
    %v82 = vld [vmem:[%s0 + $0x10] sm:$0xff]
    %v83 = vld [vmem:[%s0 + $0x18] sm:$0xff]
    %v84 = vld [vmem:[%s0 + $0x20] sm:$0xff]
    %v85 = vld [vmem:[%s0 + $0x28] sm:$0xff]
    %v86 = vld [vmem:[%s0 + $0x30] sm:$0xff]
    %v87 = vld [vmem:[%s0 + $0x38] sm:$0xff]
    %v88 = vld [vmem:[%s0 + $0x40] sm:$0xff]
    %v89 = vld [vmem:[%s0 + $0x48] sm:$0xff]
    %v90 = vld [vmem:[%s0 + $0x50] sm:$0xff]
    %v91 = vld [vmem:[%s0 + $0x58] sm:$0xff]
    %v92 = vld [vmem:[%s0 + $0x60] sm:$0xff]
    %v93 = vld [vmem:[%s0 + $0x68] sm:$0xff]
    %v94 = vld [vmem:[%s0 + $0x70] sm:$0xff]
    %v95 = vld [vmem:[%s0 + $0x78] sm:$0xff]
    %v96 = vld [vmem:[%s0 + $0x80] sm:$0xff]
    %v97 = vld [vmem:[%s0 + $0x88] sm:$0xff]
    %v98 = vld [vmem:[%s0 + $0x90] sm:$0xff]
    %v99 = vld [vmem:[%s0 + $0x98] sm:$0xff]
    %v100 = vld [vmem:[%s0 + $0xa0] sm:$0xff]
    %v101 = vld [vmem:[%s0 + $0xa8] sm:$0xff]
    %v102 = vld [vmem:[%s0 + $0xb0] sm:$0xff]
    %v103 = vld [vmem:[%s0 + $0xb8] sm:$0xff]
    %v104 = vld [vmem:[%s0 + $0xc0] sm:$0xff]
    %v105 = vld [vmem:[%s0 + $0xc8] sm:$0xff]
    %v106 = vld [vmem:[%s0 + $0xd0] sm:$0xff]
    %v107 = vld [vmem:[%s0 + $0xd8] sm:$0xff]
    %v108 = vld [vmem:[%s0 + $0xe0] sm:$0xff]
    %v109 = vld [vmem:[%s0 + $0xe8] sm:$0xff]
    %v110 = vld [vmem:[%s0 + $0xf0] sm:$0xff]
    %v111 = vld [vmem:[%s0 + $0xf8] sm:$0xff]
    %vm112 = vcmask 506880
    %v114 = vsel %vm112, %v80, 0
    %v117 = vsel %vm112, %v81, 0
    %v120 = vsel %vm112, %v82, 0
    %v123 = vsel %vm112, %v83, 0
    %v126 = vsel %vm112, %v84, 0
    %v129 = vsel %vm112, %v85, 0
    %v132 = vsel %vm112, %v86, 0
    %v135 = vsel %vm112, %v87, 0
    %v138 = vsel %vm112, %v88, 0
    %v141 = vsel %vm112, %v89, 0
    %v144 = vsel %vm112, %v90, 0
    %v147 = vsel %vm112, %v91, 0
    %v150 = vsel %vm112, %v92, 0
    %v153 = vsel %vm112, %v93, 0
    %v156 = vsel %vm112, %v94, 0
    %v159 = vsel %vm112, %v95, 0
    %v162 = vsel %vm112, %v96, 0
    %v165 = vsel %vm112, %v97, 0
    %v168 = vsel %vm112, %v98, 0
    %v171 = vsel %vm112, %v99, 0
    %v174 = vsel %vm112, %v100, 0
    %v177 = vsel %vm112, %v101, 0
    %v180 = vsel %vm112, %v102, 0
    %v183 = vsel %vm112, %v103, 0
    %v186 = vsel %vm112, %v104, 0
    %v189 = vsel %vm112, %v105, 0
    %v192 = vsel %vm112, %v106, 0
    %v195 = vsel %vm112, %v107, 0
    %v198 = vsel %vm112, %v108, 0
    %v201 = vsel %vm112, %v109, 0
    %v204 = vsel %vm112, %v110, 0
    %v207 = vsel %vm112, %v111, 0
    %vm209 = vcmask 1045504
    %v211 = vsel %vm209, %v28, 0
    %213 = vmatprep.subr.mxu0 0.0
    %214 = vmatpush1.msra.mxu0 %v21
    %215 = vmatprep.subr.mxu0 0.0
    %216 = vmatpush1.msra.mxu0 %v22
    %217 = vmatprep.subr.mxu0 0.0
    %218 = vmatpush1.msra.mxu0 %v23
    %219 = vmatprep.subr.mxu0 0.0
    %220 = vmatpush1.msra.mxu0 %v24
    %221 = vmatprep.subr.mxu0 0.0
    %222 = vmatpush1.msra.mxu0 %v25
    %223 = vmatprep.subr.mxu0 0.0
    %224 = vmatpush1.msra.mxu0 %v26
    %225 = vmatprep.subr.mxu0 0.0
    %226 = vmatpush1.msra.mxu0 %v27
    %227 = vmatprep.subr.mxu0 0.0
    %228 = vmatpush1.msra.mxu0 %v211
    %229 = vmatprep.subr.mxu0 0.0
    %230 = vmatpush1.msra.mxu0 0.0
    %231 = vmatprep.subr.mxu0 0.0
    %232 = vmatpush1.msra.mxu0 0.0
    %233 = vmatprep.subr.mxu0 0.0
    %234 = vmatpush1.msra.mxu0 0.0
    %235 = vmatprep.subr.mxu0 0.0
    %236 = vmatpush1.msra.mxu0 0.0
    %237 = vmatprep.subr.mxu0 0.0
    %238 = vmatpush1.msra.mxu0 0.0
    %239 = vmatprep.subr.mxu0 0.0
    %240 = vmatpush1.msra.mxu0 0.0
    %241 = vmatprep.subr.mxu0 0.0
    %242 = vmatpush1.msra.mxu0 0.0
    %243 = vmatprep.subr.mxu0 0.0
    %244 = vmatpush1.msra.mxu0 0.0
    %245 = vmatprep.subr.mxu0 0.0
    %246 = vmatpush1.msra.mxu0 0.0
    %247 = vmatprep.subr.mxu0 0.0
    %248 = vmatpush1.msra.mxu0 0.0
    %249 = vmatprep.subr.mxu0 0.0
    %250 = vmatpush1.msra.mxu0 0.0
    %251 = vmatprep.subr.mxu0 0.0
    %252 = vmatpush1.msra.mxu0 0.0
    %253 = vmatprep.subr.mxu0 0.0
    %254 = vmatpush1.msra.mxu0 0.0
    %255 = vmatprep.subr.mxu0 0.0
    %256 = vmatpush1.msra.mxu0 0.0
    %257 = vmatprep.subr.mxu0 0.0
    %258 = vmatpush1.msra.mxu0 0.0
    %259 = vmatprep.subr.mxu0 0.0
    %260 = vmatpush1.msra.mxu0 0.0
    %261 = vmatprep.subr.mxu0 0.0
    %262 = vmatpush1.msra.mxu0 0.0
    %263 = vmatprep.subr.mxu0 0.0
    %264 = vmatpush1.msra.mxu0 0.0
    %265 = vmatprep.subr.mxu0 0.0
    %266 = vmatpush1.msra.mxu0 0.0
    %267 = vmatprep.subr.mxu0 0.0
    %268 = vmatpush1.msra.mxu0 0.0
    %269 = vmatprep.subr.mxu0 0.0
    %270 = vmatpush1.msra.mxu0 0.0
    %271 = vmatprep.subr.mxu0 0.0
    %272 = vmatpush1.msra.mxu0 0.0
    %273 = vmatprep.subr.mxu0 0.0
    %274 = vmatpush1.msra.mxu0 0.0
    %275 = vmatprep.subr.mxu0 0.0
    %276 = vmatpush1.msra.mxu0 0.0
    %277 = vmatprep.mubr.f32.mxu0 0.0
    %278 = vmatmul.mubr.f32.gmra.mrb[0].mxu0 %v114
    %v279 = vpop.f32.mrb[0].mxu0
    %v280 = vadd.f32 0.0, %v279
    %v281 = vpop.f32.mrb[0].mxu0
    %282 = vmatprep.mubr.f32.mxu0 0.0
    %283 = vmatmul.mubr.f32.gmra.mrb[0].mxu0 %v117
    %v284 = vpop.f32.mrb[0].mxu0
    %v285 = vadd.f32 0.0, %v284
    %v286 = vpop.f32.mrb[0].mxu0
    %287 = vmatprep.mubr.f32.mxu0 0.0
    %288 = vmatmul.mubr.f32.gmra.mrb[0].mxu0 %v120
    %v289 = vpop.f32.mrb[0].mxu0
    %v290 = vadd.f32 0.0, %v289
    %v291 = vpop.f32.mrb[0].mxu0
    %292 = vmatprep.mubr.f32.mxu0 0.0
    %293 = vmatmul.mubr.f32.gmra.mrb[0].mxu0 %v123
    %v294 = vpop.f32.mrb[0].mxu0
    %v295 = vadd.f32 0.0, %v294
    %v296 = vpop.f32.mrb[0].mxu0
    %297 = vmatprep.mubr.f32.mxu0 0.0
    %298 = vmatmul.mubr.f32.gmra.mrb[0].mxu0 %v126
    %v299 = vpop.f32.mrb[0].mxu0
    %v300 = vadd.f32 0.0, %v299
    %v301 = vpop.f32.mrb[0].mxu0
    %302 = vmatprep.mubr.f32.mxu0 0.0
    %303 = vmatmul.mubr.f32.gmra.mrb[0].mxu0 %v129
    %v304 = vpop.f32.mrb[0].mxu0
    %v305 = vadd.f32 0.0, %v304
    %v306 = vpop.f32.mrb[0].mxu0
    %307 = vmatprep.mubr.f32.mxu0 0.0
    %308 = vmatmul.mubr.f32.gmra.mrb[0].mxu0 %v132
    %v309 = vpop.f32.mrb[0].mxu0
    %v310 = vadd.f32 0.0, %v309
    %v311 = vpop.f32.mrb[0].mxu0
    %312 = vmatprep.mubr.f32.mxu0 0.0
    %313 = vmatmul.mubr.f32.gmra.mrb[0].mxu0 %v135
    %v314 = vpop.f32.mrb[0].mxu0
    %v315 = vadd.f32 0.0, %v314
    %v316 = vpop.f32.mrb[0].mxu0
    %317 = vmatprep.mubr.f32.mxu0 0.0
    %318 = vmatmul.mubr.f32.gmra.mrb[0].mxu0 %v138
    %v319 = vpop.f32.mrb[0].mxu0
    %v320 = vadd.f32 0.0, %v319
    %v321 = vpop.f32.mrb[0].mxu0
    %322 = vmatprep.mubr.f32.mxu0 0.0
    %323 = vmatmul.mubr.f32.gmra.mrb[0].mxu0 %v141
    %v324 = vpop.f32.mrb[0].mxu0
    %v325 = vadd.f32 0.0, %v324
    %v326 = vpop.f32.mrb[0].mxu0
    %327 = vmatprep.mubr.f32.mxu0 0.0
    %328 = vmatmul.mubr.f32.gmra.mrb[0].mxu0 %v144
    %v329 = vpop.f32.mrb[0].mxu0
    %v330 = vadd.f32 0.0, %v329
    %v331 = vpop.f32.mrb[0].mxu0
    %332 = vmatprep.mubr.f32.mxu0 0.0
    %333 = vmatmul.mubr.f32.gmra.mrb[0].mxu0 %v147
    %v334 = vpop.f32.mrb[0].mxu0
    %v335 = vadd.f32 0.0, %v334
    %v336 = vpop.f32.mrb[0].mxu0
    %337 = vmatprep.mubr.f32.mxu0 0.0
    %338 = vmatmul.mubr.f32.gmra.mrb[0].mxu0 %v150
    %v339 = vpop.f32.mrb[0].mxu0
    %v340 = vadd.f32 0.0, %v339
    %v341 = vpop.f32.mrb[0].mxu0
    %342 = vmatprep.mubr.f32.mxu0 0.0
    %343 = vmatmul.mubr.f32.gmra.mrb[0].mxu0 %v153
    %v344 = vpop.f32.mrb[0].mxu0
    %v345 = vadd.f32 0.0, %v344
    %v346 = vpop.f32.mrb[0].mxu0
    %347 = vmatprep.mubr.f32.mxu0 0.0
    %348 = vmatmul.mubr.f32.gmra.mrb[0].mxu0 %v156
    %v349 = vpop.f32.mrb[0].mxu0
    %v350 = vadd.f32 0.0, %v349
    %v351 = vpop.f32.mrb[0].mxu0
    %352 = vmatprep.mubr.f32.mxu0 0.0
    %353 = vmatmul.mubr.f32.gmra.mrb[0].mxu0 %v159
    %v354 = vpop.f32.mrb[0].mxu0
    %v355 = vadd.f32 0.0, %v354
    %v356 = vpop.f32.mrb[0].mxu0
    %357 = vmatprep.mubr.f32.mxu0 0.0
    %358 = vmatmul.mubr.f32.gmra.mrb[0].mxu0 %v162
    %v359 = vpop.f32.mrb[0].mxu0
    %v360 = vadd.f32 0.0, %v359
    %v361 = vpop.f32.mrb[0].mxu0
    %362 = vmatprep.mubr.f32.mxu0 0.0
    %363 = vmatmul.mubr.f32.gmra.mrb[0].mxu0 %v165
    %v364 = vpop.f32.mrb[0].mxu0
    %v365 = vadd.f32 0.0, %v364
    %v366 = vpop.f32.mrb[0].mxu0
    %367 = vmatprep.mubr.f32.mxu0 0.0
    %368 = vmatmul.mubr.f32.gmra.mrb[0].mxu0 %v168
    %v369 = vpop.f32.mrb[0].mxu0
    %v370 = vadd.f32 0.0, %v369
    %v371 = vpop.f32.mrb[0].mxu0
    %372 = vmatprep.mubr.f32.mxu0 0.0
    %373 = vmatmul.mubr.f32.gmra.mrb[0].mxu0 %v171
    %v374 = vpop.f32.mrb[0].mxu0
    %v375 = vadd.f32 0.0, %v374
    %v376 = vpop.f32.mrb[0].mxu0
    %377 = vmatprep.mubr.f32.mxu0 0.0
    %378 = vmatmul.mubr.f32.gmra.mrb[0].mxu0 %v174
    %v379 = vpop.f32.mrb[0].mxu0
    %v380 = vadd.f32 0.0, %v379
    %v381 = vpop.f32.mrb[0].mxu0
    %382 = vmatprep.mubr.f32.mxu0 0.0
    %383 = vmatmul.mubr.f32.gmra.mrb[0].mxu0 %v177
    %v384 = vpop.f32.mrb[0].mxu0
    %v385 = vadd.f32 0.0, %v384
    %v386 = vpop.f32.mrb[0].mxu0
    %387 = vmatprep.mubr.f32.mxu0 0.0
    %388 = vmatmul.mubr.f32.gmra.mrb[0].mxu0 %v180
    %v389 = vpop.f32.mrb[0].mxu0
    %v390 = vadd.f32 0.0, %v389
    %v391 = vpop.f32.mrb[0].mxu0
    %392 = vmatprep.mubr.f32.mxu0 0.0
    %393 = vmatmul.mubr.f32.gmra.mrb[0].mxu0 %v183
    %v394 = vpop.f32.mrb[0].mxu0
    %v395 = vadd.f32 0.0, %v394
    %v396 = vpop.f32.mrb[0].mxu0
    %397 = vmatprep.mubr.f32.mxu0 0.0
    %398 = vmatmul.mubr.f32.gmra.mrb[0].mxu0 %v186
    %v399 = vpop.f32.mrb[0].mxu0
    %v400 = vadd.f32 0.0, %v399
    %v401 = vpop.f32.mrb[0].mxu0
    %402 = vmatprep.mubr.f32.mxu0 0.0
    %403 = vmatmul.mubr.f32.gmra.mrb[0].mxu0 %v189
    %v404 = vpop.f32.mrb[0].mxu0
    %v405 = vadd.f32 0.0, %v404
    %v406 = vpop.f32.mrb[0].mxu0
    %407 = vmatprep.mubr.f32.mxu0 0.0
    %408 = vmatmul.mubr.f32.gmra.mrb[0].mxu0 %v192
    %v409 = vpop.f32.mrb[0].mxu0
    %v410 = vadd.f32 0.0, %v409
    %v411 = vpop.f32.mrb[0].mxu0
    %412 = vmatprep.mubr.f32.mxu0 0.0
    %413 = vmatmul.mubr.f32.gmra.mrb[0].mxu0 %v195
    %v414 = vpop.f32.mrb[0].mxu0
    %v415 = vadd.f32 0.0, %v414
    %v416 = vpop.f32.mrb[0].mxu0
    %417 = vmatprep.mubr.f32.mxu0 0.0
    %418 = vmatmul.mubr.f32.gmra.mrb[0].mxu0 %v198
    %v419 = vpop.f32.mrb[0].mxu0
    %v420 = vadd.f32 0.0, %v419
    %v421 = vpop.f32.mrb[0].mxu0
    %422 = vmatprep.mubr.f32.mxu0 0.0
    %423 = vmatmul.mubr.f32.gmra.mrb[0].mxu0 %v201
    %v424 = vpop.f32.mrb[0].mxu0
    %v425 = vadd.f32 0.0, %v424
    %v426 = vpop.f32.mrb[0].mxu0
    %427 = vmatprep.mubr.f32.mxu0 0.0
    %428 = vmatmul.mubr.f32.gmra.mrb[0].mxu0 %v204
    %v429 = vpop.f32.mrb[0].mxu0
    %v430 = vadd.f32 0.0, %v429
    %v431 = vpop.f32.mrb[0].mxu0
    %432 = vmatprep.mubr.f32.mxu0 0.0
    %433 = vmatmul.mubr.f32.gmra.mrb[0].mxu0 %v207
    %v434 = vpop.f32.mrb[0].mxu0
    %v435 = vadd.f32 0.0, %v434
    %v436 = vpop.f32.mrb[0].mxu0
    %437 = vdwg.mxu0
    %454 = vrot.lane.b32.xlu0 %v280, 96
    %v455 = vpop.permute.xlu0 %454
    %456 = vrot.lane.b32.xlu0 %v285, 96
    %v457 = vpop.permute.xlu0 %456
    %458 = vrot.lane.b32.xlu0 %v290, 96
    %v459 = vpop.permute.xlu0 %458
    %460 = vrot.lane.b32.xlu0 %v295, 96
    %v461 = vpop.permute.xlu0 %460
    %462 = vrot.lane.b32.xlu0 %v300, 96
    %v463 = vpop.permute.xlu0 %462
    %464 = vrot.lane.b32.xlu0 %v305, 96
    %v465 = vpop.permute.xlu0 %464
    %466 = vrot.lane.b32.xlu0 %v310, 96
    %v467 = vpop.permute.xlu0 %466
    %468 = vrot.lane.b32.xlu0 %v315, 96
    %v469 = vpop.permute.xlu0 %468
    %470 = vrot.lane.b32.xlu0 %v320, 96
    %v471 = vpop.permute.xlu0 %470
    %472 = vrot.lane.b32.xlu0 %v325, 96
    %v473 = vpop.permute.xlu0 %472
    %474 = vrot.lane.b32.xlu0 %v330, 96
    %v475 = vpop.permute.xlu0 %474
    %476 = vrot.lane.b32.xlu0 %v335, 96
    %v477 = vpop.permute.xlu0 %476
    %478 = vrot.lane.b32.xlu0 %v340, 96
    %v479 = vpop.permute.xlu0 %478
    %480 = vrot.lane.b32.xlu0 %v345, 96
    %v481 = vpop.permute.xlu0 %480
    %482 = vrot.lane.b32.xlu0 %v350, 96
    %v483 = vpop.permute.xlu0 %482
    %484 = vrot.lane.b32.xlu0 %v355, 96
    %v485 = vpop.permute.xlu0 %484
    %vm486 = vcmask 261120
    %v487 = vsel %vm486, %v280, 0
    %v489 = vsel %vm486, %v285, 0
    %v491 = vsel %vm486, %v290, 0
    %v493 = vsel %vm486, %v295, 0
    %v495 = vsel %vm486, %v300, 0
    %v497 = vsel %vm486, %v305, 0
    %v499 = vsel %vm486, %v310, 0
    %v501 = vsel %vm486, %v315, 0
    %v503 = vsel %vm486, %v320, 0
    %v505 = vsel %vm486, %v325, 0
    %v507 = vsel %vm486, %v330, 0
    %v509 = vsel %vm486, %v335, 0
    %v511 = vsel %vm486, %v340, 0
    %v513 = vsel %vm486, %v345, 0
    %v515 = vsel %vm486, %v350, 0
    %v517 = vsel %vm486, %v355, 0
    %v519 = vsel %vm486, %v455, 0
    %v521 = vsel %vm486, %v457, 0
    %v523 = vsel %vm486, %v459, 0
    %v525 = vsel %vm486, %v461, 0
    %v527 = vsel %vm486, %v463, 0
    %v529 = vsel %vm486, %v465, 0
    %v531 = vsel %vm486, %v467, 0
    %v533 = vsel %vm486, %v469, 0
    %v535 = vsel %vm486, %v471, 0
    %v537 = vsel %vm486, %v473, 0
    %v539 = vsel %vm486, %v475, 0
    %v541 = vsel %vm486, %v477, 0
    %v543 = vsel %vm486, %v479, 0
    %v545 = vsel %vm486, %v481, 0
    %v547 = vsel %vm486, %v483, 0
    %v549 = vsel %vm486, %v485, 0
    %551 = vmatprep.subr.mxu0 0.0
    %552 = vmatpush1.xpose.msra.mxu0 %v519
    %553 = vmatprep.subr.mxu0 0.0
    %554 = vmatpush1.xpose.msra.mxu0 %v521
    %555 = vmatprep.subr.mxu0 0.0
    %556 = vmatpush1.xpose.msra.mxu0 %v523
    %557 = vmatprep.subr.mxu0 0.0
    %558 = vmatpush1.xpose.msra.mxu0 %v525
    %559 = vmatprep.subr.mxu0 0.0
    %560 = vmatpush1.xpose.msra.mxu0 %v527
    %561 = vmatprep.subr.mxu0 0.0
    %562 = vmatpush1.xpose.msra.mxu0 %v529
    %563 = vmatprep.subr.mxu0 0.0
    %564 = vmatpush1.xpose.msra.mxu0 %v531
    %565 = vmatprep.subr.mxu0 0.0
    %566 = vmatpush1.xpose.msra.mxu0 %v533
    %567 = vmatprep.subr.mxu0 0.0
    %568 = vmatpush1.xpose.msra.mxu0 %v535
    %569 = vmatprep.subr.mxu0 0.0
    %570 = vmatpush1.xpose.msra.mxu0 %v537
    %571 = vmatprep.subr.mxu0 0.0
    %572 = vmatpush1.xpose.msra.mxu0 %v539
    %573 = vmatprep.subr.mxu0 0.0
    %574 = vmatpush1.xpose.msra.mxu0 %v541
    %575 = vmatprep.subr.mxu0 0.0
    %576 = vmatpush1.xpose.msra.mxu0 %v543
    %577 = vmatprep.subr.mxu0 0.0
    %578 = vmatpush1.xpose.msra.mxu0 %v545
    %579 = vmatprep.subr.mxu0 0.0
    %580 = vmatpush1.xpose.msra.mxu0 %v547
    %581 = vmatprep.subr.mxu0 0.0
    %582 = vmatpush1.xpose.msra.mxu0 %v549
    %583 = vmatprep.subr.mxu0 0.0
    %584 = vmatpush1.xpose.msra.mxu0 0.0
    %585 = vmatprep.subr.mxu0 0.0
    %586 = vmatpush1.xpose.msra.mxu0 0.0
    %587 = vmatprep.subr.mxu0 0.0
    %588 = vmatpush1.xpose.msra.mxu0 0.0
    %589 = vmatprep.subr.mxu0 0.0
    %590 = vmatpush1.xpose.msra.mxu0 0.0
    %591 = vmatprep.subr.mxu0 0.0
    %592 = vmatpush1.xpose.msra.mxu0 0.0
    %593 = vmatprep.subr.mxu0 0.0
    %594 = vmatpush1.xpose.msra.mxu0 0.0
    %595 = vmatprep.subr.mxu0 0.0
    %596 = vmatpush1.xpose.msra.mxu0 0.0
    %597 = vmatprep.subr.mxu0 0.0
    %598 = vmatpush1.xpose.msra.mxu0 0.0
    %599 = vmatprep.subr.mxu0 0.0
    %600 = vmatpush1.xpose.msra.mxu0 0.0
    %601 = vmatprep.subr.mxu0 0.0
    %602 = vmatpush1.xpose.msra.mxu0 0.0
    %603 = vmatprep.subr.mxu0 0.0
    %604 = vmatpush1.xpose.msra.mxu0 0.0
    %605 = vmatprep.subr.mxu0 0.0
    %606 = vmatpush1.xpose.msra.mxu0 0.0
    %607 = vmatprep.subr.mxu0 0.0
    %608 = vmatpush1.xpose.msra.mxu0 0.0
    %609 = vmatprep.subr.mxu0 0.0
    %610 = vmatpush1.xpose.msra.mxu0 0.0
    %611 = vmatprep.subr.mxu0 0.0
    %612 = vmatpush1.xpose.msra.mxu0 0.0
    %613 = vmatprep.subr.mxu0 0.0
    %614 = vmatpush1.xpose.msra.mxu0 0.0
    %615 = vmatprep.mubr.f32.mxu0 0.0
    %616 = vmatmul.mubr.f32.gmra.mrb[0].mxu0 %v487
    %v617 = vpop.f32.mrb[0].mxu0
    %v618 = vadd.f32 0.0, %v617
    %v619 = vpop.f32.mrb[0].mxu0
    %620 = vmatprep.mubr.f32.mxu0 0.0
    %621 = vmatmul.mubr.f32.gmra.mrb[0].mxu0 %v489
    %v622 = vpop.f32.mrb[0].mxu0
    %v623 = vadd.f32 0.0, %v622
    %v624 = vpop.f32.mrb[0].mxu0
    %625 = vmatprep.mubr.f32.mxu0 0.0
    %626 = vmatmul.mubr.f32.gmra.mrb[0].mxu0 %v491
    %v627 = vpop.f32.mrb[0].mxu0
    %v628 = vadd.f32 0.0, %v627
    %v629 = vpop.f32.mrb[0].mxu0
    %630 = vmatprep.mubr.f32.mxu0 0.0
    %631 = vmatmul.mubr.f32.gmra.mrb[0].mxu0 %v493
    %v632 = vpop.f32.mrb[0].mxu0
    %v633 = vadd.f32 0.0, %v632
    %v634 = vpop.f32.mrb[0].mxu0
    %635 = vmatprep.mubr.f32.mxu0 0.0
    %636 = vmatmul.mubr.f32.gmra.mrb[0].mxu0 %v495
    %v637 = vpop.f32.mrb[0].mxu0
    %v638 = vadd.f32 0.0, %v637
    %v639 = vpop.f32.mrb[0].mxu0
    %640 = vmatprep.mubr.f32.mxu0 0.0
    %641 = vmatmul.mubr.f32.gmra.mrb[0].mxu0 %v497
    %v642 = vpop.f32.mrb[0].mxu0
    %v643 = vadd.f32 0.0, %v642
    %v644 = vpop.f32.mrb[0].mxu0
    %645 = vmatprep.mubr.f32.mxu0 0.0
    %646 = vmatmul.mubr.f32.gmra.mrb[0].mxu0 %v499
    %v647 = vpop.f32.mrb[0].mxu0
    %v648 = vadd.f32 0.0, %v647
    %v649 = vpop.f32.mrb[0].mxu0
    %650 = vmatprep.mubr.f32.mxu0 0.0
    %651 = vmatmul.mubr.f32.gmra.mrb[0].mxu0 %v501
    %v652 = vpop.f32.mrb[0].mxu0
    %v653 = vadd.f32 0.0, %v652
    %v654 = vpop.f32.mrb[0].mxu0
    %655 = vmatprep.mubr.f32.mxu0 0.0
    %656 = vmatmul.mubr.f32.gmra.mrb[0].mxu0 %v503
    %v657 = vpop.f32.mrb[0].mxu0
    %v658 = vadd.f32 0.0, %v657
    %v659 = vpop.f32.mrb[0].mxu0
    %660 = vmatprep.mubr.f32.mxu0 0.0
    %661 = vmatmul.mubr.f32.gmra.mrb[0].mxu0 %v505
    %v662 = vpop.f32.mrb[0].mxu0
    %v663 = vadd.f32 0.0, %v662
    %v664 = vpop.f32.mrb[0].mxu0
    %665 = vmatprep.mubr.f32.mxu0 0.0
    %666 = vmatmul.mubr.f32.gmra.mrb[0].mxu0 %v507
    %v667 = vpop.f32.mrb[0].mxu0
    %v668 = vadd.f32 0.0, %v667
    %v669 = vpop.f32.mrb[0].mxu0
    %670 = vmatprep.mubr.f32.mxu0 0.0
    %671 = vmatmul.mubr.f32.gmra.mrb[0].mxu0 %v509
    %v672 = vpop.f32.mrb[0].mxu0
    %v673 = vadd.f32 0.0, %v672
    %v674 = vpop.f32.mrb[0].mxu0
    %675 = vmatprep.mubr.f32.mxu0 0.0
    %676 = vmatmul.mubr.f32.gmra.mrb[0].mxu0 %v511
    %v677 = vpop.f32.mrb[0].mxu0
    %v678 = vadd.f32 0.0, %v677
    %v679 = vpop.f32.mrb[0].mxu0
    %680 = vmatprep.mubr.f32.mxu0 0.0
    %681 = vmatmul.mubr.f32.gmra.mrb[0].mxu0 %v513
    %v682 = vpop.f32.mrb[0].mxu0
    %v683 = vadd.f32 0.0, %v682
    %v684 = vpop.f32.mrb[0].mxu0
    %685 = vmatprep.mubr.f32.mxu0 0.0
    %686 = vmatmul.mubr.f32.gmra.mrb[0].mxu0 %v515
    %v687 = vpop.f32.mrb[0].mxu0
    %v688 = vadd.f32 0.0, %v687
    %v689 = vpop.f32.mrb[0].mxu0
    %690 = vmatprep.mubr.f32.mxu0 0.0
    %691 = vmatmul.mubr.f32.gmra.mrb[0].mxu0 %v517
    %v692 = vpop.f32.mrb[0].mxu0
    %v693 = vadd.f32 0.0, %v692
    %v694 = vpop.f32.mrb[0].mxu0
    %695 = vdwg.mxu0
    %696 = vmax.xlane.f32.xlu0 %v618
    %v697 = vpop.xlane.xlu0 %696
    %698 = vmax.xlane.f32.xlu0 %v623
    %v699 = vpop.xlane.xlu0 %698
    %700 = vmax.xlane.f32.xlu0 %v628
    %v701 = vpop.xlane.xlu0 %700
    %702 = vmax.xlane.f32.xlu0 %v633
    %v703 = vpop.xlane.xlu0 %702
    %704 = vmax.xlane.f32.xlu0 %v638
    %v705 = vpop.xlane.xlu0 %704
    %706 = vmax.xlane.f32.xlu0 %v643
    %v707 = vpop.xlane.xlu0 %706
    %708 = vmax.xlane.f32.xlu0 %v648
    %v709 = vpop.xlane.xlu0 %708
    %710 = vmax.xlane.f32.xlu0 %v653
    %v711 = vpop.xlane.xlu0 %710
    %712 = vmax.xlane.f32.xlu0 %v658
    %v713 = vpop.xlane.xlu0 %712
    %714 = vmax.xlane.f32.xlu0 %v663
    %v715 = vpop.xlane.xlu0 %714
    %716 = vmax.xlane.f32.xlu0 %v668
    %v717 = vpop.xlane.xlu0 %716
    %718 = vmax.xlane.f32.xlu0 %v673
    %v719 = vpop.xlane.xlu0 %718
    %720 = vmax.xlane.f32.xlu0 %v678
    %v721 = vpop.xlane.xlu0 %720
    %722 = vmax.xlane.f32.xlu0 %v683
    %v723 = vpop.xlane.xlu0 %722
    %724 = vmax.xlane.f32.xlu0 %v688
    %v725 = vpop.xlane.xlu0 %724
    %726 = vmax.xlane.f32.xlu0 %v693
    %v727 = vpop.xlane.xlu0 %726
    %v728 = vsub.f32 %v618, %v697
    %v729 = vsub.f32 %v623, %v699
    %v730 = vsub.f32 %v628, %v701
    %v731 = vsub.f32 %v633, %v703
    %v732 = vsub.f32 %v638, %v705
    %v733 = vsub.f32 %v643, %v707
    %v734 = vsub.f32 %v648, %v709
    %v735 = vsub.f32 %v653, %v711
    %v736 = vsub.f32 %v658, %v713
    %v737 = vsub.f32 %v663, %v715
    %v738 = vsub.f32 %v668, %v717
    %v739 = vsub.f32 %v673, %v719
    %v740 = vsub.f32 %v678, %v721
    %v741 = vsub.f32 %v683, %v723
    %v742 = vsub.f32 %v688, %v725
    %v743 = vsub.f32 %v693, %v727
    %v744 = vmul.f32 %v728, 1.442695
    %v745 = vpow.pop %v744
    %v746 = vmul.f32 %v729, 1.442695
    %v747 = vpow.pop %v746
    %v748 = vmul.f32 %v730, 1.442695
    %v749 = vpow.pop %v748
    %v750 = vmul.f32 %v731, 1.442695
    %v751 = vpow.pop %v750
    %v752 = vmul.f32 %v732, 1.442695
    %v753 = vpow.pop %v752
    %v754 = vmul.f32 %v733, 1.442695
    %v755 = vpow.pop %v754
    %v756 = vmul.f32 %v734, 1.442695
    %v757 = vpow.pop %v756
    %v758 = vmul.f32 %v735, 1.442695
    %v759 = vpow.pop %v758
    %v760 = vmul.f32 %v736, 1.442695
    %v761 = vpow.pop %v760
    %v762 = vmul.f32 %v737, 1.442695
    %v763 = vpow.pop %v762
    %v764 = vmul.f32 %v738, 1.442695
    %v765 = vpow.pop %v764
    %v766 = vmul.f32 %v739, 1.442695
    %v767 = vpow.pop %v766
    %v768 = vmul.f32 %v740, 1.442695
    %v769 = vpow.pop %v768
    %v770 = vmul.f32 %v741, 1.442695
    %v771 = vpow.pop %v770
    %v772 = vmul.f32 %v742, 1.442695
    %v773 = vpow.pop %v772
    %v774 = vmul.f32 %v743, 1.442695
    %v775 = vpow.pop %v774
    %v776 = vmul.f32 %v64, %v745
    %v777 = vmul.f32 %v65, %v747
    %v778 = vmul.f32 %v66, %v749
    %v779 = vmul.f32 %v67, %v751
    %v780 = vmul.f32 %v68, %v753
    %v781 = vmul.f32 %v69, %v755
    %v782 = vmul.f32 %v70, %v757
    %v783 = vmul.f32 %v71, %v759
    %v784 = vmul.f32 %v72, %v761
    %v785 = vmul.f32 %v73, %v763
    %v786 = vmul.f32 %v74, %v765
    %v787 = vmul.f32 %v75, %v767
    %v788 = vmul.f32 %v76, %v769
    %v789 = vmul.f32 %v77, %v771
    %v790 = vmul.f32 %v78, %v773
    %v791 = vmul.f32 %v79, %v775
    %792 = vadd.xlane.f32.xlu0 %v776
    %v793 = vpop.xlane.xlu0 %792
    %794 = vadd.xlane.f32.xlu0 %v777
    %v795 = vpop.xlane.xlu0 %794
    %796 = vadd.xlane.f32.xlu0 %v778
    %v797 = vpop.xlane.xlu0 %796
    %798 = vadd.xlane.f32.xlu0 %v779
    %v799 = vpop.xlane.xlu0 %798
    %800 = vadd.xlane.f32.xlu0 %v780
    %v801 = vpop.xlane.xlu0 %800
    %802 = vadd.xlane.f32.xlu0 %v781
    %v803 = vpop.xlane.xlu0 %802
    %804 = vadd.xlane.f32.xlu0 %v782
    %v805 = vpop.xlane.xlu0 %804
    %806 = vadd.xlane.f32.xlu0 %v783
    %v807 = vpop.xlane.xlu0 %806
    %808 = vadd.xlane.f32.xlu0 %v784
    %v809 = vpop.xlane.xlu0 %808
    %810 = vadd.xlane.f32.xlu0 %v785
    %v811 = vpop.xlane.xlu0 %810
    %812 = vadd.xlane.f32.xlu0 %v786
    %v813 = vpop.xlane.xlu0 %812
    %814 = vadd.xlane.f32.xlu0 %v787
    %v815 = vpop.xlane.xlu0 %814
    %816 = vadd.xlane.f32.xlu0 %v788
    %v817 = vpop.xlane.xlu0 %816
    %818 = vadd.xlane.f32.xlu0 %v789
    %v819 = vpop.xlane.xlu0 %818
    %820 = vadd.xlane.f32.xlu0 %v790
    %v821 = vpop.xlane.xlu0 %820
    %822 = vadd.xlane.f32.xlu0 %v791
    %v823 = vpop.xlane.xlu0 %822
    %v824 = vrcp.pop %v793
    %v825 = vrcp.pop %v795
    %v826 = vrcp.pop %v797
    %v827 = vrcp.pop %v799
    %v828 = vrcp.pop %v801
    %v829 = vrcp.pop %v803
    %v830 = vrcp.pop %v805
    %v831 = vrcp.pop %v807
    %v832 = vrcp.pop %v809
    %v833 = vrcp.pop %v811
    %v834 = vrcp.pop %v813
    %v835 = vrcp.pop %v815
    %v836 = vrcp.pop %v817
    %v837 = vrcp.pop %v819
    %v838 = vrcp.pop %v821
    %v839 = vrcp.pop %v823
    %v840 = vmul.f32 %v793, %v824
    %v841 = vmul.f32 %v795, %v825
    %v842 = vmul.f32 %v797, %v826
    %v843 = vmul.f32 %v799, %v827
    %v844 = vmul.f32 %v801, %v828
    %v845 = vmul.f32 %v803, %v829
    %v846 = vmul.f32 %v805, %v830
    %v847 = vmul.f32 %v807, %v831
    %v848 = vmul.f32 %v809, %v832
    %v849 = vmul.f32 %v811, %v833
    %v850 = vmul.f32 %v813, %v834
    %v851 = vmul.f32 %v815, %v835
    %v852 = vmul.f32 %v817, %v836
    %v853 = vmul.f32 %v819, %v837
    %v854 = vmul.f32 %v821, %v838
    %v855 = vmul.f32 %v823, %v839
    %v856 = vsub.f32 2.0, %v840
    %v857 = vsub.f32 2.0, %v841
    %v858 = vsub.f32 2.0, %v842
    %v859 = vsub.f32 2.0, %v843
    %v860 = vsub.f32 2.0, %v844
    %v861 = vsub.f32 2.0, %v845
    %v862 = vsub.f32 2.0, %v846
    %v863 = vsub.f32 2.0, %v847
    %v864 = vsub.f32 2.0, %v848
    %v865 = vsub.f32 2.0, %v849
    %v866 = vsub.f32 2.0, %v850
    %v867 = vsub.f32 2.0, %v851
    %v868 = vsub.f32 2.0, %v852
    %v869 = vsub.f32 2.0, %v853
    %v870 = vsub.f32 2.0, %v854
    %v871 = vsub.f32 2.0, %v855
    %v872 = vmul.f32 %v824, %v856
    %v873 = vmul.f32 %v825, %v857
    %v874 = vmul.f32 %v826, %v858
    %v875 = vmul.f32 %v827, %v859
    %v876 = vmul.f32 %v828, %v860
    %v877 = vmul.f32 %v829, %v861
    %v878 = vmul.f32 %v830, %v862
    %v879 = vmul.f32 %v831, %v863
    %v880 = vmul.f32 %v832, %v864
    %v881 = vmul.f32 %v833, %v865
    %v882 = vmul.f32 %v834, %v866
    %v883 = vmul.f32 %v835, %v867
    %v884 = vmul.f32 %v836, %v868
    %v885 = vmul.f32 %v837, %v869
    %v886 = vmul.f32 %v838, %v870
    %v887 = vmul.f32 %v839, %v871
    %v888 = vand.u32 2147483647, %v872
    %v889 = vand.u32 2147483647, %v873
    %v890 = vand.u32 2147483647, %v874
    %v891 = vand.u32 2147483647, %v875
    %v892 = vand.u32 2147483647, %v876
    %v893 = vand.u32 2147483647, %v877
    %v894 = vand.u32 2147483647, %v878
    %v895 = vand.u32 2147483647, %v879
    %v896 = vand.u32 2147483647, %v880
    %v897 = vand.u32 2147483647, %v881
    %v898 = vand.u32 2147483647, %v882
    %v899 = vand.u32 2147483647, %v883
    %v900 = vand.u32 2147483647, %v884
    %v901 = vand.u32 2147483647, %v885
    %v902 = vand.u32 2147483647, %v886
    %v903 = vand.u32 2147483647, %v887
    %vm904 = vcmp.lt.f32.partialorder %v888, inf
    %vm905 = vcmp.lt.f32.partialorder %v889, inf
    %vm906 = vcmp.lt.f32.partialorder %v890, inf
    %vm907 = vcmp.lt.f32.partialorder %v891, inf
    %vm908 = vcmp.lt.f32.partialorder %v892, inf
    %vm909 = vcmp.lt.f32.partialorder %v893, inf
    %vm910 = vcmp.lt.f32.partialorder %v894, inf
    %vm911 = vcmp.lt.f32.partialorder %v895, inf
    %vm912 = vcmp.lt.f32.partialorder %v896, inf
    %vm913 = vcmp.lt.f32.partialorder %v897, inf
    %vm914 = vcmp.lt.f32.partialorder %v898, inf
    %vm915 = vcmp.lt.f32.partialorder %v899, inf
    %vm916 = vcmp.lt.f32.partialorder %v900, inf
    %vm917 = vcmp.lt.f32.partialorder %v901, inf
    %vm918 = vcmp.lt.f32.partialorder %v902, inf
    %vm919 = vcmp.lt.f32.partialorder %v903, inf
    %v920 = vsel %vm904, %v872, 0.0
    %v921 = vsel %vm905, %v873, 0.0
    %v922 = vsel %vm906, %v874, 0.0
    %v923 = vsel %vm907, %v875, 0.0
    %v924 = vsel %vm908, %v876, 0.0
    %v925 = vsel %vm909, %v877, 0.0
    %v926 = vsel %vm910, %v878, 0.0
    %v927 = vsel %vm911, %v879, 0.0
    %v928 = vsel %vm912, %v880, 0.0
    %v929 = vsel %vm913, %v881, 0.0
    %v930 = vsel %vm914, %v882, 0.0
    %v931 = vsel %vm915, %v883, 0.0
    %v932 = vsel %vm916, %v884, 0.0
    %v933 = vsel %vm917, %v885, 0.0
    %v934 = vsel %vm918, %v886, 0.0
    %v935 = vsel %vm919, %v887, 0.0
    %v936 = vmul.f32 %v776, %v920
    %v937 = vmul.f32 %v777, %v921
    %v938 = vmul.f32 %v778, %v922
    %v939 = vmul.f32 %v779, %v923
    %v940 = vmul.f32 %v780, %v924
    %v941 = vmul.f32 %v781, %v925
    %v942 = vmul.f32 %v782, %v926
    %v943 = vmul.f32 %v783, %v927
    %v944 = vmul.f32 %v784, %v928
    %v945 = vmul.f32 %v785, %v929
    %v946 = vmul.f32 %v786, %v930
    %v947 = vmul.f32 %v787, %v931
    %v948 = vmul.f32 %v788, %v932
    %v949 = vmul.f32 %v789, %v933
    %v950 = vmul.f32 %v790, %v934
    %v951 = vmul.f32 %v791, %v935
    %952 = vmatprep.subr.mxu0 0.0
    %953 = vmatpush1.msra.mxu0 %v936
    %954 = vmatprep.subr.mxu0 0.0
    %955 = vmatpush1.msra.mxu0 %v937
    %956 = vmatprep.subr.mxu0 0.0
    %957 = vmatpush1.msra.mxu0 %v938
    %958 = vmatprep.subr.mxu0 0.0
    %959 = vmatpush1.msra.mxu0 %v939
    %960 = vmatprep.subr.mxu0 0.0
    %961 = vmatpush1.msra.mxu0 %v940
    %962 = vmatprep.subr.mxu0 0.0
    %963 = vmatpush1.msra.mxu0 %v941
    %964 = vmatprep.subr.mxu0 0.0
    %965 = vmatpush1.msra.mxu0 %v942
    %966 = vmatprep.subr.mxu0 0.0
    %967 = vmatpush1.msra.mxu0 %v943
    %968 = vmatprep.subr.mxu0 0.0
    %969 = vmatpush1.msra.mxu0 %v944
    %970 = vmatprep.subr.mxu0 0.0
    %971 = vmatpush1.msra.mxu0 %v945
    %972 = vmatprep.subr.mxu0 0.0
    %973 = vmatpush1.msra.mxu0 %v946
    %974 = vmatprep.subr.mxu0 0.0
    %975 = vmatpush1.msra.mxu0 %v947
    %976 = vmatprep.subr.mxu0 0.0
    %977 = vmatpush1.msra.mxu0 %v948
    %978 = vmatprep.subr.mxu0 0.0
    %979 = vmatpush1.msra.mxu0 %v949
    %980 = vmatprep.subr.mxu0 0.0
    %981 = vmatpush1.msra.mxu0 %v950
    %982 = vmatprep.subr.mxu0 0.0
    %983 = vmatpush1.msra.mxu0 %v951
    %984 = vmatprep.subr.mxu0 0.0
    %985 = vmatpush1.msra.mxu0 0.0
    %986 = vmatprep.subr.mxu0 0.0
    %987 = vmatpush1.msra.mxu0 0.0
    %988 = vmatprep.subr.mxu0 0.0
    %989 = vmatpush1.msra.mxu0 0.0
    %990 = vmatprep.subr.mxu0 0.0
    %991 = vmatpush1.msra.mxu0 0.0
    %992 = vmatprep.subr.mxu0 0.0
    %993 = vmatpush1.msra.mxu0 0.0
    %994 = vmatprep.subr.mxu0 0.0
    %995 = vmatpush1.msra.mxu0 0.0
    %996 = vmatprep.subr.mxu0 0.0
    %997 = vmatpush1.msra.mxu0 0.0
    %998 = vmatprep.subr.mxu0 0.0
    %999 = vmatpush1.msra.mxu0 0.0
    %1000 = vmatprep.subr.mxu0 0.0
    %1001 = vmatpush1.msra.mxu0 0.0
    %1002 = vmatprep.subr.mxu0 0.0
    %1003 = vmatpush1.msra.mxu0 0.0
    %1004 = vmatprep.subr.mxu0 0.0
    %1005 = vmatpush1.msra.mxu0 0.0
    %1006 = vmatprep.subr.mxu0 0.0
    %1007 = vmatpush1.msra.mxu0 0.0
    %1008 = vmatprep.subr.mxu0 0.0
    %1009 = vmatpush1.msra.mxu0 0.0
    %1010 = vmatprep.subr.mxu0 0.0
    %1011 = vmatpush1.msra.mxu0 0.0
    %1012 = vmatprep.subr.mxu0 0.0
    %1013 = vmatpush1.msra.mxu0 0.0
    %1014 = vmatprep.subr.mxu0 0.0
    %1015 = vmatpush1.msra.mxu0 0.0
    %1016 = vmatprep.mubr.f32.mxu0 0.0
    %1017 = vmatmul.mubr.f32.gmra.mrb[0].mxu0 %v936
    %v1018 = vpop.f32.mrb[0].mxu0
    %v1019 = vadd.f32 0.0, %v1018
    %v1020 = vpop.f32.mrb[0].mxu0
    %1021 = vmatprep.mubr.f32.mxu0 0.0
    %1022 = vmatmul.mubr.f32.gmra.mrb[0].mxu0 %v937
    %v1023 = vpop.f32.mrb[0].mxu0
    %v1024 = vadd.f32 0.0, %v1023
    %v1025 = vpop.f32.mrb[0].mxu0
    %1026 = vmatprep.mubr.f32.mxu0 0.0
    %1027 = vmatmul.mubr.f32.gmra.mrb[0].mxu0 %v938
    %v1028 = vpop.f32.mrb[0].mxu0
    %v1029 = vadd.f32 0.0, %v1028
    %v1030 = vpop.f32.mrb[0].mxu0
    %1031 = vmatprep.mubr.f32.mxu0 0.0
    %1032 = vmatmul.mubr.f32.gmra.mrb[0].mxu0 %v939
    %v1033 = vpop.f32.mrb[0].mxu0
    %v1034 = vadd.f32 0.0, %v1033
    %v1035 = vpop.f32.mrb[0].mxu0
    %1036 = vmatprep.mubr.f32.mxu0 0.0
    %1037 = vmatmul.mubr.f32.gmra.mrb[0].mxu0 %v940
    %v1038 = vpop.f32.mrb[0].mxu0
    %v1039 = vadd.f32 0.0, %v1038
    %v1040 = vpop.f32.mrb[0].mxu0
    %1041 = vmatprep.mubr.f32.mxu0 0.0
    %1042 = vmatmul.mubr.f32.gmra.mrb[0].mxu0 %v941
    %v1043 = vpop.f32.mrb[0].mxu0
    %v1044 = vadd.f32 0.0, %v1043
    %v1045 = vpop.f32.mrb[0].mxu0
    %1046 = vmatprep.mubr.f32.mxu0 0.0
    %1047 = vmatmul.mubr.f32.gmra.mrb[0].mxu0 %v942
    %v1048 = vpop.f32.mrb[0].mxu0
    %v1049 = vadd.f32 0.0, %v1048
    %v1050 = vpop.f32.mrb[0].mxu0
    %1051 = vmatprep.mubr.f32.mxu0 0.0
    %1052 = vmatmul.mubr.f32.gmra.mrb[0].mxu0 %v943
    %v1053 = vpop.f32.mrb[0].mxu0
    %v1054 = vadd.f32 0.0, %v1053
    %v1055 = vpop.f32.mrb[0].mxu0
    %1056 = vmatprep.mubr.f32.mxu0 0.0
    %1057 = vmatmul.mubr.f32.gmra.mrb[0].mxu0 %v944
    %v1058 = vpop.f32.mrb[0].mxu0
    %v1059 = vadd.f32 0.0, %v1058
    %v1060 = vpop.f32.mrb[0].mxu0
    %1061 = vmatprep.mubr.f32.mxu0 0.0
    %1062 = vmatmul.mubr.f32.gmra.mrb[0].mxu0 %v945
    %v1063 = vpop.f32.mrb[0].mxu0
    %v1064 = vadd.f32 0.0, %v1063
    %v1065 = vpop.f32.mrb[0].mxu0
    %1066 = vmatprep.mubr.f32.mxu0 0.0
    %1067 = vmatmul.mubr.f32.gmra.mrb[0].mxu0 %v946
    %v1068 = vpop.f32.mrb[0].mxu0
    %v1069 = vadd.f32 0.0, %v1068
    %v1070 = vpop.f32.mrb[0].mxu0
    %1071 = vmatprep.mubr.f32.mxu0 0.0
    %1072 = vmatmul.mubr.f32.gmra.mrb[0].mxu0 %v947
    %v1073 = vpop.f32.mrb[0].mxu0
    %v1074 = vadd.f32 0.0, %v1073
    %v1075 = vpop.f32.mrb[0].mxu0
    %1076 = vmatprep.mubr.f32.mxu0 0.0
    %1077 = vmatmul.mubr.f32.gmra.mrb[0].mxu0 %v948
    %v1078 = vpop.f32.mrb[0].mxu0
    %v1079 = vadd.f32 0.0, %v1078
    %v1080 = vpop.f32.mrb[0].mxu0
    %1081 = vmatprep.mubr.f32.mxu0 0.0
    %1082 = vmatmul.mubr.f32.gmra.mrb[0].mxu0 %v949
    %v1083 = vpop.f32.mrb[0].mxu0
    %v1084 = vadd.f32 0.0, %v1083
    %v1085 = vpop.f32.mrb[0].mxu0
    %1086 = vmatprep.mubr.f32.mxu0 0.0
    %1087 = vmatmul.mubr.f32.gmra.mrb[0].mxu0 %v950
    %v1088 = vpop.f32.mrb[0].mxu0
    %v1089 = vadd.f32 0.0, %v1088
    %v1090 = vpop.f32.mrb[0].mxu0
    %1091 = vmatprep.mubr.f32.mxu0 0.0
    %1092 = vmatmul.mubr.f32.gmra.mrb[0].mxu0 %v951
    %v1093 = vpop.f32.mrb[0].mxu0
    %v1094 = vadd.f32 0.0, %v1093
    %v1095 = vpop.f32.mrb[0].mxu0
    %1096 = vdwg.mxu0
    %v1097 = vsel %vm48, %v936, 0.0
    %v1098 = vsel %vm49, %v937, 0.0
    %v1099 = vsel %vm50, %v938, 0.0
    %v1100 = vsel %vm51, %v939, 0.0
    %v1101 = vsel %vm52, %v940, 0.0
    %v1102 = vsel %vm53, %v941, 0.0
    %v1103 = vsel %vm54, %v942, 0.0
    %v1104 = vsel %vm55, %v943, 0.0
    %v1105 = vsel %vm56, %v944, 0.0
    %v1106 = vsel %vm57, %v945, 0.0
    %v1107 = vsel %vm58, %v946, 0.0
    %v1108 = vsel %vm59, %v947, 0.0
    %v1109 = vsel %vm60, %v948, 0.0
    %v1110 = vsel %vm61, %v949, 0.0
    %v1111 = vsel %vm62, %v950, 0.0
    %v1112 = vsel %vm63, %v951, 0.0
    %v1113 = vsel %vm48, %v1019, 0.0
    %v1114 = vsel %vm49, %v1024, 0.0
    %v1115 = vsel %vm50, %v1029, 0.0
    %v1116 = vsel %vm51, %v1034, 0.0
    %v1117 = vsel %vm52, %v1039, 0.0
    %v1118 = vsel %vm53, %v1044, 0.0
    %v1119 = vsel %vm54, %v1049, 0.0
    %v1120 = vsel %vm55, %v1054, 0.0
    %v1121 = vsel %vm56, %v1059, 0.0
    %v1122 = vsel %vm57, %v1064, 0.0
    %v1123 = vsel %vm58, %v1069, 0.0
    %v1124 = vsel %vm59, %v1074, 0.0
    %v1125 = vsel %vm60, %v1079, 0.0
    %v1126 = vsel %vm61, %v1084, 0.0
    %v1127 = vsel %vm62, %v1089, 0.0
    %v1128 = vsel %vm63, %v1094, 0.0
    %1129 = vst [vmem:[#allocation2] sm:$0xff] %v1097
    %1130 = vst [vmem:[#allocation2 + $0x18] sm:$0xff] %v1098
    %1131 = vst [vmem:[#allocation2 + $0x30] sm:$0xff] %v1099
    %1132 = vst [vmem:[#allocation2 + $0x48] sm:$0xff] %v1100
    %1133 = vst [vmem:[#allocation2 + $0x60] sm:$0xff] %v1101
    %1134 = vst [vmem:[#allocation2 + $0x78] sm:$0xff] %v1102
    %1135 = vst [vmem:[#allocation2 + $0x90] sm:$0xff] %v1103
    %1136 = vst [vmem:[#allocation2 + $0xa8] sm:$0xff] %v1104
    %1137 = vst [vmem:[#allocation2 + $0xc0] sm:$0xff] %v1105
    %1138 = vst [vmem:[#allocation2 + $0xd8] sm:$0xff] %v1106
    %1139 = vst [vmem:[#allocation2 + $0xf0] sm:$0xff] %v1107
    %1140 = vst [vmem:[#allocation2 + $0x108] sm:$0xff] %v1108
    %1141 = vst [vmem:[#allocation2 + $0x120] sm:$0xff] %v1109
    %1142 = vst [vmem:[#allocation2 + $0x138] sm:$0xff] %v1110
    %1143 = vst [vmem:[#allocation2 + $0x150] sm:$0xff] %v1111
    %1144 = vst [vmem:[#allocation2 + $0x168] sm:$0xff] %v1112
    %1145 = vst [vmem:[#allocation4] sm:$0xff] %v1113
    %1146 = vst [vmem:[#allocation4 + $0x18] sm:$0xff] %v1114
    %1147 = vst [vmem:[#allocation4 + $0x30] sm:$0xff] %v1115
    %1148 = vst [vmem:[#allocation4 + $0x48] sm:$0xff] %v1116
    %1149 = vst [vmem:[#allocation4 + $0x60] sm:$0xff] %v1117
    %1150 = vst [vmem:[#allocation4 + $0x78] sm:$0xff] %v1118
    %1151 = vst [vmem:[#allocation4 + $0x90] sm:$0xff] %v1119
    %1152 = vst [vmem:[#allocation4 + $0xa8] sm:$0xff] %v1120
    %1153 = vst [vmem:[#allocation4 + $0xc0] sm:$0xff] %v1121
    %1154 = vst [vmem:[#allocation4 + $0xd8] sm:$0xff] %v1122
    %1155 = vst [vmem:[#allocation4 + $0xf0] sm:$0xff] %v1123
    %1156 = vst [vmem:[#allocation4 + $0x108] sm:$0xff] %v1124
    %1157 = vst [vmem:[#allocation4 + $0x120] sm:$0xff] %v1125
    %1158 = vst [vmem:[#allocation4 + $0x138] sm:$0xff] %v1126
    %1159 = vst [vmem:[#allocation4 + $0x150] sm:$0xff] %v1127
    %1160 = vst [vmem:[#allocation4 + $0x168] sm:$0xff] %v1128
    %1161 = vst [vmem:[#allocation2 + $0x8] sm:$0xff] %v1097
    %1162 = vst [vmem:[#allocation2 + $0x20] sm:$0xff] %v1098
    %1163 = vst [vmem:[#allocation2 + $0x38] sm:$0xff] %v1099
    %1164 = vst [vmem:[#allocation2 + $0x50] sm:$0xff] %v1100
    %1165 = vst [vmem:[#allocation2 + $0x68] sm:$0xff] %v1101
    %1166 = vst [vmem:[#allocation2 + $0x80] sm:$0xff] %v1102
    %1167 = vst [vmem:[#allocation2 + $0x98] sm:$0xff] %v1103
    %1168 = vst [vmem:[#allocation2 + $0xb0] sm:$0xff] %v1104
    %1169 = vst [vmem:[#allocation2 + $0xc8] sm:$0xff] %v1105
    %1170 = vst [vmem:[#allocation2 + $0xe0] sm:$0xff] %v1106
    %1171 = vst [vmem:[#allocation2 + $0xf8] sm:$0xff] %v1107
    %1172 = vst [vmem:[#allocation2 + $0x110] sm:$0xff] %v1108
    %1173 = vst [vmem:[#allocation2 + $0x128] sm:$0xff] %v1109
    %1174 = vst [vmem:[#allocation2 + $0x140] sm:$0xff] %v1110
    %1175 = vst [vmem:[#allocation2 + $0x158] sm:$0xff] %v1111
    %1176 = vst [vmem:[#allocation2 + $0x170] sm:$0xff] %v1112
    %1177 = vst [vmem:[#allocation4 + $0x8] sm:$0xff] %v1113
    %1178 = vst [vmem:[#allocation4 + $0x20] sm:$0xff] %v1114
    %1179 = vst [vmem:[#allocation4 + $0x38] sm:$0xff] %v1115
    %1180 = vst [vmem:[#allocation4 + $0x50] sm:$0xff] %v1116
    %1181 = vst [vmem:[#allocation4 + $0x68] sm:$0xff] %v1117
    %1182 = vst [vmem:[#allocation4 + $0x80] sm:$0xff] %v1118
    %1183 = vst [vmem:[#allocation4 + $0x98] sm:$0xff] %v1119
    %1184 = vst [vmem:[#allocation4 + $0xb0] sm:$0xff] %v1120
    %1185 = vst [vmem:[#allocation4 + $0xc8] sm:$0xff] %v1121
    %1186 = vst [vmem:[#allocation4 + $0xe0] sm:$0xff] %v1122
    %1187 = vst [vmem:[#allocation4 + $0xf8] sm:$0xff] %v1123
    %1188 = vst [vmem:[#allocation4 + $0x110] sm:$0xff] %v1124
    %1189 = vst [vmem:[#allocation4 + $0x128] sm:$0xff] %v1125
    %1190 = vst [vmem:[#allocation4 + $0x140] sm:$0xff] %v1126
    %1191 = vst [vmem:[#allocation4 + $0x158] sm:$0xff] %v1127
    %1192 = vst [vmem:[#allocation4 + $0x170] sm:$0xff] %v1128
    %1193 = vst [vmem:[#allocation2 + $0x10] sm:$0xff] %v1097
    %1194 = vst [vmem:[#allocation2 + $0x28] sm:$0xff] %v1098
    %1195 = vst [vmem:[#allocation2 + $0x40] sm:$0xff] %v1099
    %1196 = vst [vmem:[#allocation2 + $0x58] sm:$0xff] %v1100
    %1197 = vst [vmem:[#allocation2 + $0x70] sm:$0xff] %v1101
    %1198 = vst [vmem:[#allocation2 + $0x88] sm:$0xff] %v1102
    %1199 = vst [vmem:[#allocation2 + $0xa0] sm:$0xff] %v1103
    %1200 = vst [vmem:[#allocation2 + $0xb8] sm:$0xff] %v1104
    %1201 = vst [vmem:[#allocation2 + $0xd0] sm:$0xff] %v1105
    %1202 = vst [vmem:[#allocation2 + $0xe8] sm:$0xff] %v1106
    %1203 = vst [vmem:[#allocation2 + $0x100] sm:$0xff] %v1107
    %1204 = vst [vmem:[#allocation2 + $0x118] sm:$0xff] %v1108
    %1205 = vst [vmem:[#allocation2 + $0x130] sm:$0xff] %v1109
    %1206 = vst [vmem:[#allocation2 + $0x148] sm:$0xff] %v1110
    %1207 = vst [vmem:[#allocation2 + $0x160] sm:$0xff] %v1111
    %1208 = vst [vmem:[#allocation2 + $0x178] sm:$0xff] %v1112
    %1209 = vst [vmem:[#allocation4 + $0x10] sm:$0xff] %v1113
    %1210 = vst [vmem:[#allocation4 + $0x28] sm:$0xff] %v1114
    %1211 = vst [vmem:[#allocation4 + $0x40] sm:$0xff] %v1115
    %1212 = vst [vmem:[#allocation4 + $0x58] sm:$0xff] %v1116
    %1213 = vst [vmem:[#allocation4 + $0x70] sm:$0xff] %v1117
    %1214 = vst [vmem:[#allocation4 + $0x88] sm:$0xff] %v1118
    %1215 = vst [vmem:[#allocation4 + $0xa0] sm:$0xff] %v1119
    %1216 = vst [vmem:[#allocation4 + $0xb8] sm:$0xff] %v1120
    %1217 = vst [vmem:[#allocation4 + $0xd0] sm:$0xff] %v1121
    %1218 = vst [vmem:[#allocation4 + $0xe8] sm:$0xff] %v1122
    %1219 = vst [vmem:[#allocation4 + $0x100] sm:$0xff] %v1123
    %1220 = vst [vmem:[#allocation4 + $0x118] sm:$0xff] %v1124
    %1221 = vst [vmem:[#allocation4 + $0x130] sm:$0xff] %v1125
    %1222 = vst [vmem:[#allocation4 + $0x148] sm:$0xff] %v1126
    %1223 = vst [vmem:[#allocation4 + $0x160] sm:$0xff] %v1127
    %1224 = vst [vmem:[#allocation4 + $0x178] sm:$0xff] %v1128
    %1241 = vrot.lane.b32.xlu0 %v360, 96
    %v1242 = vpop.permute.xlu0 %1241
    %1243 = vrot.lane.b32.xlu0 %v365, 96
    %v1244 = vpop.permute.xlu0 %1243
    %1245 = vrot.lane.b32.xlu0 %v370, 96
    %v1246 = vpop.permute.xlu0 %1245
    %1247 = vrot.lane.b32.xlu0 %v375, 96
    %v1248 = vpop.permute.xlu0 %1247
    %1249 = vrot.lane.b32.xlu0 %v380, 96
    %v1250 = vpop.permute.xlu0 %1249
    %1251 = vrot.lane.b32.xlu0 %v385, 96
    %v1252 = vpop.permute.xlu0 %1251
    %1253 = vrot.lane.b32.xlu0 %v390, 96
    %v1254 = vpop.permute.xlu0 %1253
    %1255 = vrot.lane.b32.xlu0 %v395, 96
    %v1256 = vpop.permute.xlu0 %1255
    %1257 = vrot.lane.b32.xlu0 %v400, 96
    %v1258 = vpop.permute.xlu0 %1257
    %1259 = vrot.lane.b32.xlu0 %v405, 96
    %v1260 = vpop.permute.xlu0 %1259
    %1261 = vrot.lane.b32.xlu0 %v410, 96
    %v1262 = vpop.permute.xlu0 %1261
    %1263 = vrot.lane.b32.xlu0 %v415, 96
    %v1264 = vpop.permute.xlu0 %1263
    %1265 = vrot.lane.b32.xlu0 %v420, 96
    %v1266 = vpop.permute.xlu0 %1265
    %1267 = vrot.lane.b32.xlu0 %v425, 96
    %v1268 = vpop.permute.xlu0 %1267
    %1269 = vrot.lane.b32.xlu0 %v430, 96
    %v1270 = vpop.permute.xlu0 %1269
    %1271 = vrot.lane.b32.xlu0 %v435, 96
    %v1272 = vpop.permute.xlu0 %1271
    %v1273 = vsel %vm486, %v360, 0
    %v1275 = vsel %vm486, %v365, 0
    %v1277 = vsel %vm486, %v370, 0
    %v1279 = vsel %vm486, %v375, 0
    %v1281 = vsel %vm486, %v380, 0
    %v1283 = vsel %vm486, %v385, 0
    %v1285 = vsel %vm486, %v390, 0
    %v1287 = vsel %vm486, %v395, 0
    %v1289 = vsel %vm486, %v400, 0
    %v1291 = vsel %vm486, %v405, 0
    %v1293 = vsel %vm486, %v410, 0
    %v1295 = vsel %vm486, %v415, 0
    %v1297 = vsel %vm486, %v420, 0
    %v1299 = vsel %vm486, %v425, 0
    %v1301 = vsel %vm486, %v430, 0
    %v1303 = vsel %vm486, %v435, 0
    %v1305 = vsel %vm486, %v1242, 0
    %v1307 = vsel %vm486, %v1244, 0
    %v1309 = vsel %vm486, %v1246, 0
    %v1311 = vsel %vm486, %v1248, 0
    %v1313 = vsel %vm486, %v1250, 0
    %v1315 = vsel %vm486, %v1252, 0
    %v1317 = vsel %vm486, %v1254, 0
    %v1319 = vsel %vm486, %v1256, 0
    %v1321 = vsel %vm486, %v1258, 0
    %v1323 = vsel %vm486, %v1260, 0
    %v1325 = vsel %vm486, %v1262, 0
    %v1327 = vsel %vm486, %v1264, 0
    %v1329 = vsel %vm486, %v1266, 0
    %v1331 = vsel %vm486, %v1268, 0
    %v1333 = vsel %vm486, %v1270, 0
    %v1335 = vsel %vm486, %v1272, 0
    %1337 = vmatprep.subr.mxu0 0.0
    %1338 = vmatpush1.xpose.msra.mxu0 %v1305
    %1339 = vmatprep.subr.mxu0 0.0
    %1340 = vmatpush1.xpose.msra.mxu0 %v1307
    %1341 = vmatprep.subr.mxu0 0.0
    %1342 = vmatpush1.xpose.msra.mxu0 %v1309
    %1343 = vmatprep.subr.mxu0 0.0
    %1344 = vmatpush1.xpose.msra.mxu0 %v1311
    %1345 = vmatprep.subr.mxu0 0.0
    %1346 = vmatpush1.xpose.msra.mxu0 %v1313
    %1347 = vmatprep.subr.mxu0 0.0
    %1348 = vmatpush1.xpose.msra.mxu0 %v1315
    %1349 = vmatprep.subr.mxu0 0.0
    %1350 = vmatpush1.xpose.msra.mxu0 %v1317
    %1351 = vmatprep.subr.mxu0 0.0
    %1352 = vmatpush1.xpose.msra.mxu0 %v1319
    %1353 = vmatprep.subr.mxu0 0.0
    %1354 = vmatpush1.xpose.msra.mxu0 %v1321
    %1355 = vmatprep.subr.mxu0 0.0
    %1356 = vmatpush1.xpose.msra.mxu0 %v1323
    %1357 = vmatprep.subr.mxu0 0.0
    %1358 = vmatpush1.xpose.msra.mxu0 %v1325
    %1359 = vmatprep.subr.mxu0 0.0
    %1360 = vmatpush1.xpose.msra.mxu0 %v1327
    %1361 = vmatprep.subr.mxu0 0.0
    %1362 = vmatpush1.xpose.msra.mxu0 %v1329
    %1363 = vmatprep.subr.mxu0 0.0
    %1364 = vmatpush1.xpose.msra.mxu0 %v1331
    %1365 = vmatprep.subr.mxu0 0.0
    %1366 = vmatpush1.xpose.msra.mxu0 %v1333
    %1367 = vmatprep.subr.mxu0 0.0
    %1368 = vmatpush1.xpose.msra.mxu0 %v1335
    %1369 = vmatprep.subr.mxu0 0.0
    %1370 = vmatpush1.xpose.msra.mxu0 0.0
    %1371 = vmatprep.subr.mxu0 0.0
    %1372 = vmatpush1.xpose.msra.mxu0 0.0
    %1373 = vmatprep.subr.mxu0 0.0
    %1374 = vmatpush1.xpose.msra.mxu0 0.0
    %1375 = vmatprep.subr.mxu0 0.0
    %1376 = vmatpush1.xpose.msra.mxu0 0.0
    %1377 = vmatprep.subr.mxu0 0.0
    %1378 = vmatpush1.xpose.msra.mxu0 0.0
    %1379 = vmatprep.subr.mxu0 0.0
    %1380 = vmatpush1.xpose.msra.mxu0 0.0
    %1381 = vmatprep.subr.mxu0 0.0
    %1382 = vmatpush1.xpose.msra.mxu0 0.0
    %1383 = vmatprep.subr.mxu0 0.0
    %1384 = vmatpush1.xpose.msra.mxu0 0.0
    %1385 = vmatprep.subr.mxu0 0.0
    %1386 = vmatpush1.xpose.msra.mxu0 0.0
    %1387 = vmatprep.subr.mxu0 0.0
    %1388 = vmatpush1.xpose.msra.mxu0 0.0
    %1389 = vmatprep.subr.mxu0 0.0
    %1390 = vmatpush1.xpose.msra.mxu0 0.0
    %1391 = vmatprep.subr.mxu0 0.0
    %1392 = vmatpush1.xpose.msra.mxu0 0.0
    %1393 = vmatprep.subr.mxu0 0.0
    %1394 = vmatpush1.xpose.msra.mxu0 0.0
    %1395 = vmatprep.subr.mxu0 0.0
    %1396 = vmatpush1.xpose.msra.mxu0 0.0
    %1397 = vmatprep.subr.mxu0 0.0
    %1398 = vmatpush1.xpose.msra.mxu0 0.0
    %1399 = vmatprep.subr.mxu0 0.0
    %1400 = vmatpush1.xpose.msra.mxu0 0.0
    %1401 = vmatprep.mubr.f32.mxu0 0.0
    %1402 = vmatmul.mubr.f32.gmra.mrb[0].mxu0 %v1273
    %v1403 = vpop.f32.mrb[0].mxu0
    %v1404 = vadd.f32 0.0, %v1403
    %v1405 = vpop.f32.mrb[0].mxu0
    %1406 = vmatprep.mubr.f32.mxu0 0.0
    %1407 = vmatmul.mubr.f32.gmra.mrb[0].mxu0 %v1275
    %v1408 = vpop.f32.mrb[0].mxu0
    %v1409 = vadd.f32 0.0, %v1408
    %v1410 = vpop.f32.mrb[0].mxu0
    %1411 = vmatprep.mubr.f32.mxu0 0.0
    %1412 = vmatmul.mubr.f32.gmra.mrb[0].mxu0 %v1277
    %v1413 = vpop.f32.mrb[0].mxu0
    %v1414 = vadd.f32 0.0, %v1413
    %v1415 = vpop.f32.mrb[0].mxu0
    %1416 = vmatprep.mubr.f32.mxu0 0.0
    %1417 = vmatmul.mubr.f32.gmra.mrb[0].mxu0 %v1279
    %v1418 = vpop.f32.mrb[0].mxu0
    %v1419 = vadd.f32 0.0, %v1418
    %v1420 = vpop.f32.mrb[0].mxu0
    %1421 = vmatprep.mubr.f32.mxu0 0.0
    %1422 = vmatmul.mubr.f32.gmra.mrb[0].mxu0 %v1281
    %v1423 = vpop.f32.mrb[0].mxu0
    %v1424 = vadd.f32 0.0, %v1423
    %v1425 = vpop.f32.mrb[0].mxu0
    %1426 = vmatprep.mubr.f32.mxu0 0.0
    %1427 = vmatmul.mubr.f32.gmra.mrb[0].mxu0 %v1283
    %v1428 = vpop.f32.mrb[0].mxu0
    %v1429 = vadd.f32 0.0, %v1428
    %v1430 = vpop.f32.mrb[0].mxu0
    %1431 = vmatprep.mubr.f32.mxu0 0.0
    %1432 = vmatmul.mubr.f32.gmra.mrb[0].mxu0 %v1285
    %v1433 = vpop.f32.mrb[0].mxu0
    %v1434 = vadd.f32 0.0, %v1433
    %v1435 = vpop.f32.mrb[0].mxu0
    %1436 = vmatprep.mubr.f32.mxu0 0.0
    %1437 = vmatmul.mubr.f32.gmra.mrb[0].mxu0 %v1287
    %v1438 = vpop.f32.mrb[0].mxu0
    %v1439 = vadd.f32 0.0, %v1438
    %v1440 = vpop.f32.mrb[0].mxu0
    %1441 = vmatprep.mubr.f32.mxu0 0.0
    %1442 = vmatmul.mubr.f32.gmra.mrb[0].mxu0 %v1289
    %v1443 = vpop.f32.mrb[0].mxu0
    %v1444 = vadd.f32 0.0, %v1443
    %v1445 = vpop.f32.mrb[0].mxu0
    %1446 = vmatprep.mubr.f32.mxu0 0.0
    %1447 = vmatmul.mubr.f32.gmra.mrb[0].mxu0 %v1291
    %v1448 = vpop.f32.mrb[0].mxu0
    %v1449 = vadd.f32 0.0, %v1448
    %v1450 = vpop.f32.mrb[0].mxu0
    %1451 = vmatprep.mubr.f32.mxu0 0.0
    %1452 = vmatmul.mubr.f32.gmra.mrb[0].mxu0 %v1293
    %v1453 = vpop.f32.mrb[0].mxu0
    %v1454 = vadd.f32 0.0, %v1453
    %v1455 = vpop.f32.mrb[0].mxu0
    %1456 = vmatprep.mubr.f32.mxu0 0.0
    %1457 = vmatmul.mubr.f32.gmra.mrb[0].mxu0 %v1295
    %v1458 = vpop.f32.mrb[0].mxu0
    %v1459 = vadd.f32 0.0, %v1458
    %v1460 = vpop.f32.mrb[0].mxu0
    %1461 = vmatprep.mubr.f32.mxu0 0.0
    %1462 = vmatmul.mubr.f32.gmra.mrb[0].mxu0 %v1297
    %v1463 = vpop.f32.mrb[0].mxu0
    %v1464 = vadd.f32 0.0, %v1463
    %v1465 = vpop.f32.mrb[0].mxu0
    %1466 = vmatprep.mubr.f32.mxu0 0.0
    %1467 = vmatmul.mubr.f32.gmra.mrb[0].mxu0 %v1299
    %v1468 = vpop.f32.mrb[0].mxu0
    %v1469 = vadd.f32 0.0, %v1468
    %v1470 = vpop.f32.mrb[0].mxu0
    %1471 = vmatprep.mubr.f32.mxu0 0.0
    %1472 = vmatmul.mubr.f32.gmra.mrb[0].mxu0 %v1301
    %v1473 = vpop.f32.mrb[0].mxu0
    %v1474 = vadd.f32 0.0, %v1473
    %v1475 = vpop.f32.mrb[0].mxu0
    %1476 = vmatprep.mubr.f32.mxu0 0.0
    %1477 = vmatmul.mubr.f32.gmra.mrb[0].mxu0 %v1303
    %v1478 = vpop.f32.mrb[0].mxu0
    %v1479 = vadd.f32 0.0, %v1478
    %v1480 = vpop.f32.mrb[0].mxu0
    %1481 = vdwg.mxu0
    %1482 = vmax.xlane.f32.xlu0 %v1404
    %v1483 = vpop.xlane.xlu0 %1482
    %1484 = vmax.xlane.f32.xlu0 %v1409
    %v1485 = vpop.xlane.xlu0 %1484
    %1486 = vmax.xlane.f32.xlu0 %v1414
    %v1487 = vpop.xlane.xlu0 %1486
    %1488 = vmax.xlane.f32.xlu0 %v1419
    %v1489 = vpop.xlane.xlu0 %1488
    %1490 = vmax.xlane.f32.xlu0 %v1424
    %v1491 = vpop.xlane.xlu0 %1490
    %1492 = vmax.xlane.f32.xlu0 %v1429
    %v1493 = vpop.xlane.xlu0 %1492
    %1494 = vmax.xlane.f32.xlu0 %v1434
    %v1495 = vpop.xlane.xlu0 %1494
    %1496 = vmax.xlane.f32.xlu0 %v1439
    %v1497 = vpop.xlane.xlu0 %1496
    %1498 = vmax.xlane.f32.xlu0 %v1444
    %v1499 = vpop.xlane.xlu0 %1498
    %1500 = vmax.xlane.f32.xlu0 %v1449
    %v1501 = vpop.xlane.xlu0 %1500
    %1502 = vmax.xlane.f32.xlu0 %v1454
    %v1503 = vpop.xlane.xlu0 %1502
    %1504 = vmax.xlane.f32.xlu0 %v1459
    %v1505 = vpop.xlane.xlu0 %1504
    %1506 = vmax.xlane.f32.xlu0 %v1464
    %v1507 = vpop.xlane.xlu0 %1506
    %1508 = vmax.xlane.f32.xlu0 %v1469
    %v1509 = vpop.xlane.xlu0 %1508
    %1510 = vmax.xlane.f32.xlu0 %v1474
    %v1511 = vpop.xlane.xlu0 %1510
    %1512 = vmax.xlane.f32.xlu0 %v1479
    %v1513 = vpop.xlane.xlu0 %1512
    %v1514 = vsub.f32 %v1404, %v1483
    %v1515 = vsub.f32 %v1409, %v1485
    %v1516 = vsub.f32 %v1414, %v1487
    %v1517 = vsub.f32 %v1419, %v1489
    %v1518 = vsub.f32 %v1424, %v1491
    %v1519 = vsub.f32 %v1429, %v1493
    %v1520 = vsub.f32 %v1434, %v1495
    %v1521 = vsub.f32 %v1439, %v1497
    %v1522 = vsub.f32 %v1444, %v1499
    %v1523 = vsub.f32 %v1449, %v1501
    %v1524 = vsub.f32 %v1454, %v1503
    %v1525 = vsub.f32 %v1459, %v1505
    %v1526 = vsub.f32 %v1464, %v1507
    %v1527 = vsub.f32 %v1469, %v1509
    %v1528 = vsub.f32 %v1474, %v1511
    %v1529 = vsub.f32 %v1479, %v1513
    %v1530 = vmul.f32 %v1514, 1.442695
    %v1531 = vpow.pop %v1530
    %v1532 = vmul.f32 %v1515, 1.442695
    %v1533 = vpow.pop %v1532
    %v1534 = vmul.f32 %v1516, 1.442695
    %v1535 = vpow.pop %v1534
    %v1536 = vmul.f32 %v1517, 1.442695
    %v1537 = vpow.pop %v1536
    %v1538 = vmul.f32 %v1518, 1.442695
    %v1539 = vpow.pop %v1538
    %v1540 = vmul.f32 %v1519, 1.442695
    %v1541 = vpow.pop %v1540
    %v1542 = vmul.f32 %v1520, 1.442695
    %v1543 = vpow.pop %v1542
    %v1544 = vmul.f32 %v1521, 1.442695
    %v1545 = vpow.pop %v1544
    %v1546 = vmul.f32 %v1522, 1.442695
    %v1547 = vpow.pop %v1546
    %v1548 = vmul.f32 %v1523, 1.442695
    %v1549 = vpow.pop %v1548
    %v1550 = vmul.f32 %v1524, 1.442695
    %v1551 = vpow.pop %v1550
    %v1552 = vmul.f32 %v1525, 1.442695
    %v1553 = vpow.pop %v1552
    %v1554 = vmul.f32 %v1526, 1.442695
    %v1555 = vpow.pop %v1554
    %v1556 = vmul.f32 %v1527, 1.442695
    %v1557 = vpow.pop %v1556
    %v1558 = vmul.f32 %v1528, 1.442695
    %v1559 = vpow.pop %v1558
    %v1560 = vmul.f32 %v1529, 1.442695
    %v1561 = vpow.pop %v1560
    %v1562 = vmul.f32 %v64, %v1531
    %v1563 = vmul.f32 %v65, %v1533
    %v1564 = vmul.f32 %v66, %v1535
    %v1565 = vmul.f32 %v67, %v1537
    %v1566 = vmul.f32 %v68, %v1539
    %v1567 = vmul.f32 %v69, %v1541
    %v1568 = vmul.f32 %v70, %v1543
    %v1569 = vmul.f32 %v71, %v1545
    %v1570 = vmul.f32 %v72, %v1547
    %v1571 = vmul.f32 %v73, %v1549
    %v1572 = vmul.f32 %v74, %v1551
    %v1573 = vmul.f32 %v75, %v1553
    %v1574 = vmul.f32 %v76, %v1555
    %v1575 = vmul.f32 %v77, %v1557
    %v1576 = vmul.f32 %v78, %v1559
    %v1577 = vmul.f32 %v79, %v1561
    %1578 = vadd.xlane.f32.xlu0 %v1562
    %v1579 = vpop.xlane.xlu0 %1578
    %1580 = vadd.xlane.f32.xlu0 %v1563
    %v1581 = vpop.xlane.xlu0 %1580
    %1582 = vadd.xlane.f32.xlu0 %v1564
    %v1583 = vpop.xlane.xlu0 %1582
    %1584 = vadd.xlane.f32.xlu0 %v1565
    %v1585 = vpop.xlane.xlu0 %1584
    %1586 = vadd.xlane.f32.xlu0 %v1566
    %v1587 = vpop.xlane.xlu0 %1586
    %1588 = vadd.xlane.f32.xlu0 %v1567
    %v1589 = vpop.xlane.xlu0 %1588
    %1590 = vadd.xlane.f32.xlu0 %v1568
    %v1591 = vpop.xlane.xlu0 %1590
    %1592 = vadd.xlane.f32.xlu0 %v1569
    %v1593 = vpop.xlane.xlu0 %1592
    %1594 = vadd.xlane.f32.xlu0 %v1570
    %v1595 = vpop.xlane.xlu0 %1594
    %1596 = vadd.xlane.f32.xlu0 %v1571
    %v1597 = vpop.xlane.xlu0 %1596
    %1598 = vadd.xlane.f32.xlu0 %v1572
    %v1599 = vpop.xlane.xlu0 %1598
    %1600 = vadd.xlane.f32.xlu0 %v1573
    %v1601 = vpop.xlane.xlu0 %1600
    %1602 = vadd.xlane.f32.xlu0 %v1574
    %v1603 = vpop.xlane.xlu0 %1602
    %1604 = vadd.xlane.f32.xlu0 %v1575
    %v1605 = vpop.xlane.xlu0 %1604
    %1606 = vadd.xlane.f32.xlu0 %v1576
    %v1607 = vpop.xlane.xlu0 %1606
    %1608 = vadd.xlane.f32.xlu0 %v1577
    %v1609 = vpop.xlane.xlu0 %1608
    %v1610 = vrcp.pop %v1579
    %v1611 = vrcp.pop %v1581
    %v1612 = vrcp.pop %v1583
    %v1613 = vrcp.pop %v1585
    %v1614 = vrcp.pop %v1587
    %v1615 = vrcp.pop %v1589
    %v1616 = vrcp.pop %v1591
    %v1617 = vrcp.pop %v1593
    %v1618 = vrcp.pop %v1595
    %v1619 = vrcp.pop %v1597
    %v1620 = vrcp.pop %v1599
    %v1621 = vrcp.pop %v1601
    %v1622 = vrcp.pop %v1603
    %v1623 = vrcp.pop %v1605
    %v1624 = vrcp.pop %v1607
    %v1625 = vrcp.pop %v1609
    %v1626 = vmul.f32 %v1579, %v1610
    %v1627 = vmul.f32 %v1581, %v1611
    %v1628 = vmul.f32 %v1583, %v1612
    %v1629 = vmul.f32 %v1585, %v1613
    %v1630 = vmul.f32 %v1587, %v1614
    %v1631 = vmul.f32 %v1589, %v1615
    %v1632 = vmul.f32 %v1591, %v1616
    %v1633 = vmul.f32 %v1593, %v1617
    %v1634 = vmul.f32 %v1595, %v1618
    %v1635 = vmul.f32 %v1597, %v1619
    %v1636 = vmul.f32 %v1599, %v1620
    %v1637 = vmul.f32 %v1601, %v1621
    %v1638 = vmul.f32 %v1603, %v1622
    %v1639 = vmul.f32 %v1605, %v1623
    %v1640 = vmul.f32 %v1607, %v1624
    %v1641 = vmul.f32 %v1609, %v1625
    %v1642 = vsub.f32 2.0, %v1626
    %v1643 = vsub.f32 2.0, %v1627
    %v1644 = vsub.f32 2.0, %v1628
    %v1645 = vsub.f32 2.0, %v1629
    %v1646 = vsub.f32 2.0, %v1630
    %v1647 = vsub.f32 2.0, %v1631
    %v1648 = vsub.f32 2.0, %v1632
    %v1649 = vsub.f32 2.0, %v1633
    %v1650 = vsub.f32 2.0, %v1634
    %v1651 = vsub.f32 2.0, %v1635
    %v1652 = vsub.f32 2.0, %v1636
    %v1653 = vsub.f32 2.0, %v1637
    %v1654 = vsub.f32 2.0, %v1638
    %v1655 = vsub.f32 2.0, %v1639
    %v1656 = vsub.f32 2.0, %v1640
    %v1657 = vsub.f32 2.0, %v1641
    %v1658 = vmul.f32 %v1610, %v1642
    %v1659 = vmul.f32 %v1611, %v1643
    %v1660 = vmul.f32 %v1612, %v1644
    %v1661 = vmul.f32 %v1613, %v1645
    %v1662 = vmul.f32 %v1614, %v1646
    %v1663 = vmul.f32 %v1615, %v1647
    %v1664 = vmul.f32 %v1616, %v1648
    %v1665 = vmul.f32 %v1617, %v1649
    %v1666 = vmul.f32 %v1618, %v1650
    %v1667 = vmul.f32 %v1619, %v1651
    %v1668 = vmul.f32 %v1620, %v1652
    %v1669 = vmul.f32 %v1621, %v1653
    %v1670 = vmul.f32 %v1622, %v1654
    %v1671 = vmul.f32 %v1623, %v1655
    %v1672 = vmul.f32 %v1624, %v1656
    %v1673 = vmul.f32 %v1625, %v1657
    %v1674 = vand.u32 2147483647, %v1658
    %v1675 = vand.u32 2147483647, %v1659
    %v1676 = vand.u32 2147483647, %v1660
    %v1677 = vand.u32 2147483647, %v1661
    %v1678 = vand.u32 2147483647, %v1662
    %v1679 = vand.u32 2147483647, %v1663
    %v1680 = vand.u32 2147483647, %v1664
    %v1681 = vand.u32 2147483647, %v1665
    %v1682 = vand.u32 2147483647, %v1666
    %v1683 = vand.u32 2147483647, %v1667
    %v1684 = vand.u32 2147483647, %v1668
    %v1685 = vand.u32 2147483647, %v1669
    %v1686 = vand.u32 2147483647, %v1670
    %v1687 = vand.u32 2147483647, %v1671
    %v1688 = vand.u32 2147483647, %v1672
    %v1689 = vand.u32 2147483647, %v1673
    %vm1690 = vcmp.lt.f32.partialorder %v1674, inf
    %vm1691 = vcmp.lt.f32.partialorder %v1675, inf
    %vm1692 = vcmp.lt.f32.partialorder %v1676, inf
    %vm1693 = vcmp.lt.f32.partialorder %v1677, inf
    %vm1694 = vcmp.lt.f32.partialorder %v1678, inf
    %vm1695 = vcmp.lt.f32.partialorder %v1679, inf
    %vm1696 = vcmp.lt.f32.partialorder %v1680, inf
    %vm1697 = vcmp.lt.f32.partialorder %v1681, inf
    %vm1698 = vcmp.lt.f32.partialorder %v1682, inf
    %vm1699 = vcmp.lt.f32.partialorder %v1683, inf
    %vm1700 = vcmp.lt.f32.partialorder %v1684, inf
    %vm1701 = vcmp.lt.f32.partialorder %v1685, inf
    %vm1702 = vcmp.lt.f32.partialorder %v1686, inf
    %vm1703 = vcmp.lt.f32.partialorder %v1687, inf
    %vm1704 = vcmp.lt.f32.partialorder %v1688, inf
    %vm1705 = vcmp.lt.f32.partialorder %v1689, inf
    %v1706 = vsel %vm1690, %v1658, 0.0
    %v1707 = vsel %vm1691, %v1659, 0.0
    %v1708 = vsel %vm1692, %v1660, 0.0
    %v1709 = vsel %vm1693, %v1661, 0.0
    %v1710 = vsel %vm1694, %v1662, 0.0
    %v1711 = vsel %vm1695, %v1663, 0.0
    %v1712 = vsel %vm1696, %v1664, 0.0
    %v1713 = vsel %vm1697, %v1665, 0.0
    %v1714 = vsel %vm1698, %v1666, 0.0
    %v1715 = vsel %vm1699, %v1667, 0.0
    %v1716 = vsel %vm1700, %v1668, 0.0
    %v1717 = vsel %vm1701, %v1669, 0.0
    %v1718 = vsel %vm1702, %v1670, 0.0
    %v1719 = vsel %vm1703, %v1671, 0.0
    %v1720 = vsel %vm1704, %v1672, 0.0
    %v1721 = vsel %vm1705, %v1673, 0.0
    %v1722 = vmul.f32 %v1562, %v1706
    %v1723 = vmul.f32 %v1563, %v1707
    %v1724 = vmul.f32 %v1564, %v1708
    %v1725 = vmul.f32 %v1565, %v1709
    %v1726 = vmul.f32 %v1566, %v1710
    %v1727 = vmul.f32 %v1567, %v1711
    %v1728 = vmul.f32 %v1568, %v1712
    %v1729 = vmul.f32 %v1569, %v1713
    %v1730 = vmul.f32 %v1570, %v1714
    %v1731 = vmul.f32 %v1571, %v1715
    %v1732 = vmul.f32 %v1572, %v1716
    %v1733 = vmul.f32 %v1573, %v1717
    %v1734 = vmul.f32 %v1574, %v1718
    %v1735 = vmul.f32 %v1575, %v1719
    %v1736 = vmul.f32 %v1576, %v1720
    %v1737 = vmul.f32 %v1577, %v1721
    %1738 = vmatprep.subr.mxu0 0.0
    %1739 = vmatpush1.msra.mxu0 %v1722
    %1740 = vmatprep.subr.mxu0 0.0
    %1741 = vmatpush1.msra.mxu0 %v1723
    %1742 = vmatprep.subr.mxu0 0.0
    %1743 = vmatpush1.msra.mxu0 %v1724
    %1744 = vmatprep.subr.mxu0 0.0
    %1745 = vmatpush1.msra.mxu0 %v1725
    %1746 = vmatprep.subr.mxu0 0.0
    %1747 = vmatpush1.msra.mxu0 %v1726
    %1748 = vmatprep.subr.mxu0 0.0
    %1749 = vmatpush1.msra.mxu0 %v1727
    %1750 = vmatprep.subr.mxu0 0.0
    %1751 = vmatpush1.msra.mxu0 %v1728
    %1752 = vmatprep.subr.mxu0 0.0
    %1753 = vmatpush1.msra.mxu0 %v1729
    %1754 = vmatprep.subr.mxu0 0.0
    %1755 = vmatpush1.msra.mxu0 %v1730
    %1756 = vmatprep.subr.mxu0 0.0
    %1757 = vmatpush1.msra.mxu0 %v1731
    %1758 = vmatprep.subr.mxu0 0.0
    %1759 = vmatpush1.msra.mxu0 %v1732
    %1760 = vmatprep.subr.mxu0 0.0
    %1761 = vmatpush1.msra.mxu0 %v1733
    %1762 = vmatprep.subr.mxu0 0.0
    %1763 = vmatpush1.msra.mxu0 %v1734
    %1764 = vmatprep.subr.mxu0 0.0
    %1765 = vmatpush1.msra.mxu0 %v1735
    %1766 = vmatprep.subr.mxu0 0.0
    %1767 = vmatpush1.msra.mxu0 %v1736
    %1768 = vmatprep.subr.mxu0 0.0
    %1769 = vmatpush1.msra.mxu0 %v1737
    %1770 = vmatprep.subr.mxu0 0.0
    %1771 = vmatpush1.msra.mxu0 0.0
    %1772 = vmatprep.subr.mxu0 0.0
    %1773 = vmatpush1.msra.mxu0 0.0
    %1774 = vmatprep.subr.mxu0 0.0
    %1775 = vmatpush1.msra.mxu0 0.0
    %1776 = vmatprep.subr.mxu0 0.0
    %1777 = vmatpush1.msra.mxu0 0.0
    %1778 = vmatprep.subr.mxu0 0.0
    %1779 = vmatpush1.msra.mxu0 0.0
    %1780 = vmatprep.subr.mxu0 0.0
    %1781 = vmatpush1.msra.mxu0 0.0
    %1782 = vmatprep.subr.mxu0 0.0
    %1783 = vmatpush1.msra.mxu0 0.0
    %1784 = vmatprep.subr.mxu0 0.0
    %1785 = vmatpush1.msra.mxu0 0.0
    %1786 = vmatprep.subr.mxu0 0.0
    %1787 = vmatpush1.msra.mxu0 0.0
    %1788 = vmatprep.subr.mxu0 0.0
    %1789 = vmatpush1.msra.mxu0 0.0
    %1790 = vmatprep.subr.mxu0 0.0
    %1791 = vmatpush1.msra.mxu0 0.0
    %1792 = vmatprep.subr.mxu0 0.0
    %1793 = vmatpush1.msra.mxu0 0.0
    %1794 = vmatprep.subr.mxu0 0.0
    %1795 = vmatpush1.msra.mxu0 0.0
    %1796 = vmatprep.subr.mxu0 0.0
    %1797 = vmatpush1.msra.mxu0 0.0
    %1798 = vmatprep.subr.mxu0 0.0
    %1799 = vmatpush1.msra.mxu0 0.0
    %1800 = vmatprep.subr.mxu0 0.0
    %1801 = vmatpush1.msra.mxu0 0.0
    %1802 = vmatprep.mubr.f32.mxu0 0.0
    %1803 = vmatmul.mubr.f32.gmra.mrb[0].mxu0 %v1722
    %v1804 = vpop.f32.mrb[0].mxu0
    %v1805 = vadd.f32 0.0, %v1804
    %v1806 = vpop.f32.mrb[0].mxu0
    %1807 = vmatprep.mubr.f32.mxu0 0.0
    %1808 = vmatmul.mubr.f32.gmra.mrb[0].mxu0 %v1723
    %v1809 = vpop.f32.mrb[0].mxu0
    %v1810 = vadd.f32 0.0, %v1809
    %v1811 = vpop.f32.mrb[0].mxu0
    %1812 = vmatprep.mubr.f32.mxu0 0.0
    %1813 = vmatmul.mubr.f32.gmra.mrb[0].mxu0 %v1724
    %v1814 = vpop.f32.mrb[0].mxu0
    %v1815 = vadd.f32 0.0, %v1814
    %v1816 = vpop.f32.mrb[0].mxu0
    %1817 = vmatprep.mubr.f32.mxu0 0.0
    %1818 = vmatmul.mubr.f32.gmra.mrb[0].mxu0 %v1725
    %v1819 = vpop.f32.mrb[0].mxu0
    %v1820 = vadd.f32 0.0, %v1819
    %v1821 = vpop.f32.mrb[0].mxu0
    %1822 = vmatprep.mubr.f32.mxu0 0.0
    %1823 = vmatmul.mubr.f32.gmra.mrb[0].mxu0 %v1726
    %v1824 = vpop.f32.mrb[0].mxu0
    %v1825 = vadd.f32 0.0, %v1824
    %v1826 = vpop.f32.mrb[0].mxu0
    %1827 = vmatprep.mubr.f32.mxu0 0.0
    %1828 = vmatmul.mubr.f32.gmra.mrb[0].mxu0 %v1727
    %v1829 = vpop.f32.mrb[0].mxu0
    %v1830 = vadd.f32 0.0, %v1829
    %v1831 = vpop.f32.mrb[0].mxu0
    %1832 = vmatprep.mubr.f32.mxu0 0.0
    %1833 = vmatmul.mubr.f32.gmra.mrb[0].mxu0 %v1728
    %v1834 = vpop.f32.mrb[0].mxu0
    %v1835 = vadd.f32 0.0, %v1834
    %v1836 = vpop.f32.mrb[0].mxu0
    %1837 = vmatprep.mubr.f32.mxu0 0.0
    %1838 = vmatmul.mubr.f32.gmra.mrb[0].mxu0 %v1729
    %v1839 = vpop.f32.mrb[0].mxu0
    %v1840 = vadd.f32 0.0, %v1839
    %v1841 = vpop.f32.mrb[0].mxu0
    %1842 = vmatprep.mubr.f32.mxu0 0.0
    %1843 = vmatmul.mubr.f32.gmra.mrb[0].mxu0 %v1730
    %v1844 = vpop.f32.mrb[0].mxu0
    %v1845 = vadd.f32 0.0, %v1844
    %v1846 = vpop.f32.mrb[0].mxu0
    %1847 = vmatprep.mubr.f32.mxu0 0.0
    %1848 = vmatmul.mubr.f32.gmra.mrb[0].mxu0 %v1731
    %v1849 = vpop.f32.mrb[0].mxu0
    %v1850 = vadd.f32 0.0, %v1849
    %v1851 = vpop.f32.mrb[0].mxu0
    %1852 = vmatprep.mubr.f32.mxu0 0.0
    %1853 = vmatmul.mubr.f32.gmra.mrb[0].mxu0 %v1732
    %v1854 = vpop.f32.mrb[0].mxu0
    %v1855 = vadd.f32 0.0, %v1854
    %v1856 = vpop.f32.mrb[0].mxu0
    %1857 = vmatprep.mubr.f32.mxu0 0.0
    %1858 = vmatmul.mubr.f32.gmra.mrb[0].mxu0 %v1733
    %v1859 = vpop.f32.mrb[0].mxu0
    %v1860 = vadd.f32 0.0, %v1859
    %v1861 = vpop.f32.mrb[0].mxu0
    %1862 = vmatprep.mubr.f32.mxu0 0.0
    %1863 = vmatmul.mubr.f32.gmra.mrb[0].mxu0 %v1734
    %v1864 = vpop.f32.mrb[0].mxu0
    %v1865 = vadd.f32 0.0, %v1864
    %v1866 = vpop.f32.mrb[0].mxu0
    %1867 = vmatprep.mubr.f32.mxu0 0.0
    %1868 = vmatmul.mubr.f32.gmra.mrb[0].mxu0 %v1735
    %v1869 = vpop.f32.mrb[0].mxu0
    %v1870 = vadd.f32 0.0, %v1869
    %v1871 = vpop.f32.mrb[0].mxu0
    %1872 = vmatprep.mubr.f32.mxu0 0.0
    %1873 = vmatmul.mubr.f32.gmra.mrb[0].mxu0 %v1736
    %v1874 = vpop.f32.mrb[0].mxu0
    %v1875 = vadd.f32 0.0, %v1874
    %v1876 = vpop.f32.mrb[0].mxu0
    %1877 = vmatprep.mubr.f32.mxu0 0.0
    %1878 = vmatmul.mubr.f32.gmra.mrb[0].mxu0 %v1737
    %v1879 = vpop.f32.mrb[0].mxu0
    %v1880 = vadd.f32 0.0, %v1879
    %v1881 = vpop.f32.mrb[0].mxu0
    %1882 = vdwg.mxu0
    %v1883 = vsel %vm48, %v1722, 0.0
    %v1884 = vsel %vm49, %v1723, 0.0
    %v1885 = vsel %vm50, %v1724, 0.0
    %v1886 = vsel %vm51, %v1725, 0.0
    %v1887 = vsel %vm52, %v1726, 0.0
    %v1888 = vsel %vm53, %v1727, 0.0
    %v1889 = vsel %vm54, %v1728, 0.0
    %v1890 = vsel %vm55, %v1729, 0.0
    %v1891 = vsel %vm56, %v1730, 0.0
    %v1892 = vsel %vm57, %v1731, 0.0
    %v1893 = vsel %vm58, %v1732, 0.0
    %v1894 = vsel %vm59, %v1733, 0.0
    %v1895 = vsel %vm60, %v1734, 0.0
    %v1896 = vsel %vm61, %v1735, 0.0
    %v1897 = vsel %vm62, %v1736, 0.0
    %v1898 = vsel %vm63, %v1737, 0.0
    %v1899 = vsel %vm48, %v1805, 0.0
    %v1900 = vsel %vm49, %v1810, 0.0
    %v1901 = vsel %vm50, %v1815, 0.0
    %v1902 = vsel %vm51, %v1820, 0.0
    %v1903 = vsel %vm52, %v1825, 0.0
    %v1904 = vsel %vm53, %v1830, 0.0
    %v1905 = vsel %vm54, %v1835, 0.0
    %v1906 = vsel %vm55, %v1840, 0.0
    %v1907 = vsel %vm56, %v1845, 0.0
    %v1908 = vsel %vm57, %v1850, 0.0
    %v1909 = vsel %vm58, %v1855, 0.0
    %v1910 = vsel %vm59, %v1860, 0.0
    %v1911 = vsel %vm60, %v1865, 0.0
    %v1912 = vsel %vm61, %v1870, 0.0
    %v1913 = vsel %vm62, %v1875, 0.0
    %v1914 = vsel %vm63, %v1880, 0.0
    %s1915 = scalar_lea.vmem [#allocation2], 384
    %1916 = vst [vmem:[%s1915] sm:$0xff] %v1883
    %1917 = vst [vmem:[%s1915 + $0x18] sm:$0xff] %v1884
    %1918 = vst [vmem:[%s1915 + $0x30] sm:$0xff] %v1885
    %1919 = vst [vmem:[%s1915 + $0x48] sm:$0xff] %v1886
    %1920 = vst [vmem:[%s1915 + $0x60] sm:$0xff] %v1887
    %1921 = vst [vmem:[%s1915 + $0x78] sm:$0xff] %v1888
    %1922 = vst [vmem:[%s1915 + $0x90] sm:$0xff] %v1889
    %1923 = vst [vmem:[%s1915 + $0xa8] sm:$0xff] %v1890
    %1924 = vst [vmem:[%s1915 + $0xc0] sm:$0xff] %v1891
    %1925 = vst [vmem:[%s1915 + $0xd8] sm:$0xff] %v1892
    %1926 = vst [vmem:[%s1915 + $0xf0] sm:$0xff] %v1893
    %1927 = vst [vmem:[%s1915 + $0x108] sm:$0xff] %v1894
    %1928 = vst [vmem:[%s1915 + $0x120] sm:$0xff] %v1895
    %1929 = vst [vmem:[%s1915 + $0x138] sm:$0xff] %v1896
    %1930 = vst [vmem:[%s1915 + $0x150] sm:$0xff] %v1897
    %1931 = vst [vmem:[%s1915 + $0x168] sm:$0xff] %v1898
    %s1932 = scalar_lea.vmem [#allocation4], 384
    %1933 = vst [vmem:[%s1932] sm:$0xff] %v1899
    %1934 = vst [vmem:[%s1932 + $0x18] sm:$0xff] %v1900
    %1935 = vst [vmem:[%s1932 + $0x30] sm:$0xff] %v1901
    %1936 = vst [vmem:[%s1932 + $0x48] sm:$0xff] %v1902
    %1937 = vst [vmem:[%s1932 + $0x60] sm:$0xff] %v1903
    %1938 = vst [vmem:[%s1932 + $0x78] sm:$0xff] %v1904
    %1939 = vst [vmem:[%s1932 + $0x90] sm:$0xff] %v1905
    %1940 = vst [vmem:[%s1932 + $0xa8] sm:$0xff] %v1906
    %1941 = vst [vmem:[%s1932 + $0xc0] sm:$0xff] %v1907
    %1942 = vst [vmem:[%s1932 + $0xd8] sm:$0xff] %v1908
    %1943 = vst [vmem:[%s1932 + $0xf0] sm:$0xff] %v1909
    %1944 = vst [vmem:[%s1932 + $0x108] sm:$0xff] %v1910
    %1945 = vst [vmem:[%s1932 + $0x120] sm:$0xff] %v1911
    %1946 = vst [vmem:[%s1932 + $0x138] sm:$0xff] %v1912
    %1947 = vst [vmem:[%s1932 + $0x150] sm:$0xff] %v1913
    %1948 = vst [vmem:[%s1932 + $0x168] sm:$0xff] %v1914
    %1949 = vst [vmem:[%s1915 + $0x8] sm:$0xff] %v1883
    %1950 = vst [vmem:[%s1915 + $0x20] sm:$0xff] %v1884
    %1951 = vst [vmem:[%s1915 + $0x38] sm:$0xff] %v1885
    %1952 = vst [vmem:[%s1915 + $0x50] sm:$0xff] %v1886
    %1953 = vst [vmem:[%s1915 + $0x68] sm:$0xff] %v1887
    %1954 = vst [vmem:[%s1915 + $0x80] sm:$0xff] %v1888
    %1955 = vst [vmem:[%s1915 + $0x98] sm:$0xff] %v1889
    %1956 = vst [vmem:[%s1915 + $0xb0] sm:$0xff] %v1890
    %1957 = vst [vmem:[%s1915 + $0xc8] sm:$0xff] %v1891
    %1958 = vst [vmem:[%s1915 + $0xe0] sm:$0xff] %v1892
    %1959 = vst [vmem:[%s1915 + $0xf8] sm:$0xff] %v1893
    %1960 = vst [vmem:[%s1915 + $0x110] sm:$0xff] %v1894
    %1961 = vst [vmem:[%s1915 + $0x128] sm:$0xff] %v1895
    %1962 = vst [vmem:[%s1915 + $0x140] sm:$0xff] %v1896
    %1963 = vst [vmem:[%s1915 + $0x158] sm:$0xff] %v1897
    %1964 = vst [vmem:[%s1915 + $0x170] sm:$0xff] %v1898
    %1965 = vst [vmem:[%s1932 + $0x8] sm:$0xff] %v1899
    %1966 = vst [vmem:[%s1932 + $0x20] sm:$0xff] %v1900
    %1967 = vst [vmem:[%s1932 + $0x38] sm:$0xff] %v1901
    %1968 = vst [vmem:[%s1932 + $0x50] sm:$0xff] %v1902
    %1969 = vst [vmem:[%s1932 + $0x68] sm:$0xff] %v1903
    %1970 = vst [vmem:[%s1932 + $0x80] sm:$0xff] %v1904
    %1971 = vst [vmem:[%s1932 + $0x98] sm:$0xff] %v1905
    %1972 = vst [vmem:[%s1932 + $0xb0] sm:$0xff] %v1906
    %1973 = vst [vmem:[%s1932 + $0xc8] sm:$0xff] %v1907
    %1974 = vst [vmem:[%s1932 + $0xe0] sm:$0xff] %v1908
    %1975 = vst [vmem:[%s1932 + $0xf8] sm:$0xff] %v1909
    %1976 = vst [vmem:[%s1932 + $0x110] sm:$0xff] %v1910
    %1977 = vst [vmem:[%s1932 + $0x128] sm:$0xff] %v1911
    %1978 = vst [vmem:[%s1932 + $0x140] sm:$0xff] %v1912
    %1979 = vst [vmem:[%s1932 + $0x158] sm:$0xff] %v1913
    %1980 = vst [vmem:[%s1932 + $0x170] sm:$0xff] %v1914
    %1981 = vst [vmem:[%s1915 + $0x10] sm:$0xff] %v1883
    %1982 = vst [vmem:[%s1915 + $0x28] sm:$0xff] %v1884
    %1983 = vst [vmem:[%s1915 + $0x40] sm:$0xff] %v1885
    %1984 = vst [vmem:[%s1915 + $0x58] sm:$0xff] %v1886
    %1985 = vst [vmem:[%s1915 + $0x70] sm:$0xff] %v1887
    %1986 = vst [vmem:[%s1915 + $0x88] sm:$0xff] %v1888
    %1987 = vst [vmem:[%s1915 + $0xa0] sm:$0xff] %v1889
    %1988 = vst [vmem:[%s1915 + $0xb8] sm:$0xff] %v1890
    %1989 = vst [vmem:[%s1915 + $0xd0] sm:$0xff] %v1891
    %1990 = vst [vmem:[%s1915 + $0xe8] sm:$0xff] %v1892
    %1991 = vst [vmem:[%s1915 + $0x100] sm:$0xff] %v1893
    %1992 = vst [vmem:[%s1915 + $0x118] sm:$0xff] %v1894
    %1993 = vst [vmem:[%s1915 + $0x130] sm:$0xff] %v1895
    %1994 = vst [vmem:[%s1915 + $0x148] sm:$0xff] %v1896
    %1995 = vst [vmem:[%s1915 + $0x160] sm:$0xff] %v1897
    %1996 = vst [vmem:[%s1915 + $0x178] sm:$0xff] %v1898
    %1997 = vst [vmem:[%s1932 + $0x10] sm:$0xff] %v1899
    %1998 = vst [vmem:[%s1932 + $0x28] sm:$0xff] %v1900
    %1999 = vst [vmem:[%s1932 + $0x40] sm:$0xff] %v1901
    %2000 = vst [vmem:[%s1932 + $0x58] sm:$0xff] %v1902
    %2001 = vst [vmem:[%s1932 + $0x70] sm:$0xff] %v1903
    %2002 = vst [vmem:[%s1932 + $0x88] sm:$0xff] %v1904
    %2003 = vst [vmem:[%s1932 + $0xa0] sm:$0xff] %v1905
    %2004 = vst [vmem:[%s1932 + $0xb8] sm:$0xff] %v1906
    %2005 = vst [vmem:[%s1932 + $0xd0] sm:$0xff] %v1907
    %2006 = vst [vmem:[%s1932 + $0xe8] sm:$0xff] %v1908
    %2007 = vst [vmem:[%s1932 + $0x100] sm:$0xff] %v1909
    %2008 = vst [vmem:[%s1932 + $0x118] sm:$0xff] %v1910
    %2009 = vst [vmem:[%s1932 + $0x130] sm:$0xff] %v1911
    %2010 = vst [vmem:[%s1932 + $0x148] sm:$0xff] %v1912
    %2011 = vst [vmem:[%s1932 + $0x160] sm:$0xff] %v1913
    %2012 = vst [vmem:[%s1932 + $0x178] sm:$0xff] %v1914
    %s2013 = scalar_lea.vmem %s2, 128
    %v2014 = vld [vmem:[%s2013] sm:$0xff]
    %v2015 = vld [vmem:[%s2013 + $0x8] sm:$0xff]
    %v2016 = vld [vmem:[%s2013 + $0x10] sm:$0xff]
    %v2017 = vld [vmem:[%s2013 + $0x18] sm:$0xff]
    %v2018 = vld [vmem:[%s2013 + $0x20] sm:$0xff]
    %v2019 = vld [vmem:[%s2013 + $0x28] sm:$0xff]
    %v2020 = vld [vmem:[%s2013 + $0x30] sm:$0xff]
    %v2021 = vld [vmem:[%s2013 + $0x38] sm:$0xff]
    %v2022 = vld [vmem:[%s2013 + $0x40] sm:$0xff]
    %v2023 = vld [vmem:[%s2013 + $0x48] sm:$0xff]
    %v2024 = vld [vmem:[%s2013 + $0x50] sm:$0xff]
    %v2025 = vld [vmem:[%s2013 + $0x58] sm:$0xff]
    %v2026 = vld [vmem:[%s2013 + $0x60] sm:$0xff]
    %v2027 = vld [vmem:[%s2013 + $0x68] sm:$0xff]
    %v2028 = vld [vmem:[%s2013 + $0x70] sm:$0xff]
    %v2029 = vld [vmem:[%s2013 + $0x78] sm:$0xff]
    %s2030 = scalar_lea.vmem %s0, 256
    %v2031 = vld [vmem:[%s2030] sm:$0xff]
    %v2032 = vld [vmem:[%s2030 + $0x8] sm:$0xff]
    %v2033 = vld [vmem:[%s2030 + $0x10] sm:$0xff]
    %v2034 = vld [vmem:[%s2030 + $0x18] sm:$0xff]
    %v2035 = vld [vmem:[%s2030 + $0x20] sm:$0xff]
    %v2036 = vld [vmem:[%s2030 + $0x28] sm:$0xff]
    %v2037 = vld [vmem:[%s2030 + $0x30] sm:$0xff]
    %v2038 = vld [vmem:[%s2030 + $0x38] sm:$0xff]
    %v2039 = vld [vmem:[%s2030 + $0x40] sm:$0xff]
    %v2040 = vld [vmem:[%s2030 + $0x48] sm:$0xff]
    %v2041 = vld [vmem:[%s2030 + $0x50] sm:$0xff]
    %v2042 = vld [vmem:[%s2030 + $0x58] sm:$0xff]
    %v2043 = vld [vmem:[%s2030 + $0x60] sm:$0xff]
    %v2044 = vld [vmem:[%s2030 + $0x68] sm:$0xff]
    %v2045 = vld [vmem:[%s2030 + $0x70] sm:$0xff]
    %v2046 = vld [vmem:[%s2030 + $0x78] sm:$0xff]
    %v2047 = vld [vmem:[%s2030 + $0x80] sm:$0xff]
    %v2048 = vld [vmem:[%s2030 + $0x88] sm:$0xff]
    %v2049 = vld [vmem:[%s2030 + $0x90] sm:$0xff]
    %v2050 = vld [vmem:[%s2030 + $0x98] sm:$0xff]
    %v2051 = vld [vmem:[%s2030 + $0xa0] sm:$0xff]
    %v2052 = vld [vmem:[%s2030 + $0xa8] sm:$0xff]
    %v2053 = vld [vmem:[%s2030 + $0xb0] sm:$0xff]
    %v2054 = vld [vmem:[%s2030 + $0xb8] sm:$0xff]
    %v2055 = vld [vmem:[%s2030 + $0xc0] sm:$0xff]
    %v2056 = vld [vmem:[%s2030 + $0xc8] sm:$0xff]
    %v2057 = vld [vmem:[%s2030 + $0xd0] sm:$0xff]
    %v2058 = vld [vmem:[%s2030 + $0xd8] sm:$0xff]
    %v2059 = vld [vmem:[%s2030 + $0xe0] sm:$0xff]
    %v2060 = vld [vmem:[%s2030 + $0xe8] sm:$0xff]
    %v2061 = vld [vmem:[%s2030 + $0xf0] sm:$0xff]
    %v2062 = vld [vmem:[%s2030 + $0xf8] sm:$0xff]
    %v2064 = vsel %vm112, %v2031, 0
    %v2067 = vsel %vm112, %v2032, 0
    %v2070 = vsel %vm112, %v2033, 0
    %v2073 = vsel %vm112, %v2034, 0
    %v2076 = vsel %vm112, %v2035, 0
    %v2079 = vsel %vm112, %v2036, 0
    %v2082 = vsel %vm112, %v2037, 0
    %v2085 = vsel %vm112, %v2038, 0
    %v2088 = vsel %vm112, %v2039, 0
    %v2091 = vsel %vm112, %v2040, 0
    %v2094 = vsel %vm112, %v2041, 0
    %v2097 = vsel %vm112, %v2042, 0
    %v2100 = vsel %vm112, %v2043, 0
    %v2103 = vsel %vm112, %v2044, 0
    %v2106 = vsel %vm112, %v2045, 0
    %v2109 = vsel %vm112, %v2046, 0
    %v2112 = vsel %vm112, %v2047, 0
    %v2115 = vsel %vm112, %v2048, 0
    %v2118 = vsel %vm112, %v2049, 0
    %v2121 = vsel %vm112, %v2050, 0
    %v2124 = vsel %vm112, %v2051, 0
    %v2127 = vsel %vm112, %v2052, 0
    %v2130 = vsel %vm112, %v2053, 0
    %v2133 = vsel %vm112, %v2054, 0
    %v2136 = vsel %vm112, %v2055, 0
    %v2139 = vsel %vm112, %v2056, 0
    %v2142 = vsel %vm112, %v2057, 0
    %v2145 = vsel %vm112, %v2058, 0
    %v2148 = vsel %vm112, %v2059, 0
    %v2151 = vsel %vm112, %v2060, 0
    %v2154 = vsel %vm112, %v2061, 0
    %v2157 = vsel %vm112, %v2062, 0
    %2159 = vmatprep.subr.mxu0 0.0
    %2160 = vmatpush1.msra.mxu0 %v21
    %2161 = vmatprep.subr.mxu0 0.0
    %2162 = vmatpush1.msra.mxu0 %v22
    %2163 = vmatprep.subr.mxu0 0.0
    %2164 = vmatpush1.msra.mxu0 %v23
    %2165 = vmatprep.subr.mxu0 0.0
    %2166 = vmatpush1.msra.mxu0 %v24
    %2167 = vmatprep.subr.mxu0 0.0
    %2168 = vmatpush1.msra.mxu0 %v25
    %2169 = vmatprep.subr.mxu0 0.0
    %2170 = vmatpush1.msra.mxu0 %v26
    %2171 = vmatprep.subr.mxu0 0.0
    %2172 = vmatpush1.msra.mxu0 %v27
    %2173 = vmatprep.subr.mxu0 0.0
    %2174 = vmatpush1.msra.mxu0 %v211
    %2175 = vmatprep.subr.mxu0 0.0
    %2176 = vmatpush1.msra.mxu0 0.0
    %2177 = vmatprep.subr.mxu0 0.0
    %2178 = vmatpush1.msra.mxu0 0.0
    %2179 = vmatprep.subr.mxu0 0.0
    %2180 = vmatpush1.msra.mxu0 0.0
    %2181 = vmatprep.subr.mxu0 0.0
    %2182 = vmatpush1.msra.mxu0 0.0
    %2183 = vmatprep.subr.mxu0 0.0
    %2184 = vmatpush1.msra.mxu0 0.0
    %2185 = vmatprep.subr.mxu0 0.0
    %2186 = vmatpush1.msra.mxu0 0.0
    %2187 = vmatprep.subr.mxu0 0.0
    %2188 = vmatpush1.msra.mxu0 0.0
    %2189 = vmatprep.subr.mxu0 0.0
    %2190 = vmatpush1.msra.mxu0 0.0
    %2191 = vmatprep.subr.mxu0 0.0
    %2192 = vmatpush1.msra.mxu0 0.0
    %2193 = vmatprep.subr.mxu0 0.0
    %2194 = vmatpush1.msra.mxu0 0.0
    %2195 = vmatprep.subr.mxu0 0.0
    %2196 = vmatpush1.msra.mxu0 0.0
    %2197 = vmatprep.subr.mxu0 0.0
    %2198 = vmatpush1.msra.mxu0 0.0
    %2199 = vmatprep.subr.mxu0 0.0
    %2200 = vmatpush1.msra.mxu0 0.0
    %2201 = vmatprep.subr.mxu0 0.0
    %2202 = vmatpush1.msra.mxu0 0.0
    %2203 = vmatprep.subr.mxu0 0.0
    %2204 = vmatpush1.msra.mxu0 0.0
    %2205 = vmatprep.subr.mxu0 0.0
    %2206 = vmatpush1.msra.mxu0 0.0
    %2207 = vmatprep.subr.mxu0 0.0
    %2208 = vmatpush1.msra.mxu0 0.0
    %2209 = vmatprep.subr.mxu0 0.0
    %2210 = vmatpush1.msra.mxu0 0.0
    %2211 = vmatprep.subr.mxu0 0.0
    %2212 = vmatpush1.msra.mxu0 0.0
    %2213 = vmatprep.subr.mxu0 0.0
    %2214 = vmatpush1.msra.mxu0 0.0
    %2215 = vmatprep.subr.mxu0 0.0
    %2216 = vmatpush1.msra.mxu0 0.0
    %2217 = vmatprep.subr.mxu0 0.0
    %2218 = vmatpush1.msra.mxu0 0.0
    %2219 = vmatprep.subr.mxu0 0.0
    %2220 = vmatpush1.msra.mxu0 0.0
    %2221 = vmatprep.subr.mxu0 0.0
    %2222 = vmatpush1.msra.mxu0 0.0
    %2223 = vmatprep.mubr.f32.mxu0 0.0
    %2224 = vmatmul.mubr.f32.gmra.mrb[0].mxu0 %v2064
    %v2225 = vpop.f32.mrb[0].mxu0
    %v2226 = vadd.f32 0.0, %v2225
    %v2227 = vpop.f32.mrb[0].mxu0
    %2228 = vmatprep.mubr.f32.mxu0 0.0
    %2229 = vmatmul.mubr.f32.gmra.mrb[0].mxu0 %v2067
    %v2230 = vpop.f32.mrb[0].mxu0
    %v2231 = vadd.f32 0.0, %v2230
    %v2232 = vpop.f32.mrb[0].mxu0
    %2233 = vmatprep.mubr.f32.mxu0 0.0
    %2234 = vmatmul.mubr.f32.gmra.mrb[0].mxu0 %v2070
    %v2235 = vpop.f32.mrb[0].mxu0
    %v2236 = vadd.f32 0.0, %v2235
    %v2237 = vpop.f32.mrb[0].mxu0
    %2238 = vmatprep.mubr.f32.mxu0 0.0
    %2239 = vmatmul.mubr.f32.gmra.mrb[0].mxu0 %v2073
    %v2240 = vpop.f32.mrb[0].mxu0
    %v2241 = vadd.f32 0.0, %v2240
    %v2242 = vpop.f32.mrb[0].mxu0
    %2243 = vmatprep.mubr.f32.mxu0 0.0
    %2244 = vmatmul.mubr.f32.gmra.mrb[0].mxu0 %v2076
    %v2245 = vpop.f32.mrb[0].mxu0
    %v2246 = vadd.f32 0.0, %v2245
    %v2247 = vpop.f32.mrb[0].mxu0
    %2248 = vmatprep.mubr.f32.mxu0 0.0
    %2249 = vmatmul.mubr.f32.gmra.mrb[0].mxu0 %v2079
    %v2250 = vpop.f32.mrb[0].mxu0
    %v2251 = vadd.f32 0.0, %v2250
    %v2252 = vpop.f32.mrb[0].mxu0
    %2253 = vmatprep.mubr.f32.mxu0 0.0
    %2254 = vmatmul.mubr.f32.gmra.mrb[0].mxu0 %v2082
    %v2255 = vpop.f32.mrb[0].mxu0
    %v2256 = vadd.f32 0.0, %v2255
    %v2257 = vpop.f32.mrb[0].mxu0
    %2258 = vmatprep.mubr.f32.mxu0 0.0
    %2259 = vmatmul.mubr.f32.gmra.mrb[0].mxu0 %v2085
    %v2260 = vpop.f32.mrb[0].mxu0
    %v2261 = vadd.f32 0.0, %v2260
    %v2262 = vpop.f32.mrb[0].mxu0
    %2263 = vmatprep.mubr.f32.mxu0 0.0
    %2264 = vmatmul.mubr.f32.gmra.mrb[0].mxu0 %v2088
    %v2265 = vpop.f32.mrb[0].mxu0
    %v2266 = vadd.f32 0.0, %v2265
    %v2267 = vpop.f32.mrb[0].mxu0
    %2268 = vmatprep.mubr.f32.mxu0 0.0
    %2269 = vmatmul.mubr.f32.gmra.mrb[0].mxu0 %v2091
    %v2270 = vpop.f32.mrb[0].mxu0
    %v2271 = vadd.f32 0.0, %v2270
    %v2272 = vpop.f32.mrb[0].mxu0
    %2273 = vmatprep.mubr.f32.mxu0 0.0
    %2274 = vmatmul.mubr.f32.gmra.mrb[0].mxu0 %v2094
    %v2275 = vpop.f32.mrb[0].mxu0
    %v2276 = vadd.f32 0.0, %v2275
    %v2277 = vpop.f32.mrb[0].mxu0
    %2278 = vmatprep.mubr.f32.mxu0 0.0
    %2279 = vmatmul.mubr.f32.gmra.mrb[0].mxu0 %v2097
    %v2280 = vpop.f32.mrb[0].mxu0
    %v2281 = vadd.f32 0.0, %v2280
    %v2282 = vpop.f32.mrb[0].mxu0
    %2283 = vmatprep.mubr.f32.mxu0 0.0
    %2284 = vmatmul.mubr.f32.gmra.mrb[0].mxu0 %v2100
    %v2285 = vpop.f32.mrb[0].mxu0
    %v2286 = vadd.f32 0.0, %v2285
    %v2287 = vpop.f32.mrb[0].mxu0
    %2288 = vmatprep.mubr.f32.mxu0 0.0
    %2289 = vmatmul.mubr.f32.gmra.mrb[0].mxu0 %v2103
    %v2290 = vpop.f32.mrb[0].mxu0
    %v2291 = vadd.f32 0.0, %v2290
    %v2292 = vpop.f32.mrb[0].mxu0
    %2293 = vmatprep.mubr.f32.mxu0 0.0
    %2294 = vmatmul.mubr.f32.gmra.mrb[0].mxu0 %v2106
    %v2295 = vpop.f32.mrb[0].mxu0
    %v2296 = vadd.f32 0.0, %v2295
    %v2297 = vpop.f32.mrb[0].mxu0
    %2298 = vmatprep.mubr.f32.mxu0 0.0
    %2299 = vmatmul.mubr.f32.gmra.mrb[0].mxu0 %v2109
    %v2300 = vpop.f32.mrb[0].mxu0
    %v2301 = vadd.f32 0.0, %v2300
    %v2302 = vpop.f32.mrb[0].mxu0
    %2303 = vmatprep.mubr.f32.mxu0 0.0
    %2304 = vmatmul.mubr.f32.gmra.mrb[0].mxu0 %v2112
    %v2305 = vpop.f32.mrb[0].mxu0
    %v2306 = vadd.f32 0.0, %v2305
    %v2307 = vpop.f32.mrb[0].mxu0
    %2308 = vmatprep.mubr.f32.mxu0 0.0
    %2309 = vmatmul.mubr.f32.gmra.mrb[0].mxu0 %v2115
    %v2310 = vpop.f32.mrb[0].mxu0
    %v2311 = vadd.f32 0.0, %v2310
    %v2312 = vpop.f32.mrb[0].mxu0
    %2313 = vmatprep.mubr.f32.mxu0 0.0
    %2314 = vmatmul.mubr.f32.gmra.mrb[0].mxu0 %v2118
    %v2315 = vpop.f32.mrb[0].mxu0
    %v2316 = vadd.f32 0.0, %v2315
    %v2317 = vpop.f32.mrb[0].mxu0
    %2318 = vmatprep.mubr.f32.mxu0 0.0
    %2319 = vmatmul.mubr.f32.gmra.mrb[0].mxu0 %v2121
    %v2320 = vpop.f32.mrb[0].mxu0
    %v2321 = vadd.f32 0.0, %v2320
    %v2322 = vpop.f32.mrb[0].mxu0
    %2323 = vmatprep.mubr.f32.mxu0 0.0
    %2324 = vmatmul.mubr.f32.gmra.mrb[0].mxu0 %v2124
    %v2325 = vpop.f32.mrb[0].mxu0
    %v2326 = vadd.f32 0.0, %v2325
    %v2327 = vpop.f32.mrb[0].mxu0
    %2328 = vmatprep.mubr.f32.mxu0 0.0
    %2329 = vmatmul.mubr.f32.gmra.mrb[0].mxu0 %v2127
    %v2330 = vpop.f32.mrb[0].mxu0
    %v2331 = vadd.f32 0.0, %v2330
    %v2332 = vpop.f32.mrb[0].mxu0
    %2333 = vmatprep.mubr.f32.mxu0 0.0
    %2334 = vmatmul.mubr.f32.gmra.mrb[0].mxu0 %v2130
    %v2335 = vpop.f32.mrb[0].mxu0
    %v2336 = vadd.f32 0.0, %v2335
    %v2337 = vpop.f32.mrb[0].mxu0
    %2338 = vmatprep.mubr.f32.mxu0 0.0
    %2339 = vmatmul.mubr.f32.gmra.mrb[0].mxu0 %v2133
    %v2340 = vpop.f32.mrb[0].mxu0
    %v2341 = vadd.f32 0.0, %v2340
    %v2342 = vpop.f32.mrb[0].mxu0
    %2343 = vmatprep.mubr.f32.mxu0 0.0
    %2344 = vmatmul.mubr.f32.gmra.mrb[0].mxu0 %v2136
    %v2345 = vpop.f32.mrb[0].mxu0
    %v2346 = vadd.f32 0.0, %v2345
    %v2347 = vpop.f32.mrb[0].mxu0
    %2348 = vmatprep.mubr.f32.mxu0 0.0
    %2349 = vmatmul.mubr.f32.gmra.mrb[0].mxu0 %v2139
    %v2350 = vpop.f32.mrb[0].mxu0
    %v2351 = vadd.f32 0.0, %v2350
    %v2352 = vpop.f32.mrb[0].mxu0
    %2353 = vmatprep.mubr.f32.mxu0 0.0
    %2354 = vmatmul.mubr.f32.gmra.mrb[0].mxu0 %v2142
    %v2355 = vpop.f32.mrb[0].mxu0
    %v2356 = vadd.f32 0.0, %v2355
    %v2357 = vpop.f32.mrb[0].mxu0
    %2358 = vmatprep.mubr.f32.mxu0 0.0
    %2359 = vmatmul.mubr.f32.gmra.mrb[0].mxu0 %v2145
    %v2360 = vpop.f32.mrb[0].mxu0
    %v2361 = vadd.f32 0.0, %v2360
    %v2362 = vpop.f32.mrb[0].mxu0
    %2363 = vmatprep.mubr.f32.mxu0 0.0
    %2364 = vmatmul.mubr.f32.gmra.mrb[0].mxu0 %v2148
    %v2365 = vpop.f32.mrb[0].mxu0
    %v2366 = vadd.f32 0.0, %v2365
    %v2367 = vpop.f32.mrb[0].mxu0
    %2368 = vmatprep.mubr.f32.mxu0 0.0
    %2369 = vmatmul.mubr.f32.gmra.mrb[0].mxu0 %v2151
    %v2370 = vpop.f32.mrb[0].mxu0
    %v2371 = vadd.f32 0.0, %v2370
    %v2372 = vpop.f32.mrb[0].mxu0
    %2373 = vmatprep.mubr.f32.mxu0 0.0
    %2374 = vmatmul.mubr.f32.gmra.mrb[0].mxu0 %v2154
    %v2375 = vpop.f32.mrb[0].mxu0
    %v2376 = vadd.f32 0.0, %v2375
    %v2377 = vpop.f32.mrb[0].mxu0
    %2378 = vmatprep.mubr.f32.mxu0 0.0
    %2379 = vmatmul.mubr.f32.gmra.mrb[0].mxu0 %v2157
    %v2380 = vpop.f32.mrb[0].mxu0
    %v2381 = vadd.f32 0.0, %v2380
    %v2382 = vpop.f32.mrb[0].mxu0
    %2383 = vdwg.mxu0
    %2400 = vrot.lane.b32.xlu0 %v2226, 96
    %v2401 = vpop.permute.xlu0 %2400
    %2402 = vrot.lane.b32.xlu0 %v2231, 96
    %v2403 = vpop.permute.xlu0 %2402
    %2404 = vrot.lane.b32.xlu0 %v2236, 96
    %v2405 = vpop.permute.xlu0 %2404
    %2406 = vrot.lane.b32.xlu0 %v2241, 96
    %v2407 = vpop.permute.xlu0 %2406
    %2408 = vrot.lane.b32.xlu0 %v2246, 96
    %v2409 = vpop.permute.xlu0 %2408
    %2410 = vrot.lane.b32.xlu0 %v2251, 96
    %v2411 = vpop.permute.xlu0 %2410
    %2412 = vrot.lane.b32.xlu0 %v2256, 96
    %v2413 = vpop.permute.xlu0 %2412
    %2414 = vrot.lane.b32.xlu0 %v2261, 96
    %v2415 = vpop.permute.xlu0 %2414
    %2416 = vrot.lane.b32.xlu0 %v2266, 96
    %v2417 = vpop.permute.xlu0 %2416
    %2418 = vrot.lane.b32.xlu0 %v2271, 96
    %v2419 = vpop.permute.xlu0 %2418
    %2420 = vrot.lane.b32.xlu0 %v2276, 96
    %v2421 = vpop.permute.xlu0 %2420
    %2422 = vrot.lane.b32.xlu0 %v2281, 96
    %v2423 = vpop.permute.xlu0 %2422
    %2424 = vrot.lane.b32.xlu0 %v2286, 96
    %v2425 = vpop.permute.xlu0 %2424
    %2426 = vrot.lane.b32.xlu0 %v2291, 96
    %v2427 = vpop.permute.xlu0 %2426
    %2428 = vrot.lane.b32.xlu0 %v2296, 96
    %v2429 = vpop.permute.xlu0 %2428
    %2430 = vrot.lane.b32.xlu0 %v2301, 96
    %v2431 = vpop.permute.xlu0 %2430
    %v2432 = vsel %vm486, %v2226, 0
    %v2434 = vsel %vm486, %v2231, 0
    %v2436 = vsel %vm486, %v2236, 0
    %v2438 = vsel %vm486, %v2241, 0
    %v2440 = vsel %vm486, %v2246, 0
    %v2442 = vsel %vm486, %v2251, 0
    %v2444 = vsel %vm486, %v2256, 0
    %v2446 = vsel %vm486, %v2261, 0
    %v2448 = vsel %vm486, %v2266, 0
    %v2450 = vsel %vm486, %v2271, 0
    %v2452 = vsel %vm486, %v2276, 0
    %v2454 = vsel %vm486, %v2281, 0
    %v2456 = vsel %vm486, %v2286, 0
    %v2458 = vsel %vm486, %v2291, 0
    %v2460 = vsel %vm486, %v2296, 0
    %v2462 = vsel %vm486, %v2301, 0
    %v2464 = vsel %vm486, %v2401, 0
    %v2466 = vsel %vm486, %v2403, 0
    %v2468 = vsel %vm486, %v2405, 0
    %v2470 = vsel %vm486, %v2407, 0
    %v2472 = vsel %vm486, %v2409, 0
    %v2474 = vsel %vm486, %v2411, 0
    %v2476 = vsel %vm486, %v2413, 0
    %v2478 = vsel %vm486, %v2415, 0
    %v2480 = vsel %vm486, %v2417, 0
    %v2482 = vsel %vm486, %v2419, 0
    %v2484 = vsel %vm486, %v2421, 0
    %v2486 = vsel %vm486, %v2423, 0
    %v2488 = vsel %vm486, %v2425, 0
    %v2490 = vsel %vm486, %v2427, 0
    %v2492 = vsel %vm486, %v2429, 0
    %v2494 = vsel %vm486, %v2431, 0
    %2496 = vmatprep.subr.mxu0 0.0
    %2497 = vmatpush1.xpose.msra.mxu0 %v2464
    %2498 = vmatprep.subr.mxu0 0.0
    %2499 = vmatpush1.xpose.msra.mxu0 %v2466
    %2500 = vmatprep.subr.mxu0 0.0
    %2501 = vmatpush1.xpose.msra.mxu0 %v2468
    %2502 = vmatprep.subr.mxu0 0.0
    %2503 = vmatpush1.xpose.msra.mxu0 %v2470
    %2504 = vmatprep.subr.mxu0 0.0
    %2505 = vmatpush1.xpose.msra.mxu0 %v2472
    %2506 = vmatprep.subr.mxu0 0.0
    %2507 = vmatpush1.xpose.msra.mxu0 %v2474
    %2508 = vmatprep.subr.mxu0 0.0
    %2509 = vmatpush1.xpose.msra.mxu0 %v2476
    %2510 = vmatprep.subr.mxu0 0.0
    %2511 = vmatpush1.xpose.msra.mxu0 %v2478
    %2512 = vmatprep.subr.mxu0 0.0
    %2513 = vmatpush1.xpose.msra.mxu0 %v2480
    %2514 = vmatprep.subr.mxu0 0.0
    %2515 = vmatpush1.xpose.msra.mxu0 %v2482
    %2516 = vmatprep.subr.mxu0 0.0
    %2517 = vmatpush1.xpose.msra.mxu0 %v2484
    %2518 = vmatprep.subr.mxu0 0.0
    %2519 = vmatpush1.xpose.msra.mxu0 %v2486
    %2520 = vmatprep.subr.mxu0 0.0
    %2521 = vmatpush1.xpose.msra.mxu0 %v2488
    %2522 = vmatprep.subr.mxu0 0.0
    %2523 = vmatpush1.xpose.msra.mxu0 %v2490
    %2524 = vmatprep.subr.mxu0 0.0
    %2525 = vmatpush1.xpose.msra.mxu0 %v2492
    %2526 = vmatprep.subr.mxu0 0.0
    %2527 = vmatpush1.xpose.msra.mxu0 %v2494
    %2528 = vmatprep.subr.mxu0 0.0
    %2529 = vmatpush1.xpose.msra.mxu0 0.0
    %2530 = vmatprep.subr.mxu0 0.0
    %2531 = vmatpush1.xpose.msra.mxu0 0.0
    %2532 = vmatprep.subr.mxu0 0.0
    %2533 = vmatpush1.xpose.msra.mxu0 0.0
    %2534 = vmatprep.subr.mxu0 0.0
    %2535 = vmatpush1.xpose.msra.mxu0 0.0
    %2536 = vmatprep.subr.mxu0 0.0
    %2537 = vmatpush1.xpose.msra.mxu0 0.0
    %2538 = vmatprep.subr.mxu0 0.0
    %2539 = vmatpush1.xpose.msra.mxu0 0.0
    %2540 = vmatprep.subr.mxu0 0.0
    %2541 = vmatpush1.xpose.msra.mxu0 0.0
    %2542 = vmatprep.subr.mxu0 0.0
    %2543 = vmatpush1.xpose.msra.mxu0 0.0
    %2544 = vmatprep.subr.mxu0 0.0
    %2545 = vmatpush1.xpose.msra.mxu0 0.0
    %2546 = vmatprep.subr.mxu0 0.0
    %2547 = vmatpush1.xpose.msra.mxu0 0.0
    %2548 = vmatprep.subr.mxu0 0.0
    %2549 = vmatpush1.xpose.msra.mxu0 0.0
    %2550 = vmatprep.subr.mxu0 0.0
    %2551 = vmatpush1.xpose.msra.mxu0 0.0
    %2552 = vmatprep.subr.mxu0 0.0
    %2553 = vmatpush1.xpose.msra.mxu0 0.0
    %2554 = vmatprep.subr.mxu0 0.0
    %2555 = vmatpush1.xpose.msra.mxu0 0.0
    %2556 = vmatprep.subr.mxu0 0.0
    %2557 = vmatpush1.xpose.msra.mxu0 0.0
    %2558 = vmatprep.subr.mxu0 0.0
    %2559 = vmatpush1.xpose.msra.mxu0 0.0
    %2560 = vmatprep.mubr.f32.mxu0 0.0
    %2561 = vmatmul.mubr.f32.gmra.mrb[0].mxu0 %v2432
    %v2562 = vpop.f32.mrb[0].mxu0
    %v2563 = vadd.f32 0.0, %v2562
    %v2564 = vpop.f32.mrb[0].mxu0
    %2565 = vmatprep.mubr.f32.mxu0 0.0
    %2566 = vmatmul.mubr.f32.gmra.mrb[0].mxu0 %v2434
    %v2567 = vpop.f32.mrb[0].mxu0
    %v2568 = vadd.f32 0.0, %v2567
    %v2569 = vpop.f32.mrb[0].mxu0
    %2570 = vmatprep.mubr.f32.mxu0 0.0
    %2571 = vmatmul.mubr.f32.gmra.mrb[0].mxu0 %v2436
    %v2572 = vpop.f32.mrb[0].mxu0
    %v2573 = vadd.f32 0.0, %v2572
    %v2574 = vpop.f32.mrb[0].mxu0
    %2575 = vmatprep.mubr.f32.mxu0 0.0
    %2576 = vmatmul.mubr.f32.gmra.mrb[0].mxu0 %v2438
    %v2577 = vpop.f32.mrb[0].mxu0
    %v2578 = vadd.f32 0.0, %v2577
    %v2579 = vpop.f32.mrb[0].mxu0
    %2580 = vmatprep.mubr.f32.mxu0 0.0
    %2581 = vmatmul.mubr.f32.gmra.mrb[0].mxu0 %v2440
    %v2582 = vpop.f32.mrb[0].mxu0
    %v2583 = vadd.f32 0.0, %v2582
    %v2584 = vpop.f32.mrb[0].mxu0
    %2585 = vmatprep.mubr.f32.mxu0 0.0
    %2586 = vmatmul.mubr.f32.gmra.mrb[0].mxu0 %v2442
    %v2587 = vpop.f32.mrb[0].mxu0
    %v2588 = vadd.f32 0.0, %v2587
    %v2589 = vpop.f32.mrb[0].mxu0
    %2590 = vmatprep.mubr.f32.mxu0 0.0
    %2591 = vmatmul.mubr.f32.gmra.mrb[0].mxu0 %v2444
    %v2592 = vpop.f32.mrb[0].mxu0
    %v2593 = vadd.f32 0.0, %v2592
    %v2594 = vpop.f32.mrb[0].mxu0
    %2595 = vmatprep.mubr.f32.mxu0 0.0
    %2596 = vmatmul.mubr.f32.gmra.mrb[0].mxu0 %v2446
    %v2597 = vpop.f32.mrb[0].mxu0
    %v2598 = vadd.f32 0.0, %v2597
    %v2599 = vpop.f32.mrb[0].mxu0
    %2600 = vmatprep.mubr.f32.mxu0 0.0
    %2601 = vmatmul.mubr.f32.gmra.mrb[0].mxu0 %v2448
    %v2602 = vpop.f32.mrb[0].mxu0
    %v2603 = vadd.f32 0.0, %v2602
    %v2604 = vpop.f32.mrb[0].mxu0
    %2605 = vmatprep.mubr.f32.mxu0 0.0
    %2606 = vmatmul.mubr.f32.gmra.mrb[0].mxu0 %v2450
    %v2607 = vpop.f32.mrb[0].mxu0
    %v2608 = vadd.f32 0.0, %v2607
    %v2609 = vpop.f32.mrb[0].mxu0
    %2610 = vmatprep.mubr.f32.mxu0 0.0
    %2611 = vmatmul.mubr.f32.gmra.mrb[0].mxu0 %v2452
    %v2612 = vpop.f32.mrb[0].mxu0
    %v2613 = vadd.f32 0.0, %v2612
    %v2614 = vpop.f32.mrb[0].mxu0
    %2615 = vmatprep.mubr.f32.mxu0 0.0
    %2616 = vmatmul.mubr.f32.gmra.mrb[0].mxu0 %v2454
    %v2617 = vpop.f32.mrb[0].mxu0
    %v2618 = vadd.f32 0.0, %v2617
    %v2619 = vpop.f32.mrb[0].mxu0
    %2620 = vmatprep.mubr.f32.mxu0 0.0
    %2621 = vmatmul.mubr.f32.gmra.mrb[0].mxu0 %v2456
    %v2622 = vpop.f32.mrb[0].mxu0
    %v2623 = vadd.f32 0.0, %v2622
    %v2624 = vpop.f32.mrb[0].mxu0
    %2625 = vmatprep.mubr.f32.mxu0 0.0
    %2626 = vmatmul.mubr.f32.gmra.mrb[0].mxu0 %v2458
    %v2627 = vpop.f32.mrb[0].mxu0
    %v2628 = vadd.f32 0.0, %v2627
    %v2629 = vpop.f32.mrb[0].mxu0
    %2630 = vmatprep.mubr.f32.mxu0 0.0
    %2631 = vmatmul.mubr.f32.gmra.mrb[0].mxu0 %v2460
    %v2632 = vpop.f32.mrb[0].mxu0
    %v2633 = vadd.f32 0.0, %v2632
    %v2634 = vpop.f32.mrb[0].mxu0
    %2635 = vmatprep.mubr.f32.mxu0 0.0
    %2636 = vmatmul.mubr.f32.gmra.mrb[0].mxu0 %v2462
    %v2637 = vpop.f32.mrb[0].mxu0
    %v2638 = vadd.f32 0.0, %v2637
    %v2639 = vpop.f32.mrb[0].mxu0
    %2640 = vdwg.mxu0
    %2641 = vmax.xlane.f32.xlu0 %v2563
    %v2642 = vpop.xlane.xlu0 %2641
    %2643 = vmax.xlane.f32.xlu0 %v2568
    %v2644 = vpop.xlane.xlu0 %2643
    %2645 = vmax.xlane.f32.xlu0 %v2573
    %v2646 = vpop.xlane.xlu0 %2645
    %2647 = vmax.xlane.f32.xlu0 %v2578
    %v2648 = vpop.xlane.xlu0 %2647
    %2649 = vmax.xlane.f32.xlu0 %v2583
    %v2650 = vpop.xlane.xlu0 %2649
    %2651 = vmax.xlane.f32.xlu0 %v2588
    %v2652 = vpop.xlane.xlu0 %2651
    %2653 = vmax.xlane.f32.xlu0 %v2593
    %v2654 = vpop.xlane.xlu0 %2653
    %2655 = vmax.xlane.f32.xlu0 %v2598
    %v2656 = vpop.xlane.xlu0 %2655
    %2657 = vmax.xlane.f32.xlu0 %v2603
    %v2658 = vpop.xlane.xlu0 %2657
    %2659 = vmax.xlane.f32.xlu0 %v2608
    %v2660 = vpop.xlane.xlu0 %2659
    %2661 = vmax.xlane.f32.xlu0 %v2613
    %v2662 = vpop.xlane.xlu0 %2661
    %2663 = vmax.xlane.f32.xlu0 %v2618
    %v2664 = vpop.xlane.xlu0 %2663
    %2665 = vmax.xlane.f32.xlu0 %v2623
    %v2666 = vpop.xlane.xlu0 %2665
    %2667 = vmax.xlane.f32.xlu0 %v2628
    %v2668 = vpop.xlane.xlu0 %2667
    %2669 = vmax.xlane.f32.xlu0 %v2633
    %v2670 = vpop.xlane.xlu0 %2669
    %2671 = vmax.xlane.f32.xlu0 %v2638
    %v2672 = vpop.xlane.xlu0 %2671
    %v2673 = vsub.f32 %v2563, %v2642
    %v2674 = vsub.f32 %v2568, %v2644
    %v2675 = vsub.f32 %v2573, %v2646
    %v2676 = vsub.f32 %v2578, %v2648
    %v2677 = vsub.f32 %v2583, %v2650
    %v2678 = vsub.f32 %v2588, %v2652
    %v2679 = vsub.f32 %v2593, %v2654
    %v2680 = vsub.f32 %v2598, %v2656
    %v2681 = vsub.f32 %v2603, %v2658
    %v2682 = vsub.f32 %v2608, %v2660
    %v2683 = vsub.f32 %v2613, %v2662
    %v2684 = vsub.f32 %v2618, %v2664
    %v2685 = vsub.f32 %v2623, %v2666
    %v2686 = vsub.f32 %v2628, %v2668
    %v2687 = vsub.f32 %v2633, %v2670
    %v2688 = vsub.f32 %v2638, %v2672
    %v2689 = vmul.f32 %v2673, 1.442695
    %v2690 = vpow.pop %v2689
    %v2691 = vmul.f32 %v2674, 1.442695
    %v2692 = vpow.pop %v2691
    %v2693 = vmul.f32 %v2675, 1.442695
    %v2694 = vpow.pop %v2693
    %v2695 = vmul.f32 %v2676, 1.442695
    %v2696 = vpow.pop %v2695
    %v2697 = vmul.f32 %v2677, 1.442695
    %v2698 = vpow.pop %v2697
    %v2699 = vmul.f32 %v2678, 1.442695
    %v2700 = vpow.pop %v2699
    %v2701 = vmul.f32 %v2679, 1.442695
    %v2702 = vpow.pop %v2701
    %v2703 = vmul.f32 %v2680, 1.442695
    %v2704 = vpow.pop %v2703
    %v2705 = vmul.f32 %v2681, 1.442695
    %v2706 = vpow.pop %v2705
    %v2707 = vmul.f32 %v2682, 1.442695
    %v2708 = vpow.pop %v2707
    %v2709 = vmul.f32 %v2683, 1.442695
    %v2710 = vpow.pop %v2709
    %v2711 = vmul.f32 %v2684, 1.442695
    %v2712 = vpow.pop %v2711
    %v2713 = vmul.f32 %v2685, 1.442695
    %v2714 = vpow.pop %v2713
    %v2715 = vmul.f32 %v2686, 1.442695
    %v2716 = vpow.pop %v2715
    %v2717 = vmul.f32 %v2687, 1.442695
    %v2718 = vpow.pop %v2717
    %v2719 = vmul.f32 %v2688, 1.442695
    %v2720 = vpow.pop %v2719
    %v2721 = vmul.f32 %v2014, %v2690
    %v2722 = vmul.f32 %v2015, %v2692
    %v2723 = vmul.f32 %v2016, %v2694
    %v2724 = vmul.f32 %v2017, %v2696
    %v2725 = vmul.f32 %v2018, %v2698
    %v2726 = vmul.f32 %v2019, %v2700
    %v2727 = vmul.f32 %v2020, %v2702
    %v2728 = vmul.f32 %v2021, %v2704
    %v2729 = vmul.f32 %v2022, %v2706
    %v2730 = vmul.f32 %v2023, %v2708
    %v2731 = vmul.f32 %v2024, %v2710
    %v2732 = vmul.f32 %v2025, %v2712
    %v2733 = vmul.f32 %v2026, %v2714
    %v2734 = vmul.f32 %v2027, %v2716
    %v2735 = vmul.f32 %v2028, %v2718
    %v2736 = vmul.f32 %v2029, %v2720
    %2737 = vadd.xlane.f32.xlu0 %v2721
    %v2738 = vpop.xlane.xlu0 %2737
    %2739 = vadd.xlane.f32.xlu0 %v2722
    %v2740 = vpop.xlane.xlu0 %2739
    %2741 = vadd.xlane.f32.xlu0 %v2723
    %v2742 = vpop.xlane.xlu0 %2741
    %2743 = vadd.xlane.f32.xlu0 %v2724
    %v2744 = vpop.xlane.xlu0 %2743
    %2745 = vadd.xlane.f32.xlu0 %v2725
    %v2746 = vpop.xlane.xlu0 %2745
    %2747 = vadd.xlane.f32.xlu0 %v2726
    %v2748 = vpop.xlane.xlu0 %2747
    %2749 = vadd.xlane.f32.xlu0 %v2727
    %v2750 = vpop.xlane.xlu0 %2749
    %2751 = vadd.xlane.f32.xlu0 %v2728
    %v2752 = vpop.xlane.xlu0 %2751
    %2753 = vadd.xlane.f32.xlu0 %v2729
    %v2754 = vpop.xlane.xlu0 %2753
    %2755 = vadd.xlane.f32.xlu0 %v2730
    %v2756 = vpop.xlane.xlu0 %2755
    %2757 = vadd.xlane.f32.xlu0 %v2731
    %v2758 = vpop.xlane.xlu0 %2757
    %2759 = vadd.xlane.f32.xlu0 %v2732
    %v2760 = vpop.xlane.xlu0 %2759
    %2761 = vadd.xlane.f32.xlu0 %v2733
    %v2762 = vpop.xlane.xlu0 %2761
    %2763 = vadd.xlane.f32.xlu0 %v2734
    %v2764 = vpop.xlane.xlu0 %2763
    %2765 = vadd.xlane.f32.xlu0 %v2735
    %v2766 = vpop.xlane.xlu0 %2765
    %2767 = vadd.xlane.f32.xlu0 %v2736
    %v2768 = vpop.xlane.xlu0 %2767
    %v2769 = vrcp.pop %v2738
    %v2770 = vrcp.pop %v2740
    %v2771 = vrcp.pop %v2742
    %v2772 = vrcp.pop %v2744
    %v2773 = vrcp.pop %v2746
    %v2774 = vrcp.pop %v2748
    %v2775 = vrcp.pop %v2750
    %v2776 = vrcp.pop %v2752
    %v2777 = vrcp.pop %v2754
    %v2778 = vrcp.pop %v2756
    %v2779 = vrcp.pop %v2758
    %v2780 = vrcp.pop %v2760
    %v2781 = vrcp.pop %v2762
    %v2782 = vrcp.pop %v2764
    %v2783 = vrcp.pop %v2766
    %v2784 = vrcp.pop %v2768
    %v2785 = vmul.f32 %v2738, %v2769
    %v2786 = vmul.f32 %v2740, %v2770
    %v2787 = vmul.f32 %v2742, %v2771
    %v2788 = vmul.f32 %v2744, %v2772
    %v2789 = vmul.f32 %v2746, %v2773
    %v2790 = vmul.f32 %v2748, %v2774
    %v2791 = vmul.f32 %v2750, %v2775
    %v2792 = vmul.f32 %v2752, %v2776
    %v2793 = vmul.f32 %v2754, %v2777
    %v2794 = vmul.f32 %v2756, %v2778
    %v2795 = vmul.f32 %v2758, %v2779
    %v2796 = vmul.f32 %v2760, %v2780
    %v2797 = vmul.f32 %v2762, %v2781
    %v2798 = vmul.f32 %v2764, %v2782
    %v2799 = vmul.f32 %v2766, %v2783
    %v2800 = vmul.f32 %v2768, %v2784
    %v2801 = vsub.f32 2.0, %v2785
    %v2802 = vsub.f32 2.0, %v2786
    %v2803 = vsub.f32 2.0, %v2787
    %v2804 = vsub.f32 2.0, %v2788
    %v2805 = vsub.f32 2.0, %v2789
    %v2806 = vsub.f32 2.0, %v2790
    %v2807 = vsub.f32 2.0, %v2791
    %v2808 = vsub.f32 2.0, %v2792
    %v2809 = vsub.f32 2.0, %v2793
    %v2810 = vsub.f32 2.0, %v2794
    %v2811 = vsub.f32 2.0, %v2795
    %v2812 = vsub.f32 2.0, %v2796
    %v2813 = vsub.f32 2.0, %v2797
    %v2814 = vsub.f32 2.0, %v2798
    %v2815 = vsub.f32 2.0, %v2799
    %v2816 = vsub.f32 2.0, %v2800
    %v2817 = vmul.f32 %v2769, %v2801
    %v2818 = vmul.f32 %v2770, %v2802
    %v2819 = vmul.f32 %v2771, %v2803
    %v2820 = vmul.f32 %v2772, %v2804
    %v2821 = vmul.f32 %v2773, %v2805
    %v2822 = vmul.f32 %v2774, %v2806
    %v2823 = vmul.f32 %v2775, %v2807
    %v2824 = vmul.f32 %v2776, %v2808
    %v2825 = vmul.f32 %v2777, %v2809
    %v2826 = vmul.f32 %v2778, %v2810
    %v2827 = vmul.f32 %v2779, %v2811
    %v2828 = vmul.f32 %v2780, %v2812
    %v2829 = vmul.f32 %v2781, %v2813
    %v2830 = vmul.f32 %v2782, %v2814
    %v2831 = vmul.f32 %v2783, %v2815
    %v2832 = vmul.f32 %v2784, %v2816
    %v2833 = vand.u32 2147483647, %v2817
    %v2834 = vand.u32 2147483647, %v2818
    %v2835 = vand.u32 2147483647, %v2819
    %v2836 = vand.u32 2147483647, %v2820
    %v2837 = vand.u32 2147483647, %v2821
    %v2838 = vand.u32 2147483647, %v2822
    %v2839 = vand.u32 2147483647, %v2823
    %v2840 = vand.u32 2147483647, %v2824
    %v2841 = vand.u32 2147483647, %v2825
    %v2842 = vand.u32 2147483647, %v2826
    %v2843 = vand.u32 2147483647, %v2827
    %v2844 = vand.u32 2147483647, %v2828
    %v2845 = vand.u32 2147483647, %v2829
    %v2846 = vand.u32 2147483647, %v2830
    %v2847 = vand.u32 2147483647, %v2831
    %v2848 = vand.u32 2147483647, %v2832
    %vm2849 = vcmp.lt.f32.partialorder %v2833, inf
    %vm2850 = vcmp.lt.f32.partialorder %v2834, inf
    %vm2851 = vcmp.lt.f32.partialorder %v2835, inf
    %vm2852 = vcmp.lt.f32.partialorder %v2836, inf
    %vm2853 = vcmp.lt.f32.partialorder %v2837, inf
    %vm2854 = vcmp.lt.f32.partialorder %v2838, inf
    %vm2855 = vcmp.lt.f32.partialorder %v2839, inf
    %vm2856 = vcmp.lt.f32.partialorder %v2840, inf
    %vm2857 = vcmp.lt.f32.partialorder %v2841, inf
    %vm2858 = vcmp.lt.f32.partialorder %v2842, inf
    %vm2859 = vcmp.lt.f32.partialorder %v2843, inf
    %vm2860 = vcmp.lt.f32.partialorder %v2844, inf
    %vm2861 = vcmp.lt.f32.partialorder %v2845, inf
    %vm2862 = vcmp.lt.f32.partialorder %v2846, inf
    %vm2863 = vcmp.lt.f32.partialorder %v2847, inf
    %vm2864 = vcmp.lt.f32.partialorder %v2848, inf
    %v2865 = vsel %vm2849, %v2817, 0.0
    %v2866 = vsel %vm2850, %v2818, 0.0
    %v2867 = vsel %vm2851, %v2819, 0.0
    %v2868 = vsel %vm2852, %v2820, 0.0
    %v2869 = vsel %vm2853, %v2821, 0.0
    %v2870 = vsel %vm2854, %v2822, 0.0
    %v2871 = vsel %vm2855, %v2823, 0.0
    %v2872 = vsel %vm2856, %v2824, 0.0
    %v2873 = vsel %vm2857, %v2825, 0.0
    %v2874 = vsel %vm2858, %v2826, 0.0
    %v2875 = vsel %vm2859, %v2827, 0.0
    %v2876 = vsel %vm2860, %v2828, 0.0
    %v2877 = vsel %vm2861, %v2829, 0.0
    %v2878 = vsel %vm2862, %v2830, 0.0
    %v2879 = vsel %vm2863, %v2831, 0.0
    %v2880 = vsel %vm2864, %v2832, 0.0
    %v2881 = vmul.f32 %v2721, %v2865
    %v2882 = vmul.f32 %v2722, %v2866
    %v2883 = vmul.f32 %v2723, %v2867
    %v2884 = vmul.f32 %v2724, %v2868
    %v2885 = vmul.f32 %v2725, %v2869
    %v2886 = vmul.f32 %v2726, %v2870
    %v2887 = vmul.f32 %v2727, %v2871
    %v2888 = vmul.f32 %v2728, %v2872
    %v2889 = vmul.f32 %v2729, %v2873
    %v2890 = vmul.f32 %v2730, %v2874
    %v2891 = vmul.f32 %v2731, %v2875
    %v2892 = vmul.f32 %v2732, %v2876
    %v2893 = vmul.f32 %v2733, %v2877
    %v2894 = vmul.f32 %v2734, %v2878
    %v2895 = vmul.f32 %v2735, %v2879
    %v2896 = vmul.f32 %v2736, %v2880
    %2897 = vmatprep.subr.mxu0 0.0
    %2898 = vmatpush1.msra.mxu0 %v2881
    %2899 = vmatprep.subr.mxu0 0.0
    %2900 = vmatpush1.msra.mxu0 %v2882
    %2901 = vmatprep.subr.mxu0 0.0
    %2902 = vmatpush1.msra.mxu0 %v2883
    %2903 = vmatprep.subr.mxu0 0.0
    %2904 = vmatpush1.msra.mxu0 %v2884
    %2905 = vmatprep.subr.mxu0 0.0
    %2906 = vmatpush1.msra.mxu0 %v2885
    %2907 = vmatprep.subr.mxu0 0.0
    %2908 = vmatpush1.msra.mxu0 %v2886
    %2909 = vmatprep.subr.mxu0 0.0
    %2910 = vmatpush1.msra.mxu0 %v2887
    %2911 = vmatprep.subr.mxu0 0.0
    %2912 = vmatpush1.msra.mxu0 %v2888
    %2913 = vmatprep.subr.mxu0 0.0
    %2914 = vmatpush1.msra.mxu0 %v2889
    %2915 = vmatprep.subr.mxu0 0.0
    %2916 = vmatpush1.msra.mxu0 %v2890
    %2917 = vmatprep.subr.mxu0 0.0
    %2918 = vmatpush1.msra.mxu0 %v2891
    %2919 = vmatprep.subr.mxu0 0.0
    %2920 = vmatpush1.msra.mxu0 %v2892
    %2921 = vmatprep.subr.mxu0 0.0
    %2922 = vmatpush1.msra.mxu0 %v2893
    %2923 = vmatprep.subr.mxu0 0.0
    %2924 = vmatpush1.msra.mxu0 %v2894
    %2925 = vmatprep.subr.mxu0 0.0
    %2926 = vmatpush1.msra.mxu0 %v2895
    %2927 = vmatprep.subr.mxu0 0.0
    %2928 = vmatpush1.msra.mxu0 %v2896
    %2929 = vmatprep.subr.mxu0 0.0
    %2930 = vmatpush1.msra.mxu0 0.0
    %2931 = vmatprep.subr.mxu0 0.0
    %2932 = vmatpush1.msra.mxu0 0.0
    %2933 = vmatprep.subr.mxu0 0.0
    %2934 = vmatpush1.msra.mxu0 0.0
    %2935 = vmatprep.subr.mxu0 0.0
    %2936 = vmatpush1.msra.mxu0 0.0
    %2937 = vmatprep.subr.mxu0 0.0
    %2938 = vmatpush1.msra.mxu0 0.0
    %2939 = vmatprep.subr.mxu0 0.0
    %2940 = vmatpush1.msra.mxu0 0.0
    %2941 = vmatprep.subr.mxu0 0.0
    %2942 = vmatpush1.msra.mxu0 0.0
    %2943 = vmatprep.subr.mxu0 0.0
    %2944 = vmatpush1.msra.mxu0 0.0
    %2945 = vmatprep.subr.mxu0 0.0
    %2946 = vmatpush1.msra.mxu0 0.0
    %2947 = vmatprep.subr.mxu0 0.0
    %2948 = vmatpush1.msra.mxu0 0.0
    %2949 = vmatprep.subr.mxu0 0.0
    %2950 = vmatpush1.msra.mxu0 0.0
    %2951 = vmatprep.subr.mxu0 0.0
    %2952 = vmatpush1.msra.mxu0 0.0
    %2953 = vmatprep.subr.mxu0 0.0
    %2954 = vmatpush1.msra.mxu0 0.0
    %2955 = vmatprep.subr.mxu0 0.0
    %2956 = vmatpush1.msra.mxu0 0.0
    %2957 = vmatprep.subr.mxu0 0.0
    %2958 = vmatpush1.msra.mxu0 0.0
    %2959 = vmatprep.subr.mxu0 0.0
    %2960 = vmatpush1.msra.mxu0 0.0
    %2961 = vmatprep.mubr.f32.mxu0 0.0
    %2962 = vmatmul.mubr.f32.gmra.mrb[0].mxu0 %v2881
    %v2963 = vpop.f32.mrb[0].mxu0
    %v2964 = vadd.f32 0.0, %v2963
    %v2965 = vpop.f32.mrb[0].mxu0
    %2966 = vmatprep.mubr.f32.mxu0 0.0
    %2967 = vmatmul.mubr.f32.gmra.mrb[0].mxu0 %v2882
    %v2968 = vpop.f32.mrb[0].mxu0
    %v2969 = vadd.f32 0.0, %v2968
    %v2970 = vpop.f32.mrb[0].mxu0
    %2971 = vmatprep.mubr.f32.mxu0 0.0
    %2972 = vmatmul.mubr.f32.gmra.mrb[0].mxu0 %v2883
    %v2973 = vpop.f32.mrb[0].mxu0
    %v2974 = vadd.f32 0.0, %v2973
    %v2975 = vpop.f32.mrb[0].mxu0
    %2976 = vmatprep.mubr.f32.mxu0 0.0
    %2977 = vmatmul.mubr.f32.gmra.mrb[0].mxu0 %v2884
    %v2978 = vpop.f32.mrb[0].mxu0
    %v2979 = vadd.f32 0.0, %v2978
    %v2980 = vpop.f32.mrb[0].mxu0
    %2981 = vmatprep.mubr.f32.mxu0 0.0
    %2982 = vmatmul.mubr.f32.gmra.mrb[0].mxu0 %v2885
    %v2983 = vpop.f32.mrb[0].mxu0
    %v2984 = vadd.f32 0.0, %v2983
    %v2985 = vpop.f32.mrb[0].mxu0
    %2986 = vmatprep.mubr.f32.mxu0 0.0
    %2987 = vmatmul.mubr.f32.gmra.mrb[0].mxu0 %v2886
    %v2988 = vpop.f32.mrb[0].mxu0
    %v2989 = vadd.f32 0.0, %v2988
    %v2990 = vpop.f32.mrb[0].mxu0
    %2991 = vmatprep.mubr.f32.mxu0 0.0
    %2992 = vmatmul.mubr.f32.gmra.mrb[0].mxu0 %v2887
    %v2993 = vpop.f32.mrb[0].mxu0
    %v2994 = vadd.f32 0.0, %v2993
    %v2995 = vpop.f32.mrb[0].mxu0
    %2996 = vmatprep.mubr.f32.mxu0 0.0
    %2997 = vmatmul.mubr.f32.gmra.mrb[0].mxu0 %v2888
    %v2998 = vpop.f32.mrb[0].mxu0
    %v2999 = vadd.f32 0.0, %v2998
    %v3000 = vpop.f32.mrb[0].mxu0
    %3001 = vmatprep.mubr.f32.mxu0 0.0
    %3002 = vmatmul.mubr.f32.gmra.mrb[0].mxu0 %v2889
    %v3003 = vpop.f32.mrb[0].mxu0
    %v3004 = vadd.f32 0.0, %v3003
    %v3005 = vpop.f32.mrb[0].mxu0
    %3006 = vmatprep.mubr.f32.mxu0 0.0
    %3007 = vmatmul.mubr.f32.gmra.mrb[0].mxu0 %v2890
    %v3008 = vpop.f32.mrb[0].mxu0
    %v3009 = vadd.f32 0.0, %v3008
    %v3010 = vpop.f32.mrb[0].mxu0
    %3011 = vmatprep.mubr.f32.mxu0 0.0
    %3012 = vmatmul.mubr.f32.gmra.mrb[0].mxu0 %v2891
    %v3013 = vpop.f32.mrb[0].mxu0
    %v3014 = vadd.f32 0.0, %v3013
    %v3015 = vpop.f32.mrb[0].mxu0
    %3016 = vmatprep.mubr.f32.mxu0 0.0
    %3017 = vmatmul.mubr.f32.gmra.mrb[0].mxu0 %v2892
    %v3018 = vpop.f32.mrb[0].mxu0
    %v3019 = vadd.f32 0.0, %v3018
    %v3020 = vpop.f32.mrb[0].mxu0
    %3021 = vmatprep.mubr.f32.mxu0 0.0
    %3022 = vmatmul.mubr.f32.gmra.mrb[0].mxu0 %v2893
    %v3023 = vpop.f32.mrb[0].mxu0
    %v3024 = vadd.f32 0.0, %v3023
    %v3025 = vpop.f32.mrb[0].mxu0
    %3026 = vmatprep.mubr.f32.mxu0 0.0
    %3027 = vmatmul.mubr.f32.gmra.mrb[0].mxu0 %v2894
    %v3028 = vpop.f32.mrb[0].mxu0
    %v3029 = vadd.f32 0.0, %v3028
    %v3030 = vpop.f32.mrb[0].mxu0
    %3031 = vmatprep.mubr.f32.mxu0 0.0
    %3032 = vmatmul.mubr.f32.gmra.mrb[0].mxu0 %v2895
    %v3033 = vpop.f32.mrb[0].mxu0
    %v3034 = vadd.f32 0.0, %v3033
    %v3035 = vpop.f32.mrb[0].mxu0
    %3036 = vmatprep.mubr.f32.mxu0 0.0
    %3037 = vmatmul.mubr.f32.gmra.mrb[0].mxu0 %v2896
    %v3038 = vpop.f32.mrb[0].mxu0
    %v3039 = vadd.f32 0.0, %v3038
    %v3040 = vpop.f32.mrb[0].mxu0
    %3041 = vdwg.mxu0
    %v3042 = vsel %vm48, %v2881, 0.0
    %v3043 = vsel %vm49, %v2882, 0.0
    %v3044 = vsel %vm50, %v2883, 0.0
    %v3045 = vsel %vm51, %v2884, 0.0
    %v3046 = vsel %vm52, %v2885, 0.0
    %v3047 = vsel %vm53, %v2886, 0.0
    %v3048 = vsel %vm54, %v2887, 0.0
    %v3049 = vsel %vm55, %v2888, 0.0
    %v3050 = vsel %vm56, %v2889, 0.0
    %v3051 = vsel %vm57, %v2890, 0.0
    %v3052 = vsel %vm58, %v2891, 0.0
    %v3053 = vsel %vm59, %v2892, 0.0
    %v3054 = vsel %vm60, %v2893, 0.0
    %v3055 = vsel %vm61, %v2894, 0.0
    %v3056 = vsel %vm62, %v2895, 0.0
    %v3057 = vsel %vm63, %v2896, 0.0
    %v3058 = vsel %vm48, %v2964, 0.0
    %v3059 = vsel %vm49, %v2969, 0.0
    %v3060 = vsel %vm50, %v2974, 0.0
    %v3061 = vsel %vm51, %v2979, 0.0
    %v3062 = vsel %vm52, %v2984, 0.0
    %v3063 = vsel %vm53, %v2989, 0.0
    %v3064 = vsel %vm54, %v2994, 0.0
    %v3065 = vsel %vm55, %v2999, 0.0
    %v3066 = vsel %vm56, %v3004, 0.0
    %v3067 = vsel %vm57, %v3009, 0.0
    %v3068 = vsel %vm58, %v3014, 0.0
    %v3069 = vsel %vm59, %v3019, 0.0
    %v3070 = vsel %vm60, %v3024, 0.0
    %v3071 = vsel %vm61, %v3029, 0.0
    %v3072 = vsel %vm62, %v3034, 0.0
    %v3073 = vsel %vm63, %v3039, 0.0
    %3074 = vst [vmem:[#allocation6] sm:$0xff] %v3042
    %3075 = vst [vmem:[#allocation6 + $0x18] sm:$0xff] %v3043
    %3076 = vst [vmem:[#allocation6 + $0x30] sm:$0xff] %v3044
    %3077 = vst [vmem:[#allocation6 + $0x48] sm:$0xff] %v3045
    %3078 = vst [vmem:[#allocation6 + $0x60] sm:$0xff] %v3046
    %3079 = vst [vmem:[#allocation6 + $0x78] sm:$0xff] %v3047
    %3080 = vst [vmem:[#allocation6 + $0x90] sm:$0xff] %v3048
    %3081 = vst [vmem:[#allocation6 + $0xa8] sm:$0xff] %v3049
    %3082 = vst [vmem:[#allocation6 + $0xc0] sm:$0xff] %v3050
    %3083 = vst [vmem:[#allocation6 + $0xd8] sm:$0xff] %v3051
    %3084 = vst [vmem:[#allocation6 + $0xf0] sm:$0xff] %v3052
    %3085 = vst [vmem:[#allocation6 + $0x108] sm:$0xff] %v3053
    %3086 = vst [vmem:[#allocation6 + $0x120] sm:$0xff] %v3054
    %3087 = vst [vmem:[#allocation6 + $0x138] sm:$0xff] %v3055
    %3088 = vst [vmem:[#allocation6 + $0x150] sm:$0xff] %v3056
    %3089 = vst [vmem:[#allocation6 + $0x168] sm:$0xff] %v3057
    %3090 = vst [vmem:[#allocation7] sm:$0xff] %v3058
    %3091 = vst [vmem:[#allocation7 + $0x18] sm:$0xff] %v3059
    %3092 = vst [vmem:[#allocation7 + $0x30] sm:$0xff] %v3060
    %3093 = vst [vmem:[#allocation7 + $0x48] sm:$0xff] %v3061
    %3094 = vst [vmem:[#allocation7 + $0x60] sm:$0xff] %v3062
    %3095 = vst [vmem:[#allocation7 + $0x78] sm:$0xff] %v3063
    %3096 = vst [vmem:[#allocation7 + $0x90] sm:$0xff] %v3064
    %3097 = vst [vmem:[#allocation7 + $0xa8] sm:$0xff] %v3065
    %3098 = vst [vmem:[#allocation7 + $0xc0] sm:$0xff] %v3066
    %3099 = vst [vmem:[#allocation7 + $0xd8] sm:$0xff] %v3067
    %3100 = vst [vmem:[#allocation7 + $0xf0] sm:$0xff] %v3068
    %3101 = vst [vmem:[#allocation7 + $0x108] sm:$0xff] %v3069
    %3102 = vst [vmem:[#allocation7 + $0x120] sm:$0xff] %v3070
    %3103 = vst [vmem:[#allocation7 + $0x138] sm:$0xff] %v3071
    %3104 = vst [vmem:[#allocation7 + $0x150] sm:$0xff] %v3072
    %3105 = vst [vmem:[#allocation7 + $0x168] sm:$0xff] %v3073
    %3106 = vst [vmem:[#allocation6 + $0x8] sm:$0xff] %v3042
    %3107 = vst [vmem:[#allocation6 + $0x20] sm:$0xff] %v3043
    %3108 = vst [vmem:[#allocation6 + $0x38] sm:$0xff] %v3044
    %3109 = vst [vmem:[#allocation6 + $0x50] sm:$0xff] %v3045
    %3110 = vst [vmem:[#allocation6 + $0x68] sm:$0xff] %v3046
    %3111 = vst [vmem:[#allocation6 + $0x80] sm:$0xff] %v3047
    %3112 = vst [vmem:[#allocation6 + $0x98] sm:$0xff] %v3048
    %3113 = vst [vmem:[#allocation6 + $0xb0] sm:$0xff] %v3049
    %3114 = vst [vmem:[#allocation6 + $0xc8] sm:$0xff] %v3050
    %3115 = vst [vmem:[#allocation6 + $0xe0] sm:$0xff] %v3051
    %3116 = vst [vmem:[#allocation6 + $0xf8] sm:$0xff] %v3052
    %3117 = vst [vmem:[#allocation6 + $0x110] sm:$0xff] %v3053
    %3118 = vst [vmem:[#allocation6 + $0x128] sm:$0xff] %v3054
    %3119 = vst [vmem:[#allocation6 + $0x140] sm:$0xff] %v3055
    %3120 = vst [vmem:[#allocation6 + $0x158] sm:$0xff] %v3056
    %3121 = vst [vmem:[#allocation6 + $0x170] sm:$0xff] %v3057
    %3122 = vst [vmem:[#allocation7 + $0x8] sm:$0xff] %v3058
    %3123 = vst [vmem:[#allocation7 + $0x20] sm:$0xff] %v3059
    %3124 = vst [vmem:[#allocation7 + $0x38] sm:$0xff] %v3060
    %3125 = vst [vmem:[#allocation7 + $0x50] sm:$0xff] %v3061
    %3126 = vst [vmem:[#allocation7 + $0x68] sm:$0xff] %v3062
    %3127 = vst [vmem:[#allocation7 + $0x80] sm:$0xff] %v3063
    %3128 = vst [vmem:[#allocation7 + $0x98] sm:$0xff] %v3064
    %3129 = vst [vmem:[#allocation7 + $0xb0] sm:$0xff] %v3065
    %3130 = vst [vmem:[#allocation7 + $0xc8] sm:$0xff] %v3066
    %3131 = vst [vmem:[#allocation7 + $0xe0] sm:$0xff] %v3067
    %3132 = vst [vmem:[#allocation7 + $0xf8] sm:$0xff] %v3068
    %3133 = vst [vmem:[#allocation7 + $0x110] sm:$0xff] %v3069
    %3134 = vst [vmem:[#allocation7 + $0x128] sm:$0xff] %v3070
    %3135 = vst [vmem:[#allocation7 + $0x140] sm:$0xff] %v3071
    %3136 = vst [vmem:[#allocation7 + $0x158] sm:$0xff] %v3072
    %3137 = vst [vmem:[#allocation7 + $0x170] sm:$0xff] %v3073
    %3138 = vst [vmem:[#allocation6 + $0x10] sm:$0xff] %v3042
    %3139 = vst [vmem:[#allocation6 + $0x28] sm:$0xff] %v3043
    %3140 = vst [vmem:[#allocation6 + $0x40] sm:$0xff] %v3044
    %3141 = vst [vmem:[#allocation6 + $0x58] sm:$0xff] %v3045
    %3142 = vst [vmem:[#allocation6 + $0x70] sm:$0xff] %v3046
    %3143 = vst [vmem:[#allocation6 + $0x88] sm:$0xff] %v3047
    %3144 = vst [vmem:[#allocation6 + $0xa0] sm:$0xff] %v3048
    %3145 = vst [vmem:[#allocation6 + $0xb8] sm:$0xff] %v3049
    %3146 = vst [vmem:[#allocation6 + $0xd0] sm:$0xff] %v3050
    %3147 = vst [vmem:[#allocation6 + $0xe8] sm:$0xff] %v3051
    %3148 = vst [vmem:[#allocation6 + $0x100] sm:$0xff] %v3052
    %3149 = vst [vmem:[#allocation6 + $0x118] sm:$0xff] %v3053
    %3150 = vst [vmem:[#allocation6 + $0x130] sm:$0xff] %v3054
    %3151 = vst [vmem:[#allocation6 + $0x148] sm:$0xff] %v3055
    %3152 = vst [vmem:[#allocation6 + $0x160] sm:$0xff] %v3056
    %3153 = vst [vmem:[#allocation6 + $0x178] sm:$0xff] %v3057
    %3154 = vst [vmem:[#allocation7 + $0x10] sm:$0xff] %v3058
    %3155 = vst [vmem:[#allocation7 + $0x28] sm:$0xff] %v3059
    %3156 = vst [vmem:[#allocation7 + $0x40] sm:$0xff] %v3060
    %3157 = vst [vmem:[#allocation7 + $0x58] sm:$0xff] %v3061
    %3158 = vst [vmem:[#allocation7 + $0x70] sm:$0xff] %v3062
    %3159 = vst [vmem:[#allocation7 + $0x88] sm:$0xff] %v3063
    %3160 = vst [vmem:[#allocation7 + $0xa0] sm:$0xff] %v3064
    %3161 = vst [vmem:[#allocation7 + $0xb8] sm:$0xff] %v3065
    %3162 = vst [vmem:[#allocation7 + $0xd0] sm:$0xff] %v3066
    %3163 = vst [vmem:[#allocation7 + $0xe8] sm:$0xff] %v3067
    %3164 = vst [vmem:[#allocation7 + $0x100] sm:$0xff] %v3068
    %3165 = vst [vmem:[#allocation7 + $0x118] sm:$0xff] %v3069
    %3166 = vst [vmem:[#allocation7 + $0x130] sm:$0xff] %v3070
    %3167 = vst [vmem:[#allocation7 + $0x148] sm:$0xff] %v3071
    %3168 = vst [vmem:[#allocation7 + $0x160] sm:$0xff] %v3072
    %3169 = vst [vmem:[#allocation7 + $0x178] sm:$0xff] %v3073
    %3186 = vrot.lane.b32.xlu0 %v2306, 96
    %v3187 = vpop.permute.xlu0 %3186
    %3188 = vrot.lane.b32.xlu0 %v2311, 96
    %v3189 = vpop.permute.xlu0 %3188
    %3190 = vrot.lane.b32.xlu0 %v2316, 96
    %v3191 = vpop.permute.xlu0 %3190
    %3192 = vrot.lane.b32.xlu0 %v2321, 96
    %v3193 = vpop.permute.xlu0 %3192
    %3194 = vrot.lane.b32.xlu0 %v2326, 96
    %v3195 = vpop.permute.xlu0 %3194
    %3196 = vrot.lane.b32.xlu0 %v2331, 96
    %v3197 = vpop.permute.xlu0 %3196
    %3198 = vrot.lane.b32.xlu0 %v2336, 96
    %v3199 = vpop.permute.xlu0 %3198
    %3200 = vrot.lane.b32.xlu0 %v2341, 96
    %v3201 = vpop.permute.xlu0 %3200
    %3202 = vrot.lane.b32.xlu0 %v2346, 96
    %v3203 = vpop.permute.xlu0 %3202
    %3204 = vrot.lane.b32.xlu0 %v2351, 96
    %v3205 = vpop.permute.xlu0 %3204
    %3206 = vrot.lane.b32.xlu0 %v2356, 96
    %v3207 = vpop.permute.xlu0 %3206
    %3208 = vrot.lane.b32.xlu0 %v2361, 96
    %v3209 = vpop.permute.xlu0 %3208
    %3210 = vrot.lane.b32.xlu0 %v2366, 96
    %v3211 = vpop.permute.xlu0 %3210
    %3212 = vrot.lane.b32.xlu0 %v2371, 96
    %v3213 = vpop.permute.xlu0 %3212
    %3214 = vrot.lane.b32.xlu0 %v2376, 96
    %v3215 = vpop.permute.xlu0 %3214
    %3216 = vrot.lane.b32.xlu0 %v2381, 96
    %v3217 = vpop.permute.xlu0 %3216
    %v3218 = vsel %vm486, %v2306, 0
    %v3220 = vsel %vm486, %v2311, 0
    %v3222 = vsel %vm486, %v2316, 0
    %v3224 = vsel %vm486, %v2321, 0
    %v3226 = vsel %vm486, %v2326, 0
    %v3228 = vsel %vm486, %v2331, 0
    %v3230 = vsel %vm486, %v2336, 0
    %v3232 = vsel %vm486, %v2341, 0
    %v3234 = vsel %vm486, %v2346, 0
    %v3236 = vsel %vm486, %v2351, 0
    %v3238 = vsel %vm486, %v2356, 0
    %v3240 = vsel %vm486, %v2361, 0
    %v3242 = vsel %vm486, %v2366, 0
    %v3244 = vsel %vm486, %v2371, 0
    %v3246 = vsel %vm486, %v2376, 0
    %v3248 = vsel %vm486, %v2381, 0
    %v3250 = vsel %vm486, %v3187, 0
    %v3252 = vsel %vm486, %v3189, 0
    %v3254 = vsel %vm486, %v3191, 0
    %v3256 = vsel %vm486, %v3193, 0
    %v3258 = vsel %vm486, %v3195, 0
    %v3260 = vsel %vm486, %v3197, 0
    %v3262 = vsel %vm486, %v3199, 0
    %v3264 = vsel %vm486, %v3201, 0
    %v3266 = vsel %vm486, %v3203, 0
    %v3268 = vsel %vm486, %v3205, 0
    %v3270 = vsel %vm486, %v3207, 0
    %v3272 = vsel %vm486, %v3209, 0
    %v3274 = vsel %vm486, %v3211, 0
    %v3276 = vsel %vm486, %v3213, 0
    %v3278 = vsel %vm486, %v3215, 0
    %v3280 = vsel %vm486, %v3217, 0
    %3282 = vmatprep.subr.mxu0 0.0
    %3283 = vmatpush1.xpose.msra.mxu0 %v3250
    %3284 = vmatprep.subr.mxu0 0.0
    %3285 = vmatpush1.xpose.msra.mxu0 %v3252
    %3286 = vmatprep.subr.mxu0 0.0
    %3287 = vmatpush1.xpose.msra.mxu0 %v3254
    %3288 = vmatprep.subr.mxu0 0.0
    %3289 = vmatpush1.xpose.msra.mxu0 %v3256
    %3290 = vmatprep.subr.mxu0 0.0
    %3291 = vmatpush1.xpose.msra.mxu0 %v3258
    %3292 = vmatprep.subr.mxu0 0.0
    %3293 = vmatpush1.xpose.msra.mxu0 %v3260
    %3294 = vmatprep.subr.mxu0 0.0
    %3295 = vmatpush1.xpose.msra.mxu0 %v3262
    %3296 = vmatprep.subr.mxu0 0.0
    %3297 = vmatpush1.xpose.msra.mxu0 %v3264
    %3298 = vmatprep.subr.mxu0 0.0
    %3299 = vmatpush1.xpose.msra.mxu0 %v3266
    %3300 = vmatprep.subr.mxu0 0.0
    %3301 = vmatpush1.xpose.msra.mxu0 %v3268
    %3302 = vmatprep.subr.mxu0 0.0
    %3303 = vmatpush1.xpose.msra.mxu0 %v3270
    %3304 = vmatprep.subr.mxu0 0.0
    %3305 = vmatpush1.xpose.msra.mxu0 %v3272
    %3306 = vmatprep.subr.mxu0 0.0
    %3307 = vmatpush1.xpose.msra.mxu0 %v3274
    %3308 = vmatprep.subr.mxu0 0.0
    %3309 = vmatpush1.xpose.msra.mxu0 %v3276
    %3310 = vmatprep.subr.mxu0 0.0
    %3311 = vmatpush1.xpose.msra.mxu0 %v3278
    %3312 = vmatprep.subr.mxu0 0.0
    %3313 = vmatpush1.xpose.msra.mxu0 %v3280
    %3314 = vmatprep.subr.mxu0 0.0
    %3315 = vmatpush1.xpose.msra.mxu0 0.0
    %3316 = vmatprep.subr.mxu0 0.0
    %3317 = vmatpush1.xpose.msra.mxu0 0.0
    %3318 = vmatprep.subr.mxu0 0.0
    %3319 = vmatpush1.xpose.msra.mxu0 0.0
    %3320 = vmatprep.subr.mxu0 0.0
    %3321 = vmatpush1.xpose.msra.mxu0 0.0
    %3322 = vmatprep.subr.mxu0 0.0
    %3323 = vmatpush1.xpose.msra.mxu0 0.0
    %3324 = vmatprep.subr.mxu0 0.0
    %3325 = vmatpush1.xpose.msra.mxu0 0.0
    %3326 = vmatprep.subr.mxu0 0.0
    %3327 = vmatpush1.xpose.msra.mxu0 0.0
    %3328 = vmatprep.subr.mxu0 0.0
    %3329 = vmatpush1.xpose.msra.mxu0 0.0
    %3330 = vmatprep.subr.mxu0 0.0
    %3331 = vmatpush1.xpose.msra.mxu0 0.0
    %3332 = vmatprep.subr.mxu0 0.0
    %3333 = vmatpush1.xpose.msra.mxu0 0.0
    %3334 = vmatprep.subr.mxu0 0.0
    %3335 = vmatpush1.xpose.msra.mxu0 0.0
    %3336 = vmatprep.subr.mxu0 0.0
    %3337 = vmatpush1.xpose.msra.mxu0 0.0
    %3338 = vmatprep.subr.mxu0 0.0
    %3339 = vmatpush1.xpose.msra.mxu0 0.0
    %3340 = vmatprep.subr.mxu0 0.0
    %3341 = vmatpush1.xpose.msra.mxu0 0.0
    %3342 = vmatprep.subr.mxu0 0.0
    %3343 = vmatpush1.xpose.msra.mxu0 0.0
    %3344 = vmatprep.subr.mxu0 0.0
    %3345 = vmatpush1.xpose.msra.mxu0 0.0
    %3346 = vmatprep.mubr.f32.mxu0 0.0
    %3347 = vmatmul.mubr.f32.gmra.mrb[0].mxu0 %v3218
    %v3348 = vpop.f32.mrb[0].mxu0
    %v3349 = vadd.f32 0.0, %v3348
    %v3350 = vpop.f32.mrb[0].mxu0
    %3351 = vmatprep.mubr.f32.mxu0 0.0
    %3352 = vmatmul.mubr.f32.gmra.mrb[0].mxu0 %v3220
    %v3353 = vpop.f32.mrb[0].mxu0
    %v3354 = vadd.f32 0.0, %v3353
    %v3355 = vpop.f32.mrb[0].mxu0
    %3356 = vmatprep.mubr.f32.mxu0 0.0
    %3357 = vmatmul.mubr.f32.gmra.mrb[0].mxu0 %v3222
    %v3358 = vpop.f32.mrb[0].mxu0
    %v3359 = vadd.f32 0.0, %v3358
    %v3360 = vpop.f32.mrb[0].mxu0
    %3361 = vmatprep.mubr.f32.mxu0 0.0
    %3362 = vmatmul.mubr.f32.gmra.mrb[0].mxu0 %v3224
    %v3363 = vpop.f32.mrb[0].mxu0
    %v3364 = vadd.f32 0.0, %v3363
    %v3365 = vpop.f32.mrb[0].mxu0
    %3366 = vmatprep.mubr.f32.mxu0 0.0
    %3367 = vmatmul.mubr.f32.gmra.mrb[0].mxu0 %v3226
    %v3368 = vpop.f32.mrb[0].mxu0
    %v3369 = vadd.f32 0.0, %v3368
    %v3370 = vpop.f32.mrb[0].mxu0
    %3371 = vmatprep.mubr.f32.mxu0 0.0
    %3372 = vmatmul.mubr.f32.gmra.mrb[0].mxu0 %v3228
    %v3373 = vpop.f32.mrb[0].mxu0
    %v3374 = vadd.f32 0.0, %v3373
    %v3375 = vpop.f32.mrb[0].mxu0
    %3376 = vmatprep.mubr.f32.mxu0 0.0
    %3377 = vmatmul.mubr.f32.gmra.mrb[0].mxu0 %v3230
    %v3378 = vpop.f32.mrb[0].mxu0
    %v3379 = vadd.f32 0.0, %v3378
    %v3380 = vpop.f32.mrb[0].mxu0
    %3381 = vmatprep.mubr.f32.mxu0 0.0
    %3382 = vmatmul.mubr.f32.gmra.mrb[0].mxu0 %v3232
    %v3383 = vpop.f32.mrb[0].mxu0
    %v3384 = vadd.f32 0.0, %v3383
    %v3385 = vpop.f32.mrb[0].mxu0
    %3386 = vmatprep.mubr.f32.mxu0 0.0
    %3387 = vmatmul.mubr.f32.gmra.mrb[0].mxu0 %v3234
    %v3388 = vpop.f32.mrb[0].mxu0
    %v3389 = vadd.f32 0.0, %v3388
    %v3390 = vpop.f32.mrb[0].mxu0
    %3391 = vmatprep.mubr.f32.mxu0 0.0
    %3392 = vmatmul.mubr.f32.gmra.mrb[0].mxu0 %v3236
    %v3393 = vpop.f32.mrb[0].mxu0
    %v3394 = vadd.f32 0.0, %v3393
    %v3395 = vpop.f32.mrb[0].mxu0
    %3396 = vmatprep.mubr.f32.mxu0 0.0
    %3397 = vmatmul.mubr.f32.gmra.mrb[0].mxu0 %v3238
    %v3398 = vpop.f32.mrb[0].mxu0
    %v3399 = vadd.f32 0.0, %v3398
    %v3400 = vpop.f32.mrb[0].mxu0
    %3401 = vmatprep.mubr.f32.mxu0 0.0
    %3402 = vmatmul.mubr.f32.gmra.mrb[0].mxu0 %v3240
    %v3403 = vpop.f32.mrb[0].mxu0
    %v3404 = vadd.f32 0.0, %v3403
    %v3405 = vpop.f32.mrb[0].mxu0
    %3406 = vmatprep.mubr.f32.mxu0 0.0
    %3407 = vmatmul.mubr.f32.gmra.mrb[0].mxu0 %v3242
    %v3408 = vpop.f32.mrb[0].mxu0
    %v3409 = vadd.f32 0.0, %v3408
    %v3410 = vpop.f32.mrb[0].mxu0
    %3411 = vmatprep.mubr.f32.mxu0 0.0
    %3412 = vmatmul.mubr.f32.gmra.mrb[0].mxu0 %v3244
    %v3413 = vpop.f32.mrb[0].mxu0
    %v3414 = vadd.f32 0.0, %v3413
    %v3415 = vpop.f32.mrb[0].mxu0
    %3416 = vmatprep.mubr.f32.mxu0 0.0
    %3417 = vmatmul.mubr.f32.gmra.mrb[0].mxu0 %v3246
    %v3418 = vpop.f32.mrb[0].mxu0
    %v3419 = vadd.f32 0.0, %v3418
    %v3420 = vpop.f32.mrb[0].mxu0
    %3421 = vmatprep.mubr.f32.mxu0 0.0
    %3422 = vmatmul.mubr.f32.gmra.mrb[0].mxu0 %v3248
    %v3423 = vpop.f32.mrb[0].mxu0
    %v3424 = vadd.f32 0.0, %v3423
    %v3425 = vpop.f32.mrb[0].mxu0
    %3426 = vdwg.mxu0
    %3427 = vmax.xlane.f32.xlu0 %v3349
    %v3428 = vpop.xlane.xlu0 %3427
    %3429 = vmax.xlane.f32.xlu0 %v3354
    %v3430 = vpop.xlane.xlu0 %3429
    %3431 = vmax.xlane.f32.xlu0 %v3359
    %v3432 = vpop.xlane.xlu0 %3431
    %3433 = vmax.xlane.f32.xlu0 %v3364
    %v3434 = vpop.xlane.xlu0 %3433
    %3435 = vmax.xlane.f32.xlu0 %v3369
    %v3436 = vpop.xlane.xlu0 %3435
    %3437 = vmax.xlane.f32.xlu0 %v3374
    %v3438 = vpop.xlane.xlu0 %3437
    %3439 = vmax.xlane.f32.xlu0 %v3379
    %v3440 = vpop.xlane.xlu0 %3439
    %3441 = vmax.xlane.f32.xlu0 %v3384
    %v3442 = vpop.xlane.xlu0 %3441
    %3443 = vmax.xlane.f32.xlu0 %v3389
    %v3444 = vpop.xlane.xlu0 %3443
    %3445 = vmax.xlane.f32.xlu0 %v3394
    %v3446 = vpop.xlane.xlu0 %3445
    %3447 = vmax.xlane.f32.xlu0 %v3399
    %v3448 = vpop.xlane.xlu0 %3447
    %3449 = vmax.xlane.f32.xlu0 %v3404
    %v3450 = vpop.xlane.xlu0 %3449
    %3451 = vmax.xlane.f32.xlu0 %v3409
    %v3452 = vpop.xlane.xlu0 %3451
    %3453 = vmax.xlane.f32.xlu0 %v3414
    %v3454 = vpop.xlane.xlu0 %3453
    %3455 = vmax.xlane.f32.xlu0 %v3419
    %v3456 = vpop.xlane.xlu0 %3455
    %3457 = vmax.xlane.f32.xlu0 %v3424
    %v3458 = vpop.xlane.xlu0 %3457
    %v3459 = vsub.f32 %v3349, %v3428
    %v3460 = vsub.f32 %v3354, %v3430
    %v3461 = vsub.f32 %v3359, %v3432
    %v3462 = vsub.f32 %v3364, %v3434
    %v3463 = vsub.f32 %v3369, %v3436
    %v3464 = vsub.f32 %v3374, %v3438
    %v3465 = vsub.f32 %v3379, %v3440
    %v3466 = vsub.f32 %v3384, %v3442
    %v3467 = vsub.f32 %v3389, %v3444
    %v3468 = vsub.f32 %v3394, %v3446
    %v3469 = vsub.f32 %v3399, %v3448
    %v3470 = vsub.f32 %v3404, %v3450
    %v3471 = vsub.f32 %v3409, %v3452
    %v3472 = vsub.f32 %v3414, %v3454
    %v3473 = vsub.f32 %v3419, %v3456
    %v3474 = vsub.f32 %v3424, %v3458
    %v3475 = vmul.f32 %v3459, 1.442695
    %v3476 = vpow.pop %v3475
    %v3477 = vmul.f32 %v3460, 1.442695
    %v3478 = vpow.pop %v3477
    %v3479 = vmul.f32 %v3461, 1.442695
    %v3480 = vpow.pop %v3479
    %v3481 = vmul.f32 %v3462, 1.442695
    %v3482 = vpow.pop %v3481
    %v3483 = vmul.f32 %v3463, 1.442695
    %v3484 = vpow.pop %v3483
    %v3485 = vmul.f32 %v3464, 1.442695
    %v3486 = vpow.pop %v3485
    %v3487 = vmul.f32 %v3465, 1.442695
    %v3488 = vpow.pop %v3487
    %v3489 = vmul.f32 %v3466, 1.442695
    %v3490 = vpow.pop %v3489
    %v3491 = vmul.f32 %v3467, 1.442695
    %v3492 = vpow.pop %v3491
    %v3493 = vmul.f32 %v3468, 1.442695
    %v3494 = vpow.pop %v3493
    %v3495 = vmul.f32 %v3469, 1.442695
    %v3496 = vpow.pop %v3495
    %v3497 = vmul.f32 %v3470, 1.442695
    %v3498 = vpow.pop %v3497
    %v3499 = vmul.f32 %v3471, 1.442695
    %v3500 = vpow.pop %v3499
    %v3501 = vmul.f32 %v3472, 1.442695
    %v3502 = vpow.pop %v3501
    %v3503 = vmul.f32 %v3473, 1.442695
    %v3504 = vpow.pop %v3503
    %v3505 = vmul.f32 %v3474, 1.442695
    %v3506 = vpow.pop %v3505
    %v3507 = vmul.f32 %v2014, %v3476
    %v3508 = vmul.f32 %v2015, %v3478
    %v3509 = vmul.f32 %v2016, %v3480
    %v3510 = vmul.f32 %v2017, %v3482
    %v3511 = vmul.f32 %v2018, %v3484
    %v3512 = vmul.f32 %v2019, %v3486
    %v3513 = vmul.f32 %v2020, %v3488
    %v3514 = vmul.f32 %v2021, %v3490
    %v3515 = vmul.f32 %v2022, %v3492
    %v3516 = vmul.f32 %v2023, %v3494
    %v3517 = vmul.f32 %v2024, %v3496
    %v3518 = vmul.f32 %v2025, %v3498
    %v3519 = vmul.f32 %v2026, %v3500
    %v3520 = vmul.f32 %v2027, %v3502
    %v3521 = vmul.f32 %v2028, %v3504
    %v3522 = vmul.f32 %v2029, %v3506
    %3523 = vadd.xlane.f32.xlu0 %v3507
    %v3524 = vpop.xlane.xlu0 %3523
    %3525 = vadd.xlane.f32.xlu0 %v3508
    %v3526 = vpop.xlane.xlu0 %3525
    %3527 = vadd.xlane.f32.xlu0 %v3509
    %v3528 = vpop.xlane.xlu0 %3527
    %3529 = vadd.xlane.f32.xlu0 %v3510
    %v3530 = vpop.xlane.xlu0 %3529
    %3531 = vadd.xlane.f32.xlu0 %v3511
    %v3532 = vpop.xlane.xlu0 %3531
    %3533 = vadd.xlane.f32.xlu0 %v3512
    %v3534 = vpop.xlane.xlu0 %3533
    %3535 = vadd.xlane.f32.xlu0 %v3513
    %v3536 = vpop.xlane.xlu0 %3535
    %3537 = vadd.xlane.f32.xlu0 %v3514
    %v3538 = vpop.xlane.xlu0 %3537
    %3539 = vadd.xlane.f32.xlu0 %v3515
    %v3540 = vpop.xlane.xlu0 %3539
    %3541 = vadd.xlane.f32.xlu0 %v3516
    %v3542 = vpop.xlane.xlu0 %3541
    %3543 = vadd.xlane.f32.xlu0 %v3517
    %v3544 = vpop.xlane.xlu0 %3543
    %3545 = vadd.xlane.f32.xlu0 %v3518
    %v3546 = vpop.xlane.xlu0 %3545
    %3547 = vadd.xlane.f32.xlu0 %v3519
    %v3548 = vpop.xlane.xlu0 %3547
    %3549 = vadd.xlane.f32.xlu0 %v3520
    %v3550 = vpop.xlane.xlu0 %3549
    %3551 = vadd.xlane.f32.xlu0 %v3521
    %v3552 = vpop.xlane.xlu0 %3551
    %3553 = vadd.xlane.f32.xlu0 %v3522
    %v3554 = vpop.xlane.xlu0 %3553
    %v3555 = vrcp.pop %v3524
    %v3556 = vrcp.pop %v3526
    %v3557 = vrcp.pop %v3528
    %v3558 = vrcp.pop %v3530
    %v3559 = vrcp.pop %v3532
    %v3560 = vrcp.pop %v3534
    %v3561 = vrcp.pop %v3536
    %v3562 = vrcp.pop %v3538
    %v3563 = vrcp.pop %v3540
    %v3564 = vrcp.pop %v3542
    %v3565 = vrcp.pop %v3544
    %v3566 = vrcp.pop %v3546
    %v3567 = vrcp.pop %v3548
    %v3568 = vrcp.pop %v3550
    %v3569 = vrcp.pop %v3552
    %v3570 = vrcp.pop %v3554
    %v3571 = vmul.f32 %v3524, %v3555
    %v3572 = vmul.f32 %v3526, %v3556
    %v3573 = vmul.f32 %v3528, %v3557
    %v3574 = vmul.f32 %v3530, %v3558
    %v3575 = vmul.f32 %v3532, %v3559
    %v3576 = vmul.f32 %v3534, %v3560
    %v3577 = vmul.f32 %v3536, %v3561
    %v3578 = vmul.f32 %v3538, %v3562
    %v3579 = vmul.f32 %v3540, %v3563
    %v3580 = vmul.f32 %v3542, %v3564
    %v3581 = vmul.f32 %v3544, %v3565
    %v3582 = vmul.f32 %v3546, %v3566
    %v3583 = vmul.f32 %v3548, %v3567
    %v3584 = vmul.f32 %v3550, %v3568
    %v3585 = vmul.f32 %v3552, %v3569
    %v3586 = vmul.f32 %v3554, %v3570
    %v3587 = vsub.f32 2.0, %v3571
    %v3588 = vsub.f32 2.0, %v3572
    %v3589 = vsub.f32 2.0, %v3573
    %v3590 = vsub.f32 2.0, %v3574
    %v3591 = vsub.f32 2.0, %v3575
    %v3592 = vsub.f32 2.0, %v3576
    %v3593 = vsub.f32 2.0, %v3577
    %v3594 = vsub.f32 2.0, %v3578
    %v3595 = vsub.f32 2.0, %v3579
    %v3596 = vsub.f32 2.0, %v3580
    %v3597 = vsub.f32 2.0, %v3581
    %v3598 = vsub.f32 2.0, %v3582
    %v3599 = vsub.f32 2.0, %v3583
    %v3600 = vsub.f32 2.0, %v3584
    %v3601 = vsub.f32 2.0, %v3585
    %v3602 = vsub.f32 2.0, %v3586
    %v3603 = vmul.f32 %v3555, %v3587
    %v3604 = vmul.f32 %v3556, %v3588
    %v3605 = vmul.f32 %v3557, %v3589
    %v3606 = vmul.f32 %v3558, %v3590
    %v3607 = vmul.f32 %v3559, %v3591
    %v3608 = vmul.f32 %v3560, %v3592
    %v3609 = vmul.f32 %v3561, %v3593
    %v3610 = vmul.f32 %v3562, %v3594
    %v3611 = vmul.f32 %v3563, %v3595
    %v3612 = vmul.f32 %v3564, %v3596
    %v3613 = vmul.f32 %v3565, %v3597
    %v3614 = vmul.f32 %v3566, %v3598
    %v3615 = vmul.f32 %v3567, %v3599
    %v3616 = vmul.f32 %v3568, %v3600
    %v3617 = vmul.f32 %v3569, %v3601
    %v3618 = vmul.f32 %v3570, %v3602
    %v3619 = vand.u32 2147483647, %v3603
    %v3620 = vand.u32 2147483647, %v3604
    %v3621 = vand.u32 2147483647, %v3605
    %v3622 = vand.u32 2147483647, %v3606
    %v3623 = vand.u32 2147483647, %v3607
    %v3624 = vand.u32 2147483647, %v3608
    %v3625 = vand.u32 2147483647, %v3609
    %v3626 = vand.u32 2147483647, %v3610
    %v3627 = vand.u32 2147483647, %v3611
    %v3628 = vand.u32 2147483647, %v3612
    %v3629 = vand.u32 2147483647, %v3613
    %v3630 = vand.u32 2147483647, %v3614
    %v3631 = vand.u32 2147483647, %v3615
    %v3632 = vand.u32 2147483647, %v3616
    %v3633 = vand.u32 2147483647, %v3617
    %v3634 = vand.u32 2147483647, %v3618
    %vm3635 = vcmp.lt.f32.partialorder %v3619, inf
    %vm3636 = vcmp.lt.f32.partialorder %v3620, inf
    %vm3637 = vcmp.lt.f32.partialorder %v3621, inf
    %vm3638 = vcmp.lt.f32.partialorder %v3622, inf
    %vm3639 = vcmp.lt.f32.partialorder %v3623, inf
    %vm3640 = vcmp.lt.f32.partialorder %v3624, inf
    %vm3641 = vcmp.lt.f32.partialorder %v3625, inf
    %vm3642 = vcmp.lt.f32.partialorder %v3626, inf
    %vm3643 = vcmp.lt.f32.partialorder %v3627, inf
    %vm3644 = vcmp.lt.f32.partialorder %v3628, inf
    %vm3645 = vcmp.lt.f32.partialorder %v3629, inf
    %vm3646 = vcmp.lt.f32.partialorder %v3630, inf
    %vm3647 = vcmp.lt.f32.partialorder %v3631, inf
    %vm3648 = vcmp.lt.f32.partialorder %v3632, inf
    %vm3649 = vcmp.lt.f32.partialorder %v3633, inf
    %vm3650 = vcmp.lt.f32.partialorder %v3634, inf
    %v3651 = vsel %vm3635, %v3603, 0.0
    %v3652 = vsel %vm3636, %v3604, 0.0
    %v3653 = vsel %vm3637, %v3605, 0.0
    %v3654 = vsel %vm3638, %v3606, 0.0
    %v3655 = vsel %vm3639, %v3607, 0.0
    %v3656 = vsel %vm3640, %v3608, 0.0
    %v3657 = vsel %vm3641, %v3609, 0.0
    %v3658 = vsel %vm3642, %v3610, 0.0
    %v3659 = vsel %vm3643, %v3611, 0.0
    %v3660 = vsel %vm3644, %v3612, 0.0
    %v3661 = vsel %vm3645, %v3613, 0.0
    %v3662 = vsel %vm3646, %v3614, 0.0
    %v3663 = vsel %vm3647, %v3615, 0.0
    %v3664 = vsel %vm3648, %v3616, 0.0
    %v3665 = vsel %vm3649, %v3617, 0.0
    %v3666 = vsel %vm3650, %v3618, 0.0
    %v3667 = vmul.f32 %v3507, %v3651
    %v3668 = vmul.f32 %v3508, %v3652
    %v3669 = vmul.f32 %v3509, %v3653
    %v3670 = vmul.f32 %v3510, %v3654
    %v3671 = vmul.f32 %v3511, %v3655
    %v3672 = vmul.f32 %v3512, %v3656
    %v3673 = vmul.f32 %v3513, %v3657
    %v3674 = vmul.f32 %v3514, %v3658
    %v3675 = vmul.f32 %v3515, %v3659
    %v3676 = vmul.f32 %v3516, %v3660
    %v3677 = vmul.f32 %v3517, %v3661
    %v3678 = vmul.f32 %v3518, %v3662
    %v3679 = vmul.f32 %v3519, %v3663
    %v3680 = vmul.f32 %v3520, %v3664
    %v3681 = vmul.f32 %v3521, %v3665
    %v3682 = vmul.f32 %v3522, %v3666
    %3683 = vmatprep.subr.mxu0 0.0
    %3684 = vmatpush1.msra.mxu0 %v3667
    %3685 = vmatprep.subr.mxu0 0.0
    %3686 = vmatpush1.msra.mxu0 %v3668
    %3687 = vmatprep.subr.mxu0 0.0
    %3688 = vmatpush1.msra.mxu0 %v3669
    %3689 = vmatprep.subr.mxu0 0.0
    %3690 = vmatpush1.msra.mxu0 %v3670
    %3691 = vmatprep.subr.mxu0 0.0
    %3692 = vmatpush1.msra.mxu0 %v3671
    %3693 = vmatprep.subr.mxu0 0.0
    %3694 = vmatpush1.msra.mxu0 %v3672
    %3695 = vmatprep.subr.mxu0 0.0
    %3696 = vmatpush1.msra.mxu0 %v3673
    %3697 = vmatprep.subr.mxu0 0.0
    %3698 = vmatpush1.msra.mxu0 %v3674
    %3699 = vmatprep.subr.mxu0 0.0
    %3700 = vmatpush1.msra.mxu0 %v3675
    %3701 = vmatprep.subr.mxu0 0.0
    %3702 = vmatpush1.msra.mxu0 %v3676
    %3703 = vmatprep.subr.mxu0 0.0
    %3704 = vmatpush1.msra.mxu0 %v3677
    %3705 = vmatprep.subr.mxu0 0.0
    %3706 = vmatpush1.msra.mxu0 %v3678
    %3707 = vmatprep.subr.mxu0 0.0
    %3708 = vmatpush1.msra.mxu0 %v3679
    %3709 = vmatprep.subr.mxu0 0.0
    %3710 = vmatpush1.msra.mxu0 %v3680
    %3711 = vmatprep.subr.mxu0 0.0
    %3712 = vmatpush1.msra.mxu0 %v3681
    %3713 = vmatprep.subr.mxu0 0.0
    %3714 = vmatpush1.msra.mxu0 %v3682
    %3715 = vmatprep.subr.mxu0 0.0
    %3716 = vmatpush1.msra.mxu0 0.0
    %3717 = vmatprep.subr.mxu0 0.0
    %3718 = vmatpush1.msra.mxu0 0.0
    %3719 = vmatprep.subr.mxu0 0.0
    %3720 = vmatpush1.msra.mxu0 0.0
    %3721 = vmatprep.subr.mxu0 0.0
    %3722 = vmatpush1.msra.mxu0 0.0
    %3723 = vmatprep.subr.mxu0 0.0
    %3724 = vmatpush1.msra.mxu0 0.0
    %3725 = vmatprep.subr.mxu0 0.0
    %3726 = vmatpush1.msra.mxu0 0.0
    %3727 = vmatprep.subr.mxu0 0.0
    %3728 = vmatpush1.msra.mxu0 0.0
    %3729 = vmatprep.subr.mxu0 0.0
    %3730 = vmatpush1.msra.mxu0 0.0
    %3731 = vmatprep.subr.mxu0 0.0
    %3732 = vmatpush1.msra.mxu0 0.0
    %3733 = vmatprep.subr.mxu0 0.0
    %3734 = vmatpush1.msra.mxu0 0.0
    %3735 = vmatprep.subr.mxu0 0.0
    %3736 = vmatpush1.msra.mxu0 0.0
    %3737 = vmatprep.subr.mxu0 0.0
    %3738 = vmatpush1.msra.mxu0 0.0
    %3739 = vmatprep.subr.mxu0 0.0
    %3740 = vmatpush1.msra.mxu0 0.0
    %3741 = vmatprep.subr.mxu0 0.0
    %3742 = vmatpush1.msra.mxu0 0.0
    %3743 = vmatprep.subr.mxu0 0.0
    %3744 = vmatpush1.msra.mxu0 0.0
    %3745 = vmatprep.subr.mxu0 0.0
    %3746 = vmatpush1.msra.mxu0 0.0
    %3747 = vmatprep.mubr.f32.mxu0 0.0
    %3748 = vmatmul.mubr.f32.gmra.mrb[0].mxu0 %v3667
    %v3749 = vpop.f32.mrb[0].mxu0
    %v3750 = vadd.f32 0.0, %v3749
    %v3751 = vpop.f32.mrb[0].mxu0
    %3752 = vmatprep.mubr.f32.mxu0 0.0
    %3753 = vmatmul.mubr.f32.gmra.mrb[0].mxu0 %v3668
    %v3754 = vpop.f32.mrb[0].mxu0
    %v3755 = vadd.f32 0.0, %v3754
    %v3756 = vpop.f32.mrb[0].mxu0
    %3757 = vmatprep.mubr.f32.mxu0 0.0
    %3758 = vmatmul.mubr.f32.gmra.mrb[0].mxu0 %v3669
    %v3759 = vpop.f32.mrb[0].mxu0
    %v3760 = vadd.f32 0.0, %v3759
    %v3761 = vpop.f32.mrb[0].mxu0
    %3762 = vmatprep.mubr.f32.mxu0 0.0
    %3763 = vmatmul.mubr.f32.gmra.mrb[0].mxu0 %v3670
    %v3764 = vpop.f32.mrb[0].mxu0
    %v3765 = vadd.f32 0.0, %v3764
    %v3766 = vpop.f32.mrb[0].mxu0
    %3767 = vmatprep.mubr.f32.mxu0 0.0
    %3768 = vmatmul.mubr.f32.gmra.mrb[0].mxu0 %v3671
    %v3769 = vpop.f32.mrb[0].mxu0
    %v3770 = vadd.f32 0.0, %v3769
    %v3771 = vpop.f32.mrb[0].mxu0
    %3772 = vmatprep.mubr.f32.mxu0 0.0
    %3773 = vmatmul.mubr.f32.gmra.mrb[0].mxu0 %v3672
    %v3774 = vpop.f32.mrb[0].mxu0
    %v3775 = vadd.f32 0.0, %v3774
    %v3776 = vpop.f32.mrb[0].mxu0
    %3777 = vmatprep.mubr.f32.mxu0 0.0
    %3778 = vmatmul.mubr.f32.gmra.mrb[0].mxu0 %v3673
    %v3779 = vpop.f32.mrb[0].mxu0
    %v3780 = vadd.f32 0.0, %v3779
    %v3781 = vpop.f32.mrb[0].mxu0
    %3782 = vmatprep.mubr.f32.mxu0 0.0
    %3783 = vmatmul.mubr.f32.gmra.mrb[0].mxu0 %v3674
    %v3784 = vpop.f32.mrb[0].mxu0
    %v3785 = vadd.f32 0.0, %v3784
    %v3786 = vpop.f32.mrb[0].mxu0
    %3787 = vmatprep.mubr.f32.mxu0 0.0
    %3788 = vmatmul.mubr.f32.gmra.mrb[0].mxu0 %v3675
    %v3789 = vpop.f32.mrb[0].mxu0
    %v3790 = vadd.f32 0.0, %v3789
    %v3791 = vpop.f32.mrb[0].mxu0
    %3792 = vmatprep.mubr.f32.mxu0 0.0
    %3793 = vmatmul.mubr.f32.gmra.mrb[0].mxu0 %v3676
    %v3794 = vpop.f32.mrb[0].mxu0
    %v3795 = vadd.f32 0.0, %v3794
    %v3796 = vpop.f32.mrb[0].mxu0
    %3797 = vmatprep.mubr.f32.mxu0 0.0
    %3798 = vmatmul.mubr.f32.gmra.mrb[0].mxu0 %v3677
    %v3799 = vpop.f32.mrb[0].mxu0
    %v3800 = vadd.f32 0.0, %v3799
    %v3801 = vpop.f32.mrb[0].mxu0
    %3802 = vmatprep.mubr.f32.mxu0 0.0
    %3803 = vmatmul.mubr.f32.gmra.mrb[0].mxu0 %v3678
    %v3804 = vpop.f32.mrb[0].mxu0
    %v3805 = vadd.f32 0.0, %v3804
    %v3806 = vpop.f32.mrb[0].mxu0
    %3807 = vmatprep.mubr.f32.mxu0 0.0
    %3808 = vmatmul.mubr.f32.gmra.mrb[0].mxu0 %v3679
    %v3809 = vpop.f32.mrb[0].mxu0
    %v3810 = vadd.f32 0.0, %v3809
    %v3811 = vpop.f32.mrb[0].mxu0
    %3812 = vmatprep.mubr.f32.mxu0 0.0
    %3813 = vmatmul.mubr.f32.gmra.mrb[0].mxu0 %v3680
    %v3814 = vpop.f32.mrb[0].mxu0
    %v3815 = vadd.f32 0.0, %v3814
    %v3816 = vpop.f32.mrb[0].mxu0
    %3817 = vmatprep.mubr.f32.mxu0 0.0
    %3818 = vmatmul.mubr.f32.gmra.mrb[0].mxu0 %v3681
    %v3819 = vpop.f32.mrb[0].mxu0
    %v3820 = vadd.f32 0.0, %v3819
    %v3821 = vpop.f32.mrb[0].mxu0
    %3822 = vmatprep.mubr.f32.mxu0 0.0
    %3823 = vmatmul.mubr.f32.gmra.mrb[0].mxu0 %v3682
    %v3824 = vpop.f32.mrb[0].mxu0
    %v3825 = vadd.f32 0.0, %v3824
    %v3826 = vpop.f32.mrb[0].mxu0
    %3827 = vdwg.mxu0
    %v3828 = vsel %vm48, %v3667, 0.0
    %v3829 = vsel %vm49, %v3668, 0.0
    %v3830 = vsel %vm50, %v3669, 0.0
    %v3831 = vsel %vm51, %v3670, 0.0
    %v3832 = vsel %vm52, %v3671, 0.0
    %v3833 = vsel %vm53, %v3672, 0.0
    %v3834 = vsel %vm54, %v3673, 0.0
    %v3835 = vsel %vm55, %v3674, 0.0
    %v3836 = vsel %vm56, %v3675, 0.0
    %v3837 = vsel %vm57, %v3676, 0.0
    %v3838 = vsel %vm58, %v3677, 0.0
    %v3839 = vsel %vm59, %v3678, 0.0
    %v3840 = vsel %vm60, %v3679, 0.0
    %v3841 = vsel %vm61, %v3680, 0.0
    %v3842 = vsel %vm62, %v3681, 0.0
    %v3843 = vsel %vm63, %v3682, 0.0
    %v3844 = vsel %vm48, %v3750, 0.0
    %v3845 = vsel %vm49, %v3755, 0.0
    %v3846 = vsel %vm50, %v3760, 0.0
    %v3847 = vsel %vm51, %v3765, 0.0
    %v3848 = vsel %vm52, %v3770, 0.0
    %v3849 = vsel %vm53, %v3775, 0.0
    %v3850 = vsel %vm54, %v3780, 0.0
    %v3851 = vsel %vm55, %v3785, 0.0
    %v3852 = vsel %vm56, %v3790, 0.0
    %v3853 = vsel %vm57, %v3795, 0.0
    %v3854 = vsel %vm58, %v3800, 0.0
    %v3855 = vsel %vm59, %v3805, 0.0
    %v3856 = vsel %vm60, %v3810, 0.0
    %v3857 = vsel %vm61, %v3815, 0.0
    %v3858 = vsel %vm62, %v3820, 0.0
    %v3859 = vsel %vm63, %v3825, 0.0
    %s3860 = scalar_lea.vmem [#allocation6], 384
    %3861 = vst [vmem:[%s3860] sm:$0xff] %v3828
    %3862 = vst [vmem:[%s3860 + $0x18] sm:$0xff] %v3829
    %3863 = vst [vmem:[%s3860 + $0x30] sm:$0xff] %v3830
    %3864 = vst [vmem:[%s3860 + $0x48] sm:$0xff] %v3831
    %3865 = vst [vmem:[%s3860 + $0x60] sm:$0xff] %v3832
    %3866 = vst [vmem:[%s3860 + $0x78] sm:$0xff] %v3833
    %3867 = vst [vmem:[%s3860 + $0x90] sm:$0xff] %v3834
    %3868 = vst [vmem:[%s3860 + $0xa8] sm:$0xff] %v3835
    %3869 = vst [vmem:[%s3860 + $0xc0] sm:$0xff] %v3836
    %3870 = vst [vmem:[%s3860 + $0xd8] sm:$0xff] %v3837
    %3871 = vst [vmem:[%s3860 + $0xf0] sm:$0xff] %v3838
    %3872 = vst [vmem:[%s3860 + $0x108] sm:$0xff] %v3839
    %3873 = vst [vmem:[%s3860 + $0x120] sm:$0xff] %v3840
    %3874 = vst [vmem:[%s3860 + $0x138] sm:$0xff] %v3841
    %3875 = vst [vmem:[%s3860 + $0x150] sm:$0xff] %v3842
    %3876 = vst [vmem:[%s3860 + $0x168] sm:$0xff] %v3843
    %s3877 = scalar_lea.vmem [#allocation7], 384
    %3878 = vst [vmem:[%s3877] sm:$0xff] %v3844
    %3879 = vst [vmem:[%s3877 + $0x18] sm:$0xff] %v3845
    %3880 = vst [vmem:[%s3877 + $0x30] sm:$0xff] %v3846
    %3881 = vst [vmem:[%s3877 + $0x48] sm:$0xff] %v3847
    %3882 = vst [vmem:[%s3877 + $0x60] sm:$0xff] %v3848
    %3883 = vst [vmem:[%s3877 + $0x78] sm:$0xff] %v3849
    %3884 = vst [vmem:[%s3877 + $0x90] sm:$0xff] %v3850
    %3885 = vst [vmem:[%s3877 + $0xa8] sm:$0xff] %v3851
    %3886 = vst [vmem:[%s3877 + $0xc0] sm:$0xff] %v3852
    %3887 = vst [vmem:[%s3877 + $0xd8] sm:$0xff] %v3853
    %3888 = vst [vmem:[%s3877 + $0xf0] sm:$0xff] %v3854
    %3889 = vst [vmem:[%s3877 + $0x108] sm:$0xff] %v3855
    %3890 = vst [vmem:[%s3877 + $0x120] sm:$0xff] %v3856
    %3891 = vst [vmem:[%s3877 + $0x138] sm:$0xff] %v3857
    %3892 = vst [vmem:[%s3877 + $0x150] sm:$0xff] %v3858
    %3893 = vst [vmem:[%s3877 + $0x168] sm:$0xff] %v3859
    %3894 = vst [vmem:[%s3860 + $0x8] sm:$0xff] %v3828
    %3895 = vst [vmem:[%s3860 + $0x20] sm:$0xff] %v3829
    %3896 = vst [vmem:[%s3860 + $0x38] sm:$0xff] %v3830
    %3897 = vst [vmem:[%s3860 + $0x50] sm:$0xff] %v3831
    %3898 = vst [vmem:[%s3860 + $0x68] sm:$0xff] %v3832
    %3899 = vst [vmem:[%s3860 + $0x80] sm:$0xff] %v3833
    %3900 = vst [vmem:[%s3860 + $0x98] sm:$0xff] %v3834
    %3901 = vst [vmem:[%s3860 + $0xb0] sm:$0xff] %v3835
    %3902 = vst [vmem:[%s3860 + $0xc8] sm:$0xff] %v3836
    %3903 = vst [vmem:[%s3860 + $0xe0] sm:$0xff] %v3837
    %3904 = vst [vmem:[%s3860 + $0xf8] sm:$0xff] %v3838
    %3905 = vst [vmem:[%s3860 + $0x110] sm:$0xff] %v3839
    %3906 = vst [vmem:[%s3860 + $0x128] sm:$0xff] %v3840
    %3907 = vst [vmem:[%s3860 + $0x140] sm:$0xff] %v3841
    %3908 = vst [vmem:[%s3860 + $0x158] sm:$0xff] %v3842
    %3909 = vst [vmem:[%s3860 + $0x170] sm:$0xff] %v3843
    %3910 = vst [vmem:[%s3877 + $0x8] sm:$0xff] %v3844
    %3911 = vst [vmem:[%s3877 + $0x20] sm:$0xff] %v3845
    %3912 = vst [vmem:[%s3877 + $0x38] sm:$0xff] %v3846
    %3913 = vst [vmem:[%s3877 + $0x50] sm:$0xff] %v3847
    %3914 = vst [vmem:[%s3877 + $0x68] sm:$0xff] %v3848
    %3915 = vst [vmem:[%s3877 + $0x80] sm:$0xff] %v3849
    %3916 = vst [vmem:[%s3877 + $0x98] sm:$0xff] %v3850
    %3917 = vst [vmem:[%s3877 + $0xb0] sm:$0xff] %v3851
    %3918 = vst [vmem:[%s3877 + $0xc8] sm:$0xff] %v3852
    %3919 = vst [vmem:[%s3877 + $0xe0] sm:$0xff] %v3853
    %3920 = vst [vmem:[%s3877 + $0xf8] sm:$0xff] %v3854
    %3921 = vst [vmem:[%s3877 + $0x110] sm:$0xff] %v3855
    %3922 = vst [vmem:[%s3877 + $0x128] sm:$0xff] %v3856
    %3923 = vst [vmem:[%s3877 + $0x140] sm:$0xff] %v3857
    %3924 = vst [vmem:[%s3877 + $0x158] sm:$0xff] %v3858
    %3925 = vst [vmem:[%s3877 + $0x170] sm:$0xff] %v3859
    %3926 = vst [vmem:[%s3860 + $0x10] sm:$0xff] %v3828
    %3927 = vst [vmem:[%s3860 + $0x28] sm:$0xff] %v3829
    %3928 = vst [vmem:[%s3860 + $0x40] sm:$0xff] %v3830
    %3929 = vst [vmem:[%s3860 + $0x58] sm:$0xff] %v3831
    %3930 = vst [vmem:[%s3860 + $0x70] sm:$0xff] %v3832
    %3931 = vst [vmem:[%s3860 + $0x88] sm:$0xff] %v3833
    %3932 = vst [vmem:[%s3860 + $0xa0] sm:$0xff] %v3834
    %3933 = vst [vmem:[%s3860 + $0xb8] sm:$0xff] %v3835
    %3934 = vst [vmem:[%s3860 + $0xd0] sm:$0xff] %v3836
    %3935 = vst [vmem:[%s3860 + $0xe8] sm:$0xff] %v3837
    %3936 = vst [vmem:[%s3860 + $0x100] sm:$0xff] %v3838
    %3937 = vst [vmem:[%s3860 + $0x118] sm:$0xff] %v3839
    %3938 = vst [vmem:[%s3860 + $0x130] sm:$0xff] %v3840
    %3939 = vst [vmem:[%s3860 + $0x148] sm:$0xff] %v3841
    %3940 = vst [vmem:[%s3860 + $0x160] sm:$0xff] %v3842
    %3941 = vst [vmem:[%s3860 + $0x178] sm:$0xff] %v3843
    %3942 = vst [vmem:[%s3877 + $0x10] sm:$0xff] %v3844
    %3943 = vst [vmem:[%s3877 + $0x28] sm:$0xff] %v3845
    %3944 = vst [vmem:[%s3877 + $0x40] sm:$0xff] %v3846
    %3945 = vst [vmem:[%s3877 + $0x58] sm:$0xff] %v3847
    %3946 = vst [vmem:[%s3877 + $0x70] sm:$0xff] %v3848
    %3947 = vst [vmem:[%s3877 + $0x88] sm:$0xff] %v3849
    %3948 = vst [vmem:[%s3877 + $0xa0] sm:$0xff] %v3850
    %3949 = vst [vmem:[%s3877 + $0xb8] sm:$0xff] %v3851
    %3950 = vst [vmem:[%s3877 + $0xd0] sm:$0xff] %v3852
    %3951 = vst [vmem:[%s3877 + $0xe8] sm:$0xff] %v3853
    %3952 = vst [vmem:[%s3877 + $0x100] sm:$0xff] %v3854
    %3953 = vst [vmem:[%s3877 + $0x118] sm:$0xff] %v3855
    %3954 = vst [vmem:[%s3877 + $0x130] sm:$0xff] %v3856
    %3955 = vst [vmem:[%s3877 + $0x148] sm:$0xff] %v3857
    %3956 = vst [vmem:[%s3877 + $0x160] sm:$0xff] %v3858
    %3957 = vst [vmem:[%s3877 + $0x178] sm:$0xff] %v3859
    // Predicated region
    $region14: #{forward.1} parent=1 // pred_check
      _
    $region15: #{forward.1} parent=1 // pred_check_branch
      %3959 = sbr.rel (0) target = $region17
    $region16: #{forward.1} parent=1 // pred_region
      %s3961 = ssub.s32 12288, 12288
      %3962 = vsyncadd [#allocation3], %s3961
      %s3963 = sshll.u32 [#allocation2], 4
      %s3964 = int_to_ptr.vmem [resolvable:$true] %s3963
      %3969 = dma.vmem_to_hbm [thread:$0]  %s3964, 12288, %s3, [#allocation3], 384, 384, 24
    $region17: #{forward.1} parent=1 // pred_fallthru
      _
    // Predicated region
    $region18: #{forward.1} parent=1 // pred_check
      _
    $region19: #{forward.1} parent=1 // pred_check_branch
      %3971 = sbr.rel (0) target = $region21
    $region20: #{forward.1} parent=1 // pred_region
      %s3973 = ssub.s32 12288, 12288
      %3974 = vsyncadd [#allocation5], %s3973
      %s3975 = sshll.u32 [#allocation4], 4
      %s3976 = int_to_ptr.vmem [resolvable:$true] %s3975
      %3981 = dma.vmem_to_hbm [thread:$0]  %s3976, 12288, %s4, [#allocation5], 384, 384, 24
    $region21: #{forward.1} parent=1 // pred_fallthru
      _
    // Predicated region
    $region22: #{forward.1} parent=1 // pred_check
      _
    $region23: #{forward.1} parent=1 // pred_check_branch
      %3983 = sbr.rel (0) target = $region25
    $region24: #{forward.1} parent=1 // pred_region
      %s3985 = ssub.s32 12288, 12288
      %3986 = vsyncadd [#allocation5], %s3985
      %s3987 = sshll.u32 [#allocation6], 4
      %s3988 = int_to_ptr.vmem [resolvable:$true] %s3987
      %3993 = dma.vmem_to_hbm [thread:$0]  %s3988, 12288, %s5, [#allocation5], 384, 384, 24
    $region25: #{forward.1} parent=1 // pred_fallthru
      _
    // Predicated region
    $region26: #{forward.1} parent=1 // pred_check
      _
    $region27: #{forward.1} parent=1 // pred_check_branch
      %3995 = sbr.rel (0) target = $region29
    $region28: #{forward.1} parent=1 // pred_region
      %s3997 = ssub.s32 12288, 12288
      %3998 = vsyncadd [#allocation8], %s3997
      %s3999 = sshll.u32 [#allocation7], 4
      %s4000 = int_to_ptr.vmem [resolvable:$true] %s3999
      %4005 = dma.vmem_to_hbm [thread:$0]  %s4000, 12288, %s6, [#allocation8], 384, 384, 24
    $region29: #{forward.1} parent=1 // pred_fallthru
      _
    // Predicated region
    $region30: #{forward.1} parent=1 // pred_check
      _
    $region31: #{forward.1} parent=1 // pred_check_branch
      %4007 = sbr.rel (0) target = $region33
    $region32: #{forward.1} parent=1 // pred_region
      %4008 = dma.done [#allocation3], 12288
    $region33: #{forward.1} parent=1 // pred_fallthru
      _
    // Predicated region
    $region34: #{forward.1} parent=1 // pred_check
      _
    $region35: #{forward.1} parent=1 // pred_check_branch
      %4010 = sbr.rel (0) target = $region37
    $region36: #{forward.1} parent=1 // pred_region
      %4011 = dma.done [#allocation5], 12288
    $region37: #{forward.1} parent=1 // pred_fallthru
      _
    // Predicated region
    $region38: #{forward.1} parent=1 // pred_check
      _
    $region39: #{forward.1} parent=1 // pred_check_branch
      %4013 = sbr.rel (0) target = $region41
    $region40: #{forward.1} parent=1 // pred_region
      %4014 = dma.done [#allocation5], 12288
    $region41: #{forward.1} parent=1 // pred_fallthru
      _
    // Predicated region
    $region42: #{forward.1} parent=1 // pred_check
      _
    $region43: #{forward.1} parent=1 // pred_check_branch
      %4016 = sbr.rel (0) target = $region45
    $region44: #{forward.1} parent=1 // pred_region
      %4017 = dma.done [#allocation8], 12288
    $region45: #{forward.1} parent=1 // pred_fallthru
      _
    %4018 = vsyncpa [#allocation3], 1
    %4019 = vsyncpa [#allocation5], 1
    %4020 = vsyncpa [#allocation8], 1

</llo_original>
